<compile_context>
chip_gen: v7x
topology: tpu7x:2x2x1
jax: 0.10.0
libtpu: 0.0.40
codegen_flags: <defaults>
</compile_context>

<pallas_src>
import jax
import jax.numpy as jnp
from jax import lax
from jax.experimental import pallas as pl
from jax.experimental.pallas import tpu as pltpu

HIDDEN_SIZE = 10
INPUT_SIZE = 1
OUTPUT_SIZE = 1
NUM_TIME_STEPS = 50  # x has NUM_TIME_STEPS - 1 = 49 steps


def rnn_linear_kernel(x_ref, h0_ref, pp_ref, whh_ref, y_ref, hx_ref, hseq_ref):
    """Sequential Elman-RNN recurrence + epilogue linear head, all in VMEM.

    x_ref    : (T, 1)   input sequence (batch of 1 squeezed)
    h0_ref   : (1, H)   initial hidden state (aliased with hx output buffer)
    pp_ref   : (4, H)   packed params: row0 = W_ih^T, row1 = b_ih + b_hh,
                        row2 = W_lin row, row3 = [b_lin, 0, ..., 0]
    whh_ref  : (H, H)   == W_hh^T
    y_ref    : (T, 1)   per-step linear output
    hx_ref   : (1, H)   final hidden state
    hseq_ref : (T, H)   VMEM scratch: holds the hoisted input projection, then is
                        overwritten row-by-row with the hidden-state sequence
    """
    T = x_ref.shape[0]

    # Static slices of the packed parameter block (zero-cost ref views).
    wih_row = pp_ref[pl.ds(0, 1), :]            # (1, H)  W_ih^T  (input_size == 1)
    b_row = pp_ref[pl.ds(1, 1), :]              # (1, H)  b_ih + b_hh
    wlin_row = pp_ref[pl.ds(2, 1), :]           # (1, H)  W_lin row
    blin = pp_ref[pl.ds(3, 1), pl.ds(0, 1)]     # (1, 1)  b_lin

    # Hoisted input projection: one vectorized VPU op instead of T tiny dots.
    hseq_ref[...] = x_ref[...] * wih_row + b_row

    # Loop-invariant recurrence weight, loaded once.
    whh = whh_ref[...]                          # (H, H)

    def body(t, h_prev):
        # Read the precomputed input projection for step t (row not yet overwritten).
        pre = hseq_ref[pl.ds(t, 1), :] + jnp.dot(
            h_prev, whh, preferred_element_type=jnp.float32)
        h_new = jnp.tanh(pre)
        # Store the hidden state in place (1 sublane, full lane width) — the output
        # head is no longer on the serial critical path.
        hseq_ref[pl.ds(t, 1), :] = h_new
        return h_new

    # T = 49 is a short fixed trip count: full unroll gives the scheduler
    # cross-iteration visibility for the serial matmul/tanh chain.
    h_final = lax.fori_loop(0, T, body, h0_ref[...], unroll=True)
    hx_ref[...] = h_final

    # Epilogue head (H -> 1): one batched VPU multiply + one XLU reduce over the whole
    # (T, H) block, then a single whole-block store.
    y_ref[...] = jnp.sum(hseq_ref[...] * wlin_row, axis=-1, keepdims=True) + blin


def _net_forward(x, hx, params):
    """x: (1, T, 1) float32, hx: (1, 1, H) float32.  Returns (out (T,1), hx (1,1,H))."""
    T = x.shape[1]
    x2d = x.reshape(T, INPUT_SIZE).astype(jnp.float32)
    h0 = hx.reshape(1, HIDDEN_SIZE).astype(jnp.float32)

    # Pack the small per-row parameters into a single (4, H) operand.
    wih_row = params["w_ih"].T.astype(jnp.float32)                          # (1, H)
    b_row = (params["b_ih"] + params["b_hh"]).reshape(1, HIDDEN_SIZE)       # (1, H)
    wlin_row = params["w_lin"].reshape(1, HIDDEN_SIZE)                      # (1, H)
    blin_row = jnp.zeros((1, HIDDEN_SIZE), jnp.float32).at[0, 0].set(
        params["b_lin"].reshape(())[()])                                    # (1, H)
    packed = jnp.concatenate(
        [wih_row, b_row, wlin_row, blin_row], axis=0).astype(jnp.float32)   # (4, H)

    whh_t = params["w_hh"].T.astype(jnp.float32)                            # (H, H)

    vmem = pl.BlockSpec(memory_space=pltpu.MemorySpace.VMEM)

    y, hx_out = pl.pallas_call(
        rnn_linear_kernel,
        out_shape=(
            jax.ShapeDtypeStruct((T, OUTPUT_SIZE), jnp.float32),
            jax.ShapeDtypeStruct((1, HIDDEN_SIZE), jnp.float32),
        ),
        in_specs=[vmem] * 4,
        out_specs=(vmem, vmem),
        scratch_shapes=[pltpu.VMEM((T, HIDDEN_SIZE), jnp.float32)],
        # Alias the (1, H) initial hidden state buffer with the final hidden state.
        input_output_aliases={1: 1},
    )(x2d, h0, packed, whh_t)

    return y, hx_out.reshape(1, 1, HIDDEN_SIZE)


net_forward = jax.jit(_net_forward)


def net_forward_ref(x, hx, params):
    """Pure-JAX reference of the PyTorch forward (for verification)."""
    T = x.shape[1]
    x2d = x.reshape(T, INPUT_SIZE)
    h = hx.reshape(1, HIDDEN_SIZE)
    outs = []
    for t in range(T):
        h = jnp.tanh(x2d[t:t + 1] @ params["w_ih"].T + params["b_ih"]
                     + h @ params["w_hh"].T + params["b_hh"])
        outs.append(h)
    hseq = jnp.concatenate(outs, axis=0)             # (T, H)
    y = hseq @ params["w_lin"].T + params["b_lin"]   # (T, 1)
    return y, h.reshape(1, 1, HIDDEN_SIZE)


def init_params(key):
    """Deterministic init matching PyTorch shapes (U(-1/sqrt(H), 1/sqrt(H)))."""
    k = 1.0 / jnp.sqrt(jnp.float32(HIDDEN_SIZE))
    keys = jax.random.split(key, 6)
    u = lambda kk, shape: jax.random.uniform(kk, shape, jnp.float32, -k, k)
    return {
        "w_ih": u(keys[0], (HIDDEN_SIZE, INPUT_SIZE)),
        "w_hh": u(keys[1], (HIDDEN_SIZE, HIDDEN_SIZE)),
        "b_ih": u(keys[2], (HIDDEN_SIZE,)),
        "b_hh": u(keys[3], (HIDDEN_SIZE,)),
        "w_lin": u(keys[4], (OUTPUT_SIZE, HIDDEN_SIZE)),
        "b_lin": u(keys[5], (OUTPUT_SIZE,)),
    }


if __name__ == "__main__":
    key = jax.random.PRNGKey(0)
    pkey, skey = jax.random.split(key)
    params = init_params(pkey)

    # Build the sin-wave input exactly like the script: (1, num_time_steps-1, 1).
    start = jax.random.randint(skey, (1,), 0, 3)[0].astype(jnp.float32)
    time_steps = jnp.linspace(start, start + 10.0, NUM_TIME_STEPS)
    data = jnp.sin(time_steps).reshape(NUM_TIME_STEPS, 1)
    x = data[:-1].reshape(1, NUM_TIME_STEPS - 1, 1).astype(jnp.float32)
    hx = jnp.zeros((1, 1, HIDDEN_SIZE), jnp.float32)

    out, hx_new = net_forward(x, hx, params)
    out = jax.block_until_ready(out)
    hx_new = jax.block_until_ready(hx_new)

    out_ref, hx_ref = net_forward_ref(x, hx, params)
    assert out.shape == (NUM_TIME_STEPS - 1, OUTPUT_SIZE)
    assert hx_new.shape == (1, 1, HIDDEN_SIZE)
    assert jnp.allclose(out, out_ref, atol=1e-5), "output mismatch vs reference"
    assert jnp.allclose(hx_new, hx_ref, atol=1e-5), "hidden-state mismatch vs reference"

    print("KERNEL_OK")
</pallas_src>

<mosaic_0001>
module attributes {stable_mosaic.version = 11 : i64} {
  func.func @rnn_linear_kernel(%arg0: memref<49x1xf32, #tpu.memory_space<vmem>>, %arg1: memref<1x10xf32, #tpu.memory_space<vmem>>, %arg2: memref<4x10xf32, #tpu.memory_space<vmem>>, %arg3: memref<10x10xf32, #tpu.memory_space<vmem>>, %arg4: memref<49x1xf32, #tpu.memory_space<vmem>>, %arg5: memref<1x10xf32, #tpu.memory_space<vmem>>, %arg6: memref<49x10xf32, #tpu.memory_space<vmem>>) attributes {dimension_semantics = [], scalar_prefetch = 0 : i64, scratch_operands = 1 : i64, tpu.core_type = #tpu.core_type<tc>} {
    %c0 = arith.constant 0 : index
    %c0_0 = arith.constant 0 : index
    %0 = vector.load %arg2[%c0, %c0_0] : memref<4x10xf32, #tpu.memory_space<vmem>>, vector<1x10xf32>
    %c1 = arith.constant 1 : index
    %c0_1 = arith.constant 0 : index
    %1 = vector.load %arg2[%c1, %c0_1] : memref<4x10xf32, #tpu.memory_space<vmem>>, vector<1x10xf32>
    %c2 = arith.constant 2 : index
    %c0_2 = arith.constant 0 : index
    %2 = vector.load %arg2[%c2, %c0_2] : memref<4x10xf32, #tpu.memory_space<vmem>>, vector<1x10xf32>
    %c3 = arith.constant 3 : index
    %c0_3 = arith.constant 0 : index
    %3 = vector.load %arg2[%c3, %c0_3] : memref<4x10xf32, #tpu.memory_space<vmem>>, vector<1x1xf32>
    %c0_4 = arith.constant 0 : index
    %c0_5 = arith.constant 0 : index
    %4 = vector.load %arg0[%c0_4, %c0_5] : memref<49x1xf32, #tpu.memory_space<vmem>>, vector<49x1xf32>
    %5 = vector.broadcast %4 : vector<49x1xf32> to vector<49x10xf32>
    %6 = vector.broadcast %0 : vector<1x10xf32> to vector<49x10xf32>
    %7 = arith.mulf %5, %6 : vector<49x10xf32>
    %8 = vector.broadcast %1 : vector<1x10xf32> to vector<49x10xf32>
    %9 = arith.addf %7, %8 : vector<49x10xf32>
    %c0_6 = arith.constant 0 : index
    %c0_7 = arith.constant 0 : index
    %10 = vector.load %arg6[%c0_6, %c0_7] : memref<49x10xf32, #tpu.memory_space<vmem>>, vector<49x10xf32>
    tpu.vector_store %arg6[%c0_6, %c0_7], %9 {strides = array<i32>} : memref<49x10xf32, #tpu.memory_space<vmem>>, vector<49x10xf32>,
    %c0_8 = arith.constant 0 : index
    %c0_9 = arith.constant 0 : index
    %11 = vector.load %arg3[%c0_8, %c0_9] : memref<10x10xf32, #tpu.memory_space<vmem>>, vector<10x10xf32>
    %c0_10 = arith.constant 0 : index
    %c0_11 = arith.constant 0 : index
    %12 = vector.load %arg1[%c0_10, %c0_11] : memref<1x10xf32, #tpu.memory_space<vmem>>, vector<1x10xf32>
    %c0_i32 = arith.constant 0 : i32
    %13 = arith.index_cast %c0_i32 : i32 to index
    %c0_12 = arith.constant 0 : index
    %14 = vector.load %arg6[%13, %c0_12] : memref<49x10xf32, #tpu.memory_space<vmem>>, vector<1x10xf32>
    %cst = arith.constant dense<0.000000e+00> : vector<1x10xf32>
    %15 = tpu.matmul %12, %11, %cst {dimension_numbers = #tpu.dot_dimension_numbers<[1], [0], [0], [1], [0, 0, 1, 1], [], []>} : vector<1x10xf32>, vector<10x10xf32>, vector<1x10xf32> -> vector<1x10xf32>
    %16 = arith.addf %14, %15 : vector<1x10xf32>
    %17 = math.tanh %16 : vector<1x10xf32>
    %18 = arith.index_cast %c0_i32 : i32 to index
    %c0_13 = arith.constant 0 : index
    %19 = vector.load %arg6[%18, %c0_13] : memref<49x10xf32, #tpu.memory_space<vmem>>, vector<1x10xf32>
    tpu.vector_store %arg6[%18, %c0_13], %17 {strides = array<i32>} : memref<49x10xf32, #tpu.memory_space<vmem>>, vector<1x10xf32>,
    %c1_i32 = arith.constant 1 : i32
    %20 = arith.index_cast %c1_i32 : i32 to index
    %c0_14 = arith.constant 0 : index
    %21 = vector.load %arg6[%20, %c0_14] : memref<49x10xf32, #tpu.memory_space<vmem>>, vector<1x10xf32>
    %cst_15 = arith.constant dense<0.000000e+00> : vector<1x10xf32>
    %22 = tpu.matmul %17, %11, %cst_15 {dimension_numbers = #tpu.dot_dimension_numbers<[1], [0], [0], [1], [0, 0, 1, 1], [], []>} : vector<1x10xf32>, vector<10x10xf32>, vector<1x10xf32> -> vector<1x10xf32>
    %23 = arith.addf %21, %22 : vector<1x10xf32>
    %24 = math.tanh %23 : vector<1x10xf32>
    %25 = arith.index_cast %c1_i32 : i32 to index
    %c0_16 = arith.constant 0 : index
    %26 = vector.load %arg6[%25, %c0_16] : memref<49x10xf32, #tpu.memory_space<vmem>>, vector<1x10xf32>
    tpu.vector_store %arg6[%25, %c0_16], %24 {strides = array<i32>} : memref<49x10xf32, #tpu.memory_space<vmem>>, vector<1x10xf32>,
    %c2_i32 = arith.constant 2 : i32
    %27 = arith.index_cast %c2_i32 : i32 to index
    %c0_17 = arith.constant 0 : index
    %28 = vector.load %arg6[%27, %c0_17] : memref<49x10xf32, #tpu.memory_space<vmem>>, vector<1x10xf32>
    %cst_18 = arith.constant dense<0.000000e+00> : vector<1x10xf32>
    %29 = tpu.matmul %24, %11, %cst_18 {dimension_numbers = #tpu.dot_dimension_numbers<[1], [0], [0], [1], [0, 0, 1, 1], [], []>} : vector<1x10xf32>, vector<10x10xf32>, vector<1x10xf32> -> vector<1x10xf32>
    %30 = arith.addf %28, %29 : vector<1x10xf32>
    %31 = math.tanh %30 : vector<1x10xf32>
    %32 = arith.index_cast %c2_i32 : i32 to index
    %c0_19 = arith.constant 0 : index
    %33 = vector.load %arg6[%32, %c0_19] : memref<49x10xf32, #tpu.memory_space<vmem>>, vector<1x10xf32>
    tpu.vector_store %arg6[%32, %c0_19], %31 {strides = array<i32>} : memref<49x10xf32, #tpu.memory_space<vmem>>, vector<1x10xf32>,
    %c3_i32 = arith.constant 3 : i32
    %34 = arith.index_cast %c3_i32 : i32 to index
    %c0_20 = arith.constant 0 : index
    %35 = vector.load %arg6[%34, %c0_20] : memref<49x10xf32, #tpu.memory_space<vmem>>, vector<1x10xf32>
    %cst_21 = arith.constant dense<0.000000e+00> : vector<1x10xf32>
    %36 = tpu.matmul %31, %11, %cst_21 {dimension_numbers = #tpu.dot_dimension_numbers<[1], [0], [0], [1], [0, 0, 1, 1], [], []>} : vector<1x10xf32>, vector<10x10xf32>, vector<1x10xf32> -> vector<1x10xf32>
    %37 = arith.addf %35, %36 : vector<1x10xf32>
    %38 = math.tanh %37 : vector<1x10xf32>
    %39 = arith.index_cast %c3_i32 : i32 to index
    %c0_22 = arith.constant 0 : index
    %40 = vector.load %arg6[%39, %c0_22] : memref<49x10xf32, #tpu.memory_space<vmem>>, vector<1x10xf32>
    tpu.vector_store %arg6[%39, %c0_22], %38 {strides = array<i32>} : memref<49x10xf32, #tpu.memory_space<vmem>>, vector<1x10xf32>,
    %c4_i32 = arith.constant 4 : i32
    %41 = arith.index_cast %c4_i32 : i32 to index
    %c0_23 = arith.constant 0 : index
    %42 = vector.load %arg6[%41, %c0_23] : memref<49x10xf32, #tpu.memory_space<vmem>>, vector<1x10xf32>
    %cst_24 = arith.constant dense<0.000000e+00> : vector<1x10xf32>
    %43 = tpu.matmul %38, %11, %cst_24 {dimension_numbers = #tpu.dot_dimension_numbers<[1], [0], [0], [1], [0, 0, 1, 1], [], []>} : vector<1x10xf32>, vector<10x10xf32>, vector<1x10xf32> -> vector<1x10xf32>
    %44 = arith.addf %42, %43 : vector<1x10xf32>
    %45 = math.tanh %44 : vector<1x10xf32>
    %46 = arith.index_cast %c4_i32 : i32 to index
    %c0_25 = arith.constant 0 : index
    %47 = vector.load %arg6[%46, %c0_25] : memref<49x10xf32, #tpu.memory_space<vmem>>, vector<1x10xf32>
    tpu.vector_store %arg6[%46, %c0_25], %45 {strides = array<i32>} : memref<49x10xf32, #tpu.memory_space<vmem>>, vector<1x10xf32>,
    %c5_i32 = arith.constant 5 : i32
    %48 = arith.index_cast %c5_i32 : i32 to index
    %c0_26 = arith.constant 0 : index
    %49 = vector.load %arg6[%48, %c0_26] : memref<49x10xf32, #tpu.memory_space<vmem>>, vector<1x10xf32>
    %cst_27 = arith.constant dense<0.000000e+00> : vector<1x10xf32>
    %50 = tpu.matmul %45, %11, %cst_27 {dimension_numbers = #tpu.dot_dimension_numbers<[1], [0], [0], [1], [0, 0, 1, 1], [], []>} : vector<1x10xf32>, vector<10x10xf32>, vector<1x10xf32> -> vector<1x10xf32>
    %51 = arith.addf %49, %50 : vector<1x10xf32>
    %52 = math.tanh %51 : vector<1x10xf32>
    %53 = arith.index_cast %c5_i32 : i32 to index
    %c0_28 = arith.constant 0 : index
    %54 = vector.load %arg6[%53, %c0_28] : memref<49x10xf32, #tpu.memory_space<vmem>>, vector<1x10xf32>
    tpu.vector_store %arg6[%53, %c0_28], %52 {strides = array<i32>} : memref<49x10xf32, #tpu.memory_space<vmem>>, vector<1x10xf32>,
    %c6_i32 = arith.constant 6 : i32
    %55 = arith.index_cast %c6_i32 : i32 to index
    %c0_29 = arith.constant 0 : index
    %56 = vector.load %arg6[%55, %c0_29] : memref<49x10xf32, #tpu.memory_space<vmem>>, vector<1x10xf32>
    %cst_30 = arith.constant dense<0.000000e+00> : vector<1x10xf32>
    %57 = tpu.matmul %52, %11, %cst_30 {dimension_numbers = #tpu.dot_dimension_numbers<[1], [0], [0], [1], [0, 0, 1, 1], [], []>} : vector<1x10xf32>, vector<10x10xf32>, vector<1x10xf32> -> vector<1x10xf32>
    %58 = arith.addf %56, %57 : vector<1x10xf32>
    %59 = math.tanh %58 : vector<1x10xf32>
    %60 = arith.index_cast %c6_i32 : i32 to index
    %c0_31 = arith.constant 0 : index
    %61 = vector.load %arg6[%60, %c0_31] : memref<49x10xf32, #tpu.memory_space<vmem>>, vector<1x10xf32>
    tpu.vector_store %arg6[%60, %c0_31], %59 {strides = array<i32>} : memref<49x10xf32, #tpu.memory_space<vmem>>, vector<1x10xf32>,
    %c7_i32 = arith.constant 7 : i32
    %62 = arith.index_cast %c7_i32 : i32 to index
    %c0_32 = arith.constant 0 : index
    %63 = vector.load %arg6[%62, %c0_32] : memref<49x10xf32, #tpu.memory_space<vmem>>, vector<1x10xf32>
    %cst_33 = arith.constant dense<0.000000e+00> : vector<1x10xf32>
    %64 = tpu.matmul %59, %11, %cst_33 {dimension_numbers = #tpu.dot_dimension_numbers<[1], [0], [0], [1], [0, 0, 1, 1], [], []>} : vector<1x10xf32>, vector<10x10xf32>, vector<1x10xf32> -> vector<1x10xf32>
    %65 = arith.addf %63, %64 : vector<1x10xf32>
    %66 = math.tanh %65 : vector<1x10xf32>
    %67 = arith.index_cast %c7_i32 : i32 to index
    %c0_34 = arith.constant 0 : index
    %68 = vector.load %arg6[%67, %c0_34] : memref<49x10xf32, #tpu.memory_space<vmem>>, vector<1x10xf32>
    tpu.vector_store %arg6[%67, %c0_34], %66 {strides = array<i32>} : memref<49x10xf32, #tpu.memory_space<vmem>>, vector<1x10xf32>,
    %c8_i32 = arith.constant 8 : i32
    %69 = arith.index_cast %c8_i32 : i32 to index
    %c0_35 = arith.constant 0 : index
    %70 = vector.load %arg6[%69, %c0_35] : memref<49x10xf32, #tpu.memory_space<vmem>>, vector<1x10xf32>
    %cst_36 = arith.constant dense<0.000000e+00> : vector<1x10xf32>
    %71 = tpu.matmul %66, %11, %cst_36 {dimension_numbers = #tpu.dot_dimension_numbers<[1], [0], [0], [1], [0, 0, 1, 1], [], []>} : vector<1x10xf32>, vector<10x10xf32>, vector<1x10xf32> -> vector<1x10xf32>
    %72 = arith.addf %70, %71 : vector<1x10xf32>
    %73 = math.tanh %72 : vector<1x10xf32>
    %74 = arith.index_cast %c8_i32 : i32 to index
    %c0_37 = arith.constant 0 : index
    %75 = vector.load %arg6[%74, %c0_37] : memref<49x10xf32, #tpu.memory_space<vmem>>, vector<1x10xf32>
    tpu.vector_store %arg6[%74, %c0_37], %73 {strides = array<i32>} : memref<49x10xf32, #tpu.memory_space<vmem>>, vector<1x10xf32>,
    %c9_i32 = arith.constant 9 : i32
    %76 = arith.index_cast %c9_i32 : i32 to index
    %c0_38 = arith.constant 0 : index
    %77 = vector.load %arg6[%76, %c0_38] : memref<49x10xf32, #tpu.memory_space<vmem>>, vector<1x10xf32>
    %cst_39 = arith.constant dense<0.000000e+00> : vector<1x10xf32>
    %78 = tpu.matmul %73, %11, %cst_39 {dimension_numbers = #tpu.dot_dimension_numbers<[1], [0], [0], [1], [0, 0, 1, 1], [], []>} : vector<1x10xf32>, vector<10x10xf32>, vector<1x10xf32> -> vector<1x10xf32>
    %79 = arith.addf %77, %78 : vector<1x10xf32>
    %80 = math.tanh %79 : vector<1x10xf32>
    %81 = arith.index_cast %c9_i32 : i32 to index
    %c0_40 = arith.constant 0 : index
    %82 = vector.load %arg6[%81, %c0_40] : memref<49x10xf32, #tpu.memory_space<vmem>>, vector<1x10xf32>
    tpu.vector_store %arg6[%81, %c0_40], %80 {strides = array<i32>} : memref<49x10xf32, #tpu.memory_space<vmem>>, vector<1x10xf32>,
    %c10_i32 = arith.constant 10 : i32
    %83 = arith.index_cast %c10_i32 : i32 to index
    %c0_41 = arith.constant 0 : index
    %84 = vector.load %arg6[%83, %c0_41] : memref<49x10xf32, #tpu.memory_space<vmem>>, vector<1x10xf32>
    %cst_42 = arith.constant dense<0.000000e+00> : vector<1x10xf32>
    %85 = tpu.matmul %80, %11, %cst_42 {dimension_numbers = #tpu.dot_dimension_numbers<[1], [0], [0], [1], [0, 0, 1, 1], [], []>} : vector<1x10xf32>, vector<10x10xf32>, vector<1x10xf32> -> vector<1x10xf32>
    %86 = arith.addf %84, %85 : vector<1x10xf32>
    %87 = math.tanh %86 : vector<1x10xf32>
    %88 = arith.index_cast %c10_i32 : i32 to index
    %c0_43 = arith.constant 0 : index
    %89 = vector.load %arg6[%88, %c0_43] : memref<49x10xf32, #tpu.memory_space<vmem>>, vector<1x10xf32>
    tpu.vector_store %arg6[%88, %c0_43], %87 {strides = array<i32>} : memref<49x10xf32, #tpu.memory_space<vmem>>, vector<1x10xf32>,
    %c11_i32 = arith.constant 11 : i32
    %90 = arith.index_cast %c11_i32 : i32 to index
    %c0_44 = arith.constant 0 : index
    %91 = vector.load %arg6[%90, %c0_44] : memref<49x10xf32, #tpu.memory_space<vmem>>, vector<1x10xf32>
    %cst_45 = arith.constant dense<0.000000e+00> : vector<1x10xf32>
    %92 = tpu.matmul %87, %11, %cst_45 {dimension_numbers = #tpu.dot_dimension_numbers<[1], [0], [0], [1], [0, 0, 1, 1], [], []>} : vector<1x10xf32>, vector<10x10xf32>, vector<1x10xf32> -> vector<1x10xf32>
    %93 = arith.addf %91, %92 : vector<1x10xf32>
    %94 = math.tanh %93 : vector<1x10xf32>
    %95 = arith.index_cast %c11_i32 : i32 to index
    %c0_46 = arith.constant 0 : index
    %96 = vector.load %arg6[%95, %c0_46] : memref<49x10xf32, #tpu.memory_space<vmem>>, vector<1x10xf32>
    tpu.vector_store %arg6[%95, %c0_46], %94 {strides = array<i32>} : memref<49x10xf32, #tpu.memory_space<vmem>>, vector<1x10xf32>,
    %c12_i32 = arith.constant 12 : i32
    %97 = arith.index_cast %c12_i32 : i32 to index
    %c0_47 = arith.constant 0 : index
    %98 = vector.load %arg6[%97, %c0_47] : memref<49x10xf32, #tpu.memory_space<vmem>>, vector<1x10xf32>
    %cst_48 = arith.constant dense<0.000000e+00> : vector<1x10xf32>
    %99 = tpu.matmul %94, %11, %cst_48 {dimension_numbers = #tpu.dot_dimension_numbers<[1], [0], [0], [1], [0, 0, 1, 1], [], []>} : vector<1x10xf32>, vector<10x10xf32>, vector<1x10xf32> -> vector<1x10xf32>
    %100 = arith.addf %98, %99 : vector<1x10xf32>
    %101 = math.tanh %100 : vector<1x10xf32>
    %102 = arith.index_cast %c12_i32 : i32 to index
    %c0_49 = arith.constant 0 : index
    %103 = vector.load %arg6[%102, %c0_49] : memref<49x10xf32, #tpu.memory_space<vmem>>, vector<1x10xf32>
    tpu.vector_store %arg6[%102, %c0_49], %101 {strides = array<i32>} : memref<49x10xf32, #tpu.memory_space<vmem>>, vector<1x10xf32>,
    %c13_i32 = arith.constant 13 : i32
    %104 = arith.index_cast %c13_i32 : i32 to index
    %c0_50 = arith.constant 0 : index
    %105 = vector.load %arg6[%104, %c0_50] : memref<49x10xf32, #tpu.memory_space<vmem>>, vector<1x10xf32>
    %cst_51 = arith.constant dense<0.000000e+00> : vector<1x10xf32>
    %106 = tpu.matmul %101, %11, %cst_51 {dimension_numbers = #tpu.dot_dimension_numbers<[1], [0], [0], [1], [0, 0, 1, 1], [], []>} : vector<1x10xf32>, vector<10x10xf32>, vector<1x10xf32> -> vector<1x10xf32>
    %107 = arith.addf %105, %106 : vector<1x10xf32>
    %108 = math.tanh %107 : vector<1x10xf32>
    %109 = arith.index_cast %c13_i32 : i32 to index
    %c0_52 = arith.constant 0 : index
    %110 = vector.load %arg6[%109, %c0_52] : memref<49x10xf32, #tpu.memory_space<vmem>>, vector<1x10xf32>
    tpu.vector_store %arg6[%109, %c0_52], %108 {strides = array<i32>} : memref<49x10xf32, #tpu.memory_space<vmem>>, vector<1x10xf32>,
    %c14_i32 = arith.constant 14 : i32
    %111 = arith.index_cast %c14_i32 : i32 to index
    %c0_53 = arith.constant 0 : index
    %112 = vector.load %arg6[%111, %c0_53] : memref<49x10xf32, #tpu.memory_space<vmem>>, vector<1x10xf32>
    %cst_54 = arith.constant dense<0.000000e+00> : vector<1x10xf32>
    %113 = tpu.matmul %108, %11, %cst_54 {dimension_numbers = #tpu.dot_dimension_numbers<[1], [0], [0], [1], [0, 0, 1, 1], [], []>} : vector<1x10xf32>, vector<10x10xf32>, vector<1x10xf32> -> vector<1x10xf32>
    %114 = arith.addf %112, %113 : vector<1x10xf32>
    %115 = math.tanh %114 : vector<1x10xf32>
    %116 = arith.index_cast %c14_i32 : i32 to index
    %c0_55 = arith.constant 0 : index
    %117 = vector.load %arg6[%116, %c0_55] : memref<49x10xf32, #tpu.memory_space<vmem>>, vector<1x10xf32>
    tpu.vector_store %arg6[%116, %c0_55], %115 {strides = array<i32>} : memref<49x10xf32, #tpu.memory_space<vmem>>, vector<1x10xf32>,
    %c15_i32 = arith.constant 15 : i32
    %118 = arith.index_cast %c15_i32 : i32 to index
    %c0_56 = arith.constant 0 : index
    %119 = vector.load %arg6[%118, %c0_56] : memref<49x10xf32, #tpu.memory_space<vmem>>, vector<1x10xf32>
    %cst_57 = arith.constant dense<0.000000e+00> : vector<1x10xf32>
    %120 = tpu.matmul %115, %11, %cst_57 {dimension_numbers = #tpu.dot_dimension_numbers<[1], [0], [0], [1], [0, 0, 1, 1], [], []>} : vector<1x10xf32>, vector<10x10xf32>, vector<1x10xf32> -> vector<1x10xf32>
    %121 = arith.addf %119, %120 : vector<1x10xf32>
    %122 = math.tanh %121 : vector<1x10xf32>
    %123 = arith.index_cast %c15_i32 : i32 to index
    %c0_58 = arith.constant 0 : index
    %124 = vector.load %arg6[%123, %c0_58] : memref<49x10xf32, #tpu.memory_space<vmem>>, vector<1x10xf32>
    tpu.vector_store %arg6[%123, %c0_58], %122 {strides = array<i32>} : memref<49x10xf32, #tpu.memory_space<vmem>>, vector<1x10xf32>,
    %c16_i32 = arith.constant 16 : i32
    %125 = arith.index_cast %c16_i32 : i32 to index
    %c0_59 = arith.constant 0 : index
    %126 = vector.load %arg6[%125, %c0_59] : memref<49x10xf32, #tpu.memory_space<vmem>>, vector<1x10xf32>
    %cst_60 = arith.constant dense<0.000000e+00> : vector<1x10xf32>
    %127 = tpu.matmul %122, %11, %cst_60 {dimension_numbers = #tpu.dot_dimension_numbers<[1], [0], [0], [1], [0, 0, 1, 1], [], []>} : vector<1x10xf32>, vector<10x10xf32>, vector<1x10xf32> -> vector<1x10xf32>
    %128 = arith.addf %126, %127 : vector<1x10xf32>
    %129 = math.tanh %128 : vector<1x10xf32>
    %130 = arith.index_cast %c16_i32 : i32 to index
    %c0_61 = arith.constant 0 : index
    %131 = vector.load %arg6[%130, %c0_61] : memref<49x10xf32, #tpu.memory_space<vmem>>, vector<1x10xf32>
    tpu.vector_store %arg6[%130, %c0_61], %129 {strides = array<i32>} : memref<49x10xf32, #tpu.memory_space<vmem>>, vector<1x10xf32>,
    %c17_i32 = arith.constant 17 : i32
    %132 = arith.index_cast %c17_i32 : i32 to index
    %c0_62 = arith.constant 0 : index
    %133 = vector.load %arg6[%132, %c0_62] : memref<49x10xf32, #tpu.memory_space<vmem>>, vector<1x10xf32>
    %cst_63 = arith.constant dense<0.000000e+00> : vector<1x10xf32>
    %134 = tpu.matmul %129, %11, %cst_63 {dimension_numbers = #tpu.dot_dimension_numbers<[1], [0], [0], [1], [0, 0, 1, 1], [], []>} : vector<1x10xf32>, vector<10x10xf32>, vector<1x10xf32> -> vector<1x10xf32>
    %135 = arith.addf %133, %134 : vector<1x10xf32>
    %136 = math.tanh %135 : vector<1x10xf32>
    %137 = arith.index_cast %c17_i32 : i32 to index
    %c0_64 = arith.constant 0 : index
    %138 = vector.load %arg6[%137, %c0_64] : memref<49x10xf32, #tpu.memory_space<vmem>>, vector<1x10xf32>
    tpu.vector_store %arg6[%137, %c0_64], %136 {strides = array<i32>} : memref<49x10xf32, #tpu.memory_space<vmem>>, vector<1x10xf32>,
    %c18_i32 = arith.constant 18 : i32
    %139 = arith.index_cast %c18_i32 : i32 to index
    %c0_65 = arith.constant 0 : index
    %140 = vector.load %arg6[%139, %c0_65] : memref<49x10xf32, #tpu.memory_space<vmem>>, vector<1x10xf32>
    %cst_66 = arith.constant dense<0.000000e+00> : vector<1x10xf32>
    %141 = tpu.matmul %136, %11, %cst_66 {dimension_numbers = #tpu.dot_dimension_numbers<[1], [0], [0], [1], [0, 0, 1, 1], [], []>} : vector<1x10xf32>, vector<10x10xf32>, vector<1x10xf32> -> vector<1x10xf32>
    %142 = arith.addf %140, %141 : vector<1x10xf32>
    %143 = math.tanh %142 : vector<1x10xf32>
    %144 = arith.index_cast %c18_i32 : i32 to index
    %c0_67 = arith.constant 0 : index
    %145 = vector.load %arg6[%144, %c0_67] : memref<49x10xf32, #tpu.memory_space<vmem>>, vector<1x10xf32>
    tpu.vector_store %arg6[%144, %c0_67], %143 {strides = array<i32>} : memref<49x10xf32, #tpu.memory_space<vmem>>, vector<1x10xf32>,
    %c19_i32 = arith.constant 19 : i32
    %146 = arith.index_cast %c19_i32 : i32 to index
    %c0_68 = arith.constant 0 : index
    %147 = vector.load %arg6[%146, %c0_68] : memref<49x10xf32, #tpu.memory_space<vmem>>, vector<1x10xf32>
    %cst_69 = arith.constant dense<0.000000e+00> : vector<1x10xf32>
    %148 = tpu.matmul %143, %11, %cst_69 {dimension_numbers = #tpu.dot_dimension_numbers<[1], [0], [0], [1], [0, 0, 1, 1], [], []>} : vector<1x10xf32>, vector<10x10xf32>, vector<1x10xf32> -> vector<1x10xf32>
    %149 = arith.addf %147, %148 : vector<1x10xf32>
    %150 = math.tanh %149 : vector<1x10xf32>
    %151 = arith.index_cast %c19_i32 : i32 to index
    %c0_70 = arith.constant 0 : index
    %152 = vector.load %arg6[%151, %c0_70] : memref<49x10xf32, #tpu.memory_space<vmem>>, vector<1x10xf32>
    tpu.vector_store %arg6[%151, %c0_70], %150 {strides = array<i32>} : memref<49x10xf32, #tpu.memory_space<vmem>>, vector<1x10xf32>,
    %c20_i32 = arith.constant 20 : i32
    %153 = arith.index_cast %c20_i32 : i32 to index
    %c0_71 = arith.constant 0 : index
    %154 = vector.load %arg6[%153, %c0_71] : memref<49x10xf32, #tpu.memory_space<vmem>>, vector<1x10xf32>
    %cst_72 = arith.constant dense<0.000000e+00> : vector<1x10xf32>
    %155 = tpu.matmul %150, %11, %cst_72 {dimension_numbers = #tpu.dot_dimension_numbers<[1], [0], [0], [1], [0, 0, 1, 1], [], []>} : vector<1x10xf32>, vector<10x10xf32>, vector<1x10xf32> -> vector<1x10xf32>
    %156 = arith.addf %154, %155 : vector<1x10xf32>
    %157 = math.tanh %156 : vector<1x10xf32>
    %158 = arith.index_cast %c20_i32 : i32 to index
    %c0_73 = arith.constant 0 : index
    %159 = vector.load %arg6[%158, %c0_73] : memref<49x10xf32, #tpu.memory_space<vmem>>, vector<1x10xf32>
    tpu.vector_store %arg6[%158, %c0_73], %157 {strides = array<i32>} : memref<49x10xf32, #tpu.memory_space<vmem>>, vector<1x10xf32>,
    %c21_i32 = arith.constant 21 : i32
    %160 = arith.index_cast %c21_i32 : i32 to index
    %c0_74 = arith.constant 0 : index
    %161 = vector.load %arg6[%160, %c0_74] : memref<49x10xf32, #tpu.memory_space<vmem>>, vector<1x10xf32>
    %cst_75 = arith.constant dense<0.000000e+00> : vector<1x10xf32>
    %162 = tpu.matmul %157, %11, %cst_75 {dimension_numbers = #tpu.dot_dimension_numbers<[1], [0], [0], [1], [0, 0, 1, 1], [], []>} : vector<1x10xf32>, vector<10x10xf32>, vector<1x10xf32> -> vector<1x10xf32>
    %163 = arith.addf %161, %162 : vector<1x10xf32>
    %164 = math.tanh %163 : vector<1x10xf32>
    %165 = arith.index_cast %c21_i32 : i32 to index
    %c0_76 = arith.constant 0 : index
    %166 = vector.load %arg6[%165, %c0_76] : memref<49x10xf32, #tpu.memory_space<vmem>>, vector<1x10xf32>
    tpu.vector_store %arg6[%165, %c0_76], %164 {strides = array<i32>} : memref<49x10xf32, #tpu.memory_space<vmem>>, vector<1x10xf32>,
    %c22_i32 = arith.constant 22 : i32
    %167 = arith.index_cast %c22_i32 : i32 to index
    %c0_77 = arith.constant 0 : index
    %168 = vector.load %arg6[%167, %c0_77] : memref<49x10xf32, #tpu.memory_space<vmem>>, vector<1x10xf32>
    %cst_78 = arith.constant dense<0.000000e+00> : vector<1x10xf32>
    %169 = tpu.matmul %164, %11, %cst_78 {dimension_numbers = #tpu.dot_dimension_numbers<[1], [0], [0], [1], [0, 0, 1, 1], [], []>} : vector<1x10xf32>, vector<10x10xf32>, vector<1x10xf32> -> vector<1x10xf32>
    %170 = arith.addf %168, %169 : vector<1x10xf32>
    %171 = math.tanh %170 : vector<1x10xf32>
    %172 = arith.index_cast %c22_i32 : i32 to index
    %c0_79 = arith.constant 0 : index
    %173 = vector.load %arg6[%172, %c0_79] : memref<49x10xf32, #tpu.memory_space<vmem>>, vector<1x10xf32>
    tpu.vector_store %arg6[%172, %c0_79], %171 {strides = array<i32>} : memref<49x10xf32, #tpu.memory_space<vmem>>, vector<1x10xf32>,
    %c23_i32 = arith.constant 23 : i32
    %174 = arith.index_cast %c23_i32 : i32 to index
    %c0_80 = arith.constant 0 : index
    %175 = vector.load %arg6[%174, %c0_80] : memref<49x10xf32, #tpu.memory_space<vmem>>, vector<1x10xf32>
    %cst_81 = arith.constant dense<0.000000e+00> : vector<1x10xf32>
    %176 = tpu.matmul %171, %11, %cst_81 {dimension_numbers = #tpu.dot_dimension_numbers<[1], [0], [0], [1], [0, 0, 1, 1], [], []>} : vector<1x10xf32>, vector<10x10xf32>, vector<1x10xf32> -> vector<1x10xf32>
    %177 = arith.addf %175, %176 : vector<1x10xf32>
    %178 = math.tanh %177 : vector<1x10xf32>
    %179 = arith.index_cast %c23_i32 : i32 to index
    %c0_82 = arith.constant 0 : index
    %180 = vector.load %arg6[%179, %c0_82] : memref<49x10xf32, #tpu.memory_space<vmem>>, vector<1x10xf32>
    tpu.vector_store %arg6[%179, %c0_82], %178 {strides = array<i32>} : memref<49x10xf32, #tpu.memory_space<vmem>>, vector<1x10xf32>,
    %c24_i32 = arith.constant 24 : i32
    %181 = arith.index_cast %c24_i32 : i32 to index
    %c0_83 = arith.constant 0 : index
    %182 = vector.load %arg6[%181, %c0_83] : memref<49x10xf32, #tpu.memory_space<vmem>>, vector<1x10xf32>
    %cst_84 = arith.constant dense<0.000000e+00> : vector<1x10xf32>
    %183 = tpu.matmul %178, %11, %cst_84 {dimension_numbers = #tpu.dot_dimension_numbers<[1], [0], [0], [1], [0, 0, 1, 1], [], []>} : vector<1x10xf32>, vector<10x10xf32>, vector<1x10xf32> -> vector<1x10xf32>
    %184 = arith.addf %182, %183 : vector<1x10xf32>
    %185 = math.tanh %184 : vector<1x10xf32>
    %186 = arith.index_cast %c24_i32 : i32 to index
    %c0_85 = arith.constant 0 : index
    %187 = vector.load %arg6[%186, %c0_85] : memref<49x10xf32, #tpu.memory_space<vmem>>, vector<1x10xf32>
    tpu.vector_store %arg6[%186, %c0_85], %185 {strides = array<i32>} : memref<49x10xf32, #tpu.memory_space<vmem>>, vector<1x10xf32>,
    %c25_i32 = arith.constant 25 : i32
    %188 = arith.index_cast %c25_i32 : i32 to index
    %c0_86 = arith.constant 0 : index
    %189 = vector.load %arg6[%188, %c0_86] : memref<49x10xf32, #tpu.memory_space<vmem>>, vector<1x10xf32>
    %cst_87 = arith.constant dense<0.000000e+00> : vector<1x10xf32>
    %190 = tpu.matmul %185, %11, %cst_87 {dimension_numbers = #tpu.dot_dimension_numbers<[1], [0], [0], [1], [0, 0, 1, 1], [], []>} : vector<1x10xf32>, vector<10x10xf32>, vector<1x10xf32> -> vector<1x10xf32>
    %191 = arith.addf %189, %190 : vector<1x10xf32>
    %192 = math.tanh %191 : vector<1x10xf32>
    %193 = arith.index_cast %c25_i32 : i32 to index
    %c0_88 = arith.constant 0 : index
    %194 = vector.load %arg6[%193, %c0_88] : memref<49x10xf32, #tpu.memory_space<vmem>>, vector<1x10xf32>
    tpu.vector_store %arg6[%193, %c0_88], %192 {strides = array<i32>} : memref<49x10xf32, #tpu.memory_space<vmem>>, vector<1x10xf32>,
    %c26_i32 = arith.constant 26 : i32
    %195 = arith.index_cast %c26_i32 : i32 to index
    %c0_89 = arith.constant 0 : index
    %196 = vector.load %arg6[%195, %c0_89] : memref<49x10xf32, #tpu.memory_space<vmem>>, vector<1x10xf32>
    %cst_90 = arith.constant dense<0.000000e+00> : vector<1x10xf32>
    %197 = tpu.matmul %192, %11, %cst_90 {dimension_numbers = #tpu.dot_dimension_numbers<[1], [0], [0], [1], [0, 0, 1, 1], [], []>} : vector<1x10xf32>, vector<10x10xf32>, vector<1x10xf32> -> vector<1x10xf32>
    %198 = arith.addf %196, %197 : vector<1x10xf32>
    %199 = math.tanh %198 : vector<1x10xf32>
    %200 = arith.index_cast %c26_i32 : i32 to index
    %c0_91 = arith.constant 0 : index
    %201 = vector.load %arg6[%200, %c0_91] : memref<49x10xf32, #tpu.memory_space<vmem>>, vector<1x10xf32>
    tpu.vector_store %arg6[%200, %c0_91], %199 {strides = array<i32>} : memref<49x10xf32, #tpu.memory_space<vmem>>, vector<1x10xf32>,
    %c27_i32 = arith.constant 27 : i32
    %202 = arith.index_cast %c27_i32 : i32 to index
    %c0_92 = arith.constant 0 : index
    %203 = vector.load %arg6[%202, %c0_92] : memref<49x10xf32, #tpu.memory_space<vmem>>, vector<1x10xf32>
    %cst_93 = arith.constant dense<0.000000e+00> : vector<1x10xf32>
    %204 = tpu.matmul %199, %11, %cst_93 {dimension_numbers = #tpu.dot_dimension_numbers<[1], [0], [0], [1], [0, 0, 1, 1], [], []>} : vector<1x10xf32>, vector<10x10xf32>, vector<1x10xf32> -> vector<1x10xf32>
    %205 = arith.addf %203, %204 : vector<1x10xf32>
    %206 = math.tanh %205 : vector<1x10xf32>
    %207 = arith.index_cast %c27_i32 : i32 to index
    %c0_94 = arith.constant 0 : index
    %208 = vector.load %arg6[%207, %c0_94] : memref<49x10xf32, #tpu.memory_space<vmem>>, vector<1x10xf32>
    tpu.vector_store %arg6[%207, %c0_94], %206 {strides = array<i32>} : memref<49x10xf32, #tpu.memory_space<vmem>>, vector<1x10xf32>,
    %c28_i32 = arith.constant 28 : i32
    %209 = arith.index_cast %c28_i32 : i32 to index
    %c0_95 = arith.constant 0 : index
    %210 = vector.load %arg6[%209, %c0_95] : memref<49x10xf32, #tpu.memory_space<vmem>>, vector<1x10xf32>
    %cst_96 = arith.constant dense<0.000000e+00> : vector<1x10xf32>
    %211 = tpu.matmul %206, %11, %cst_96 {dimension_numbers = #tpu.dot_dimension_numbers<[1], [0], [0], [1], [0, 0, 1, 1], [], []>} : vector<1x10xf32>, vector<10x10xf32>, vector<1x10xf32> -> vector<1x10xf32>
    %212 = arith.addf %210, %211 : vector<1x10xf32>
    %213 = math.tanh %212 : vector<1x10xf32>
    %214 = arith.index_cast %c28_i32 : i32 to index
    %c0_97 = arith.constant 0 : index
    %215 = vector.load %arg6[%214, %c0_97] : memref<49x10xf32, #tpu.memory_space<vmem>>, vector<1x10xf32>
    tpu.vector_store %arg6[%214, %c0_97], %213 {strides = array<i32>} : memref<49x10xf32, #tpu.memory_space<vmem>>, vector<1x10xf32>,
    %c29_i32 = arith.constant 29 : i32
    %216 = arith.index_cast %c29_i32 : i32 to index
    %c0_98 = arith.constant 0 : index
    %217 = vector.load %arg6[%216, %c0_98] : memref<49x10xf32, #tpu.memory_space<vmem>>, vector<1x10xf32>
    %cst_99 = arith.constant dense<0.000000e+00> : vector<1x10xf32>
    %218 = tpu.matmul %213, %11, %cst_99 {dimension_numbers = #tpu.dot_dimension_numbers<[1], [0], [0], [1], [0, 0, 1, 1], [], []>} : vector<1x10xf32>, vector<10x10xf32>, vector<1x10xf32> -> vector<1x10xf32>
    %219 = arith.addf %217, %218 : vector<1x10xf32>
    %220 = math.tanh %219 : vector<1x10xf32>
    %221 = arith.index_cast %c29_i32 : i32 to index
    %c0_100 = arith.constant 0 : index
    %222 = vector.load %arg6[%221, %c0_100] : memref<49x10xf32, #tpu.memory_space<vmem>>, vector<1x10xf32>
    tpu.vector_store %arg6[%221, %c0_100], %220 {strides = array<i32>} : memref<49x10xf32, #tpu.memory_space<vmem>>, vector<1x10xf32>,
    %c30_i32 = arith.constant 30 : i32
    %223 = arith.index_cast %c30_i32 : i32 to index
    %c0_101 = arith.constant 0 : index
    %224 = vector.load %arg6[%223, %c0_101] : memref<49x10xf32, #tpu.memory_space<vmem>>, vector<1x10xf32>
    %cst_102 = arith.constant dense<0.000000e+00> : vector<1x10xf32>
    %225 = tpu.matmul %220, %11, %cst_102 {dimension_numbers = #tpu.dot_dimension_numbers<[1], [0], [0], [1], [0, 0, 1, 1], [], []>} : vector<1x10xf32>, vector<10x10xf32>, vector<1x10xf32> -> vector<1x10xf32>
    %226 = arith.addf %224, %225 : vector<1x10xf32>
    %227 = math.tanh %226 : vector<1x10xf32>
    %228 = arith.index_cast %c30_i32 : i32 to index
    %c0_103 = arith.constant 0 : index
    %229 = vector.load %arg6[%228, %c0_103] : memref<49x10xf32, #tpu.memory_space<vmem>>, vector<1x10xf32>
    tpu.vector_store %arg6[%228, %c0_103], %227 {strides = array<i32>} : memref<49x10xf32, #tpu.memory_space<vmem>>, vector<1x10xf32>,
    %c31_i32 = arith.constant 31 : i32
    %230 = arith.index_cast %c31_i32 : i32 to index
    %c0_104 = arith.constant 0 : index
    %231 = vector.load %arg6[%230, %c0_104] : memref<49x10xf32, #tpu.memory_space<vmem>>, vector<1x10xf32>
    %cst_105 = arith.constant dense<0.000000e+00> : vector<1x10xf32>
    %232 = tpu.matmul %227, %11, %cst_105 {dimension_numbers = #tpu.dot_dimension_numbers<[1], [0], [0], [1], [0, 0, 1, 1], [], []>} : vector<1x10xf32>, vector<10x10xf32>, vector<1x10xf32> -> vector<1x10xf32>
    %233 = arith.addf %231, %232 : vector<1x10xf32>
    %234 = math.tanh %233 : vector<1x10xf32>
    %235 = arith.index_cast %c31_i32 : i32 to index
    %c0_106 = arith.constant 0 : index
    %236 = vector.load %arg6[%235, %c0_106] : memref<49x10xf32, #tpu.memory_space<vmem>>, vector<1x10xf32>
    tpu.vector_store %arg6[%235, %c0_106], %234 {strides = array<i32>} : memref<49x10xf32, #tpu.memory_space<vmem>>, vector<1x10xf32>,
    %c32_i32 = arith.constant 32 : i32
    %237 = arith.index_cast %c32_i32 : i32 to index
    %c0_107 = arith.constant 0 : index
    %238 = vector.load %arg6[%237, %c0_107] : memref<49x10xf32, #tpu.memory_space<vmem>>, vector<1x10xf32>
    %cst_108 = arith.constant dense<0.000000e+00> : vector<1x10xf32>
    %239 = tpu.matmul %234, %11, %cst_108 {dimension_numbers = #tpu.dot_dimension_numbers<[1], [0], [0], [1], [0, 0, 1, 1], [], []>} : vector<1x10xf32>, vector<10x10xf32>, vector<1x10xf32> -> vector<1x10xf32>
    %240 = arith.addf %238, %239 : vector<1x10xf32>
    %241 = math.tanh %240 : vector<1x10xf32>
    %242 = arith.index_cast %c32_i32 : i32 to index
    %c0_109 = arith.constant 0 : index
    %243 = vector.load %arg6[%242, %c0_109] : memref<49x10xf32, #tpu.memory_space<vmem>>, vector<1x10xf32>
    tpu.vector_store %arg6[%242, %c0_109], %241 {strides = array<i32>} : memref<49x10xf32, #tpu.memory_space<vmem>>, vector<1x10xf32>,
    %c33_i32 = arith.constant 33 : i32
    %244 = arith.index_cast %c33_i32 : i32 to index
    %c0_110 = arith.constant 0 : index
    %245 = vector.load %arg6[%244, %c0_110] : memref<49x10xf32, #tpu.memory_space<vmem>>, vector<1x10xf32>
    %cst_111 = arith.constant dense<0.000000e+00> : vector<1x10xf32>
    %246 = tpu.matmul %241, %11, %cst_111 {dimension_numbers = #tpu.dot_dimension_numbers<[1], [0], [0], [1], [0, 0, 1, 1], [], []>} : vector<1x10xf32>, vector<10x10xf32>, vector<1x10xf32> -> vector<1x10xf32>
    %247 = arith.addf %245, %246 : vector<1x10xf32>
    %248 = math.tanh %247 : vector<1x10xf32>
    %249 = arith.index_cast %c33_i32 : i32 to index
    %c0_112 = arith.constant 0 : index
    %250 = vector.load %arg6[%249, %c0_112] : memref<49x10xf32, #tpu.memory_space<vmem>>, vector<1x10xf32>
    tpu.vector_store %arg6[%249, %c0_112], %248 {strides = array<i32>} : memref<49x10xf32, #tpu.memory_space<vmem>>, vector<1x10xf32>,
    %c34_i32 = arith.constant 34 : i32
    %251 = arith.index_cast %c34_i32 : i32 to index
    %c0_113 = arith.constant 0 : index
    %252 = vector.load %arg6[%251, %c0_113] : memref<49x10xf32, #tpu.memory_space<vmem>>, vector<1x10xf32>
    %cst_114 = arith.constant dense<0.000000e+00> : vector<1x10xf32>
    %253 = tpu.matmul %248, %11, %cst_114 {dimension_numbers = #tpu.dot_dimension_numbers<[1], [0], [0], [1], [0, 0, 1, 1], [], []>} : vector<1x10xf32>, vector<10x10xf32>, vector<1x10xf32> -> vector<1x10xf32>
    %254 = arith.addf %252, %253 : vector<1x10xf32>
    %255 = math.tanh %254 : vector<1x10xf32>
    %256 = arith.index_cast %c34_i32 : i32 to index
    %c0_115 = arith.constant 0 : index
    %257 = vector.load %arg6[%256, %c0_115] : memref<49x10xf32, #tpu.memory_space<vmem>>, vector<1x10xf32>
    tpu.vector_store %arg6[%256, %c0_115], %255 {strides = array<i32>} : memref<49x10xf32, #tpu.memory_space<vmem>>, vector<1x10xf32>,
    %c35_i32 = arith.constant 35 : i32
    %258 = arith.index_cast %c35_i32 : i32 to index
    %c0_116 = arith.constant 0 : index
    %259 = vector.load %arg6[%258, %c0_116] : memref<49x10xf32, #tpu.memory_space<vmem>>, vector<1x10xf32>
    %cst_117 = arith.constant dense<0.000000e+00> : vector<1x10xf32>
    %260 = tpu.matmul %255, %11, %cst_117 {dimension_numbers = #tpu.dot_dimension_numbers<[1], [0], [0], [1], [0, 0, 1, 1], [], []>} : vector<1x10xf32>, vector<10x10xf32>, vector<1x10xf32> -> vector<1x10xf32>
    %261 = arith.addf %259, %260 : vector<1x10xf32>
    %262 = math.tanh %261 : vector<1x10xf32>
    %263 = arith.index_cast %c35_i32 : i32 to index
    %c0_118 = arith.constant 0 : index
    %264 = vector.load %arg6[%263, %c0_118] : memref<49x10xf32, #tpu.memory_space<vmem>>, vector<1x10xf32>
    tpu.vector_store %arg6[%263, %c0_118], %262 {strides = array<i32>} : memref<49x10xf32, #tpu.memory_space<vmem>>, vector<1x10xf32>,
    %c36_i32 = arith.constant 36 : i32
    %265 = arith.index_cast %c36_i32 : i32 to index
    %c0_119 = arith.constant 0 : index
    %266 = vector.load %arg6[%265, %c0_119] : memref<49x10xf32, #tpu.memory_space<vmem>>, vector<1x10xf32>
    %cst_120 = arith.constant dense<0.000000e+00> : vector<1x10xf32>
    %267 = tpu.matmul %262, %11, %cst_120 {dimension_numbers = #tpu.dot_dimension_numbers<[1], [0], [0], [1], [0, 0, 1, 1], [], []>} : vector<1x10xf32>, vector<10x10xf32>, vector<1x10xf32> -> vector<1x10xf32>
    %268 = arith.addf %266, %267 : vector<1x10xf32>
    %269 = math.tanh %268 : vector<1x10xf32>
    %270 = arith.index_cast %c36_i32 : i32 to index
    %c0_121 = arith.constant 0 : index
    %271 = vector.load %arg6[%270, %c0_121] : memref<49x10xf32, #tpu.memory_space<vmem>>, vector<1x10xf32>
    tpu.vector_store %arg6[%270, %c0_121], %269 {strides = array<i32>} : memref<49x10xf32, #tpu.memory_space<vmem>>, vector<1x10xf32>,
    %c37_i32 = arith.constant 37 : i32
    %272 = arith.index_cast %c37_i32 : i32 to index
    %c0_122 = arith.constant 0 : index
    %273 = vector.load %arg6[%272, %c0_122] : memref<49x10xf32, #tpu.memory_space<vmem>>, vector<1x10xf32>
    %cst_123 = arith.constant dense<0.000000e+00> : vector<1x10xf32>
    %274 = tpu.matmul %269, %11, %cst_123 {dimension_numbers = #tpu.dot_dimension_numbers<[1], [0], [0], [1], [0, 0, 1, 1], [], []>} : vector<1x10xf32>, vector<10x10xf32>, vector<1x10xf32> -> vector<1x10xf32>
    %275 = arith.addf %273, %274 : vector<1x10xf32>
    %276 = math.tanh %275 : vector<1x10xf32>
    %277 = arith.index_cast %c37_i32 : i32 to index
    %c0_124 = arith.constant 0 : index
    %278 = vector.load %arg6[%277, %c0_124] : memref<49x10xf32, #tpu.memory_space<vmem>>, vector<1x10xf32>
    tpu.vector_store %arg6[%277, %c0_124], %276 {strides = array<i32>} : memref<49x10xf32, #tpu.memory_space<vmem>>, vector<1x10xf32>,
    %c38_i32 = arith.constant 38 : i32
    %279 = arith.index_cast %c38_i32 : i32 to index
    %c0_125 = arith.constant 0 : index
    %280 = vector.load %arg6[%279, %c0_125] : memref<49x10xf32, #tpu.memory_space<vmem>>, vector<1x10xf32>
    %cst_126 = arith.constant dense<0.000000e+00> : vector<1x10xf32>
    %281 = tpu.matmul %276, %11, %cst_126 {dimension_numbers = #tpu.dot_dimension_numbers<[1], [0], [0], [1], [0, 0, 1, 1], [], []>} : vector<1x10xf32>, vector<10x10xf32>, vector<1x10xf32> -> vector<1x10xf32>
    %282 = arith.addf %280, %281 : vector<1x10xf32>
    %283 = math.tanh %282 : vector<1x10xf32>
    %284 = arith.index_cast %c38_i32 : i32 to index
    %c0_127 = arith.constant 0 : index
    %285 = vector.load %arg6[%284, %c0_127] : memref<49x10xf32, #tpu.memory_space<vmem>>, vector<1x10xf32>
    tpu.vector_store %arg6[%284, %c0_127], %283 {strides = array<i32>} : memref<49x10xf32, #tpu.memory_space<vmem>>, vector<1x10xf32>,
    %c39_i32 = arith.constant 39 : i32
    %286 = arith.index_cast %c39_i32 : i32 to index
    %c0_128 = arith.constant 0 : index
    %287 = vector.load %arg6[%286, %c0_128] : memref<49x10xf32, #tpu.memory_space<vmem>>, vector<1x10xf32>
    %cst_129 = arith.constant dense<0.000000e+00> : vector<1x10xf32>
    %288 = tpu.matmul %283, %11, %cst_129 {dimension_numbers = #tpu.dot_dimension_numbers<[1], [0], [0], [1], [0, 0, 1, 1], [], []>} : vector<1x10xf32>, vector<10x10xf32>, vector<1x10xf32> -> vector<1x10xf32>
    %289 = arith.addf %287, %288 : vector<1x10xf32>
    %290 = math.tanh %289 : vector<1x10xf32>
    %291 = arith.index_cast %c39_i32 : i32 to index
    %c0_130 = arith.constant 0 : index
    %292 = vector.load %arg6[%291, %c0_130] : memref<49x10xf32, #tpu.memory_space<vmem>>, vector<1x10xf32>
    tpu.vector_store %arg6[%291, %c0_130], %290 {strides = array<i32>} : memref<49x10xf32, #tpu.memory_space<vmem>>, vector<1x10xf32>,
    %c40_i32 = arith.constant 40 : i32
    %293 = arith.index_cast %c40_i32 : i32 to index
    %c0_131 = arith.constant 0 : index
    %294 = vector.load %arg6[%293, %c0_131] : memref<49x10xf32, #tpu.memory_space<vmem>>, vector<1x10xf32>
    %cst_132 = arith.constant dense<0.000000e+00> : vector<1x10xf32>
    %295 = tpu.matmul %290, %11, %cst_132 {dimension_numbers = #tpu.dot_dimension_numbers<[1], [0], [0], [1], [0, 0, 1, 1], [], []>} : vector<1x10xf32>, vector<10x10xf32>, vector<1x10xf32> -> vector<1x10xf32>
    %296 = arith.addf %294, %295 : vector<1x10xf32>
    %297 = math.tanh %296 : vector<1x10xf32>
    %298 = arith.index_cast %c40_i32 : i32 to index
    %c0_133 = arith.constant 0 : index
    %299 = vector.load %arg6[%298, %c0_133] : memref<49x10xf32, #tpu.memory_space<vmem>>, vector<1x10xf32>
    tpu.vector_store %arg6[%298, %c0_133], %297 {strides = array<i32>} : memref<49x10xf32, #tpu.memory_space<vmem>>, vector<1x10xf32>,
    %c41_i32 = arith.constant 41 : i32
    %300 = arith.index_cast %c41_i32 : i32 to index
    %c0_134 = arith.constant 0 : index
    %301 = vector.load %arg6[%300, %c0_134] : memref<49x10xf32, #tpu.memory_space<vmem>>, vector<1x10xf32>
    %cst_135 = arith.constant dense<0.000000e+00> : vector<1x10xf32>
    %302 = tpu.matmul %297, %11, %cst_135 {dimension_numbers = #tpu.dot_dimension_numbers<[1], [0], [0], [1], [0, 0, 1, 1], [], []>} : vector<1x10xf32>, vector<10x10xf32>, vector<1x10xf32> -> vector<1x10xf32>
    %303 = arith.addf %301, %302 : vector<1x10xf32>
    %304 = math.tanh %303 : vector<1x10xf32>
    %305 = arith.index_cast %c41_i32 : i32 to index
    %c0_136 = arith.constant 0 : index
    %306 = vector.load %arg6[%305, %c0_136] : memref<49x10xf32, #tpu.memory_space<vmem>>, vector<1x10xf32>
    tpu.vector_store %arg6[%305, %c0_136], %304 {strides = array<i32>} : memref<49x10xf32, #tpu.memory_space<vmem>>, vector<1x10xf32>,
    %c42_i32 = arith.constant 42 : i32
    %307 = arith.index_cast %c42_i32 : i32 to index
    %c0_137 = arith.constant 0 : index
    %308 = vector.load %arg6[%307, %c0_137] : memref<49x10xf32, #tpu.memory_space<vmem>>, vector<1x10xf32>
    %cst_138 = arith.constant dense<0.000000e+00> : vector<1x10xf32>
    %309 = tpu.matmul %304, %11, %cst_138 {dimension_numbers = #tpu.dot_dimension_numbers<[1], [0], [0], [1], [0, 0, 1, 1], [], []>} : vector<1x10xf32>, vector<10x10xf32>, vector<1x10xf32> -> vector<1x10xf32>
    %310 = arith.addf %308, %309 : vector<1x10xf32>
    %311 = math.tanh %310 : vector<1x10xf32>
    %312 = arith.index_cast %c42_i32 : i32 to index
    %c0_139 = arith.constant 0 : index
    %313 = vector.load %arg6[%312, %c0_139] : memref<49x10xf32, #tpu.memory_space<vmem>>, vector<1x10xf32>
    tpu.vector_store %arg6[%312, %c0_139], %311 {strides = array<i32>} : memref<49x10xf32, #tpu.memory_space<vmem>>, vector<1x10xf32>,
    %c43_i32 = arith.constant 43 : i32
    %314 = arith.index_cast %c43_i32 : i32 to index
    %c0_140 = arith.constant 0 : index
    %315 = vector.load %arg6[%314, %c0_140] : memref<49x10xf32, #tpu.memory_space<vmem>>, vector<1x10xf32>
    %cst_141 = arith.constant dense<0.000000e+00> : vector<1x10xf32>
    %316 = tpu.matmul %311, %11, %cst_141 {dimension_numbers = #tpu.dot_dimension_numbers<[1], [0], [0], [1], [0, 0, 1, 1], [], []>} : vector<1x10xf32>, vector<10x10xf32>, vector<1x10xf32> -> vector<1x10xf32>
    %317 = arith.addf %315, %316 : vector<1x10xf32>
    %318 = math.tanh %317 : vector<1x10xf32>
    %319 = arith.index_cast %c43_i32 : i32 to index
    %c0_142 = arith.constant 0 : index
    %320 = vector.load %arg6[%319, %c0_142] : memref<49x10xf32, #tpu.memory_space<vmem>>, vector<1x10xf32>
    tpu.vector_store %arg6[%319, %c0_142], %318 {strides = array<i32>} : memref<49x10xf32, #tpu.memory_space<vmem>>, vector<1x10xf32>,
    %c44_i32 = arith.constant 44 : i32
    %321 = arith.index_cast %c44_i32 : i32 to index
    %c0_143 = arith.constant 0 : index
    %322 = vector.load %arg6[%321, %c0_143] : memref<49x10xf32, #tpu.memory_space<vmem>>, vector<1x10xf32>
    %cst_144 = arith.constant dense<0.000000e+00> : vector<1x10xf32>
    %323 = tpu.matmul %318, %11, %cst_144 {dimension_numbers = #tpu.dot_dimension_numbers<[1], [0], [0], [1], [0, 0, 1, 1], [], []>} : vector<1x10xf32>, vector<10x10xf32>, vector<1x10xf32> -> vector<1x10xf32>
    %324 = arith.addf %322, %323 : vector<1x10xf32>
    %325 = math.tanh %324 : vector<1x10xf32>
    %326 = arith.index_cast %c44_i32 : i32 to index
    %c0_145 = arith.constant 0 : index
    %327 = vector.load %arg6[%326, %c0_145] : memref<49x10xf32, #tpu.memory_space<vmem>>, vector<1x10xf32>
    tpu.vector_store %arg6[%326, %c0_145], %325 {strides = array<i32>} : memref<49x10xf32, #tpu.memory_space<vmem>>, vector<1x10xf32>,
    %c45_i32 = arith.constant 45 : i32
    %328 = arith.index_cast %c45_i32 : i32 to index
    %c0_146 = arith.constant 0 : index
    %329 = vector.load %arg6[%328, %c0_146] : memref<49x10xf32, #tpu.memory_space<vmem>>, vector<1x10xf32>
    %cst_147 = arith.constant dense<0.000000e+00> : vector<1x10xf32>
    %330 = tpu.matmul %325, %11, %cst_147 {dimension_numbers = #tpu.dot_dimension_numbers<[1], [0], [0], [1], [0, 0, 1, 1], [], []>} : vector<1x10xf32>, vector<10x10xf32>, vector<1x10xf32> -> vector<1x10xf32>
    %331 = arith.addf %329, %330 : vector<1x10xf32>
    %332 = math.tanh %331 : vector<1x10xf32>
    %333 = arith.index_cast %c45_i32 : i32 to index
    %c0_148 = arith.constant 0 : index
    %334 = vector.load %arg6[%333, %c0_148] : memref<49x10xf32, #tpu.memory_space<vmem>>, vector<1x10xf32>
    tpu.vector_store %arg6[%333, %c0_148], %332 {strides = array<i32>} : memref<49x10xf32, #tpu.memory_space<vmem>>, vector<1x10xf32>,
    %c46_i32 = arith.constant 46 : i32
    %335 = arith.index_cast %c46_i32 : i32 to index
    %c0_149 = arith.constant 0 : index
    %336 = vector.load %arg6[%335, %c0_149] : memref<49x10xf32, #tpu.memory_space<vmem>>, vector<1x10xf32>
    %cst_150 = arith.constant dense<0.000000e+00> : vector<1x10xf32>
    %337 = tpu.matmul %332, %11, %cst_150 {dimension_numbers = #tpu.dot_dimension_numbers<[1], [0], [0], [1], [0, 0, 1, 1], [], []>} : vector<1x10xf32>, vector<10x10xf32>, vector<1x10xf32> -> vector<1x10xf32>
    %338 = arith.addf %336, %337 : vector<1x10xf32>
    %339 = math.tanh %338 : vector<1x10xf32>
    %340 = arith.index_cast %c46_i32 : i32 to index
    %c0_151 = arith.constant 0 : index
    %341 = vector.load %arg6[%340, %c0_151] : memref<49x10xf32, #tpu.memory_space<vmem>>, vector<1x10xf32>
    tpu.vector_store %arg6[%340, %c0_151], %339 {strides = array<i32>} : memref<49x10xf32, #tpu.memory_space<vmem>>, vector<1x10xf32>,
    %c47_i32 = arith.constant 47 : i32
    %342 = arith.index_cast %c47_i32 : i32 to index
    %c0_152 = arith.constant 0 : index
    %343 = vector.load %arg6[%342, %c0_152] : memref<49x10xf32, #tpu.memory_space<vmem>>, vector<1x10xf32>
    %cst_153 = arith.constant dense<0.000000e+00> : vector<1x10xf32>
    %344 = tpu.matmul %339, %11, %cst_153 {dimension_numbers = #tpu.dot_dimension_numbers<[1], [0], [0], [1], [0, 0, 1, 1], [], []>} : vector<1x10xf32>, vector<10x10xf32>, vector<1x10xf32> -> vector<1x10xf32>
    %345 = arith.addf %343, %344 : vector<1x10xf32>
    %346 = math.tanh %345 : vector<1x10xf32>
    %347 = arith.index_cast %c47_i32 : i32 to index
    %c0_154 = arith.constant 0 : index
    %348 = vector.load %arg6[%347, %c0_154] : memref<49x10xf32, #tpu.memory_space<vmem>>, vector<1x10xf32>
    tpu.vector_store %arg6[%347, %c0_154], %346 {strides = array<i32>} : memref<49x10xf32, #tpu.memory_space<vmem>>, vector<1x10xf32>,
    %c48_i32 = arith.constant 48 : i32
    %349 = arith.index_cast %c48_i32 : i32 to index
    %c0_155 = arith.constant 0 : index
    %350 = vector.load %arg6[%349, %c0_155] : memref<49x10xf32, #tpu.memory_space<vmem>>, vector<1x10xf32>
    %cst_156 = arith.constant dense<0.000000e+00> : vector<1x10xf32>
    %351 = tpu.matmul %346, %11, %cst_156 {dimension_numbers = #tpu.dot_dimension_numbers<[1], [0], [0], [1], [0, 0, 1, 1], [], []>} : vector<1x10xf32>, vector<10x10xf32>, vector<1x10xf32> -> vector<1x10xf32>
    %352 = arith.addf %350, %351 : vector<1x10xf32>
    %353 = math.tanh %352 : vector<1x10xf32>
    %354 = arith.index_cast %c48_i32 : i32 to index
    %c0_157 = arith.constant 0 : index
    %355 = vector.load %arg6[%354, %c0_157] : memref<49x10xf32, #tpu.memory_space<vmem>>, vector<1x10xf32>
    tpu.vector_store %arg6[%354, %c0_157], %353 {strides = array<i32>} : memref<49x10xf32, #tpu.memory_space<vmem>>, vector<1x10xf32>,
    %c49_i32 = arith.constant 49 : i32
    %c0_158 = arith.constant 0 : index
    %c0_159 = arith.constant 0 : index
    %356 = vector.load %arg5[%c0_158, %c0_159] : memref<1x10xf32, #tpu.memory_space<vmem>>, vector<1x10xf32>
    tpu.vector_store %arg5[%c0_158, %c0_159], %353 {strides = array<i32>} : memref<1x10xf32, #tpu.memory_space<vmem>>, vector<1x10xf32>,
    %c0_160 = arith.constant 0 : index
    %c0_161 = arith.constant 0 : index
    %357 = vector.load %arg6[%c0_160, %c0_161] : memref<49x10xf32, #tpu.memory_space<vmem>>, vector<49x10xf32>
    %358 = vector.broadcast %2 : vector<1x10xf32> to vector<49x10xf32>
    %359 = arith.mulf %357, %358 : vector<49x10xf32>
    %cst_162 = arith.constant dense<0.000000e+00> : vector<49xf32>
    %360 = vector.multi_reduction <add>, %359, %cst_162 [1] : vector<49x10xf32> to vector<49xf32>
    %361 = vector.shape_cast %360 : vector<49xf32> to vector<49x1xf32>
    %362 = vector.broadcast %3 : vector<1x1xf32> to vector<49x1xf32>
    %363 = arith.addf %361, %362 : vector<49x1xf32>
    %c0_163 = arith.constant 0 : index
    %c0_164 = arith.constant 0 : index
    %364 = vector.load %arg4[%c0_163, %c0_164] : memref<49x1xf32, #tpu.memory_space<vmem>>, vector<49x1xf32>
    tpu.vector_store %arg4[%c0_163, %c0_164], %363 {strides = array<i32>} : memref<49x1xf32, #tpu.memory_space<vmem>>, vector<49x1xf32>,
    return
  }
}

</mosaic_0001>

<llo_original>
// kernel: _net_forward.1
$region0: #{_net_forward.1}
  #allocation0 [shape = 'u32[]', space=smem, size = 0x4, offset = 0x4, fixed_abs, tag = 'smem constant byte address 0x4 - core index']
  #allocation1 [shape = 'u32[144,128]{1,0:T(1,128)}', space=vmem, size = 0x12000, scoped, tag = 'internal scratch']
  #allocation2 [shape = 'f32[49,10]{1,0:T(8,128)}', space=vmem, size = 0x7000, scoped, tag = 'scratch operand']
  %s0 = inlined_call_operand.vmem [shape: f32[49,1], index: 0, kind: input, shape index: {}]
  %s1 = inlined_call_operand.vmem [shape: f32[1,10], index: 1, kind: input, shape index: {}, may-alias: {1,5}]
  %s2 = inlined_call_operand.vmem [shape: f32[4,10], index: 2, kind: input, shape index: {}]
  %s3 = inlined_call_operand.vmem [shape: f32[10,10], index: 3, kind: input, shape index: {}]
  %s4 = inlined_call_operand.vmem [shape: f32[49,1], index: 4, kind: output, shape index: {0}]
  %s5 = inlined_call_operand.vmem [shape: f32[1,10], index: 5, kind: output, shape index: {1}, may-alias: {1,5}]
  %6 = xla_tuple %s4, %s5
  %s7 = sld [smem:[#allocation0]]
  $region34: #{_net_forward.1} parent=0
    _
  %s9 = ssub.s32 1, %s7
  %s10 = scalar_select 0, %s9, %s7
  // Predicated region
  $region2: #{_net_forward.1} parent=0 // pred_check
    _
  $region3: #{_net_forward.1} parent=0 // pred_check_branch
    %12 = sbr.rel (0) target = $region5
  $region4: #{_net_forward.1} parent=0 // pred_region
    _
  $region5: #{_net_forward.1} parent=0 // pred_fallthru
    _
  // Predicated region
  $region6: #{_net_forward.1} parent=0 // pred_check
    _
  $region7: #{_net_forward.1} parent=0 // pred_check_branch
    %14 = sbr.rel (0) target = $region9
  $region8: #{_net_forward.1} parent=0 // pred_region
    _
  $region9: #{_net_forward.1} parent=0 // pred_fallthru
    _
  // Predicated region
  $region10: #{_net_forward.1} parent=0 // pred_check
    _
  $region11: #{_net_forward.1} parent=0 // pred_check_branch
    %16 = sbr.rel (0) target = $region13
  $region12: #{_net_forward.1} parent=0 // pred_region
    _
  $region13: #{_net_forward.1} parent=0 // pred_fallthru
    _
  // Predicated region
  $region14: #{_net_forward.1} parent=0 // pred_check
    _
  $region15: #{_net_forward.1} parent=0 // pred_check_branch
    %18 = sbr.rel (0) target = $region17
  $region16: #{_net_forward.1} parent=0 // pred_region
    _
  $region17: #{_net_forward.1} parent=0 // pred_fallthru
    _
  %v19 = vld [vmem:[%s2] sm:$0x1]
  %v20 = vld [vmem:[%s2 + $0x1] sm:$0x1]
  %v21 = vld [vmem:[%s2 + $0x2] sm:$0x1]
  %v22 = vld [vmem:[%s2 + $0x3] sm:$0x1]
  %v23 = vld [vmem:[%s0] sm:$0xff]
  %v24 = vld [vmem:[%s0 + $0x8] sm:$0xff]
  %v25 = vld [vmem:[%s0 + $0x10] sm:$0xff]
  %v26 = vld [vmem:[%s0 + $0x18] sm:$0xff]
  %v27 = vld [vmem:[%s0 + $0x20] sm:$0xff]
  %v28 = vld [vmem:[%s0 + $0x28] sm:$0xff]
  %v29 = vld [vmem:[%s0 + $0x30] sm:$0x1]
  %31 = vset.pattern.permute.xlu0 0
  %32 = vperm.xlu0 %31, %v23
  %v33 = vpop.permute.xlu0 %32
  %36 = vset.pattern.permute.xlu0 0
  %37 = vperm.xlu0 %36, %v24
  %v38 = vpop.permute.xlu0 %37
  %41 = vset.pattern.permute.xlu0 0
  %42 = vperm.xlu0 %41, %v25
  %v43 = vpop.permute.xlu0 %42
  %46 = vset.pattern.permute.xlu0 0
  %47 = vperm.xlu0 %46, %v26
  %v48 = vpop.permute.xlu0 %47
  %51 = vset.pattern.permute.xlu0 0
  %52 = vperm.xlu0 %51, %v27
  %v53 = vpop.permute.xlu0 %52
  %56 = vset.pattern.permute.xlu0 0
  %57 = vperm.xlu0 %56, %v28
  %v58 = vpop.permute.xlu0 %57
  %61 = vset.pattern.permute.xlu0 0
  %62 = vperm.xlu0 %61, %v29
  %v63 = vpop.permute.xlu0 %62
  %v65 = vlaneseq
  %v66 = vshrl.u32 %v65, 7
  %v67 = vsub.s32 0, %v66
  %v68 = vrot.slane %v19, %v67
  %v69 = vmul.f32 %v33, %v68
  %v70 = vmul.f32 %v38, %v68
  %v71 = vmul.f32 %v43, %v68
  %v72 = vmul.f32 %v48, %v68
  %v73 = vmul.f32 %v53, %v68
  %v74 = vmul.f32 %v58, %v68
  %v75 = vmul.f32 %v63, %v68
  %v76 = vlaneseq
  %v77 = vshrl.u32 %v76, 7
  %v78 = vsub.s32 0, %v77
  %v79 = vrot.slane %v20, %v78
  %v80 = vadd.f32 %v69, %v79
  %v81 = vadd.f32 %v70, %v79
  %v82 = vadd.f32 %v71, %v79
  %v83 = vadd.f32 %v72, %v79
  %v84 = vadd.f32 %v73, %v79
  %v85 = vadd.f32 %v74, %v79
  %v86 = vadd.f32 %v75, %v79
  %vm87 = vcmask 80896
  %88 = vst.msk [vmem:[#allocation2] sm:$0xff] %vm87, %v80
  %89 = vst.msk [vmem:[#allocation2 + $0x8] sm:$0xff] %vm87, %v81
  %90 = vst.msk [vmem:[#allocation2 + $0x10] sm:$0xff] %vm87, %v82
  %91 = vst.msk [vmem:[#allocation2 + $0x18] sm:$0xff] %vm87, %v83
  %92 = vst.msk [vmem:[#allocation2 + $0x20] sm:$0xff] %vm87, %v84
  %93 = vst.msk [vmem:[#allocation2 + $0x28] sm:$0xff] %vm87, %v85
  %vm94 = vcmask 73728
  %95 = vst.msk [vmem:[#allocation2 + $0x30] sm:$0x1] %vm94, %v86
  %v96 = vld [vmem:[%s3] sm:$0xff]
  %v97 = vld [vmem:[%s3 + $0x8] sm:$0x3]
  %v98 = vld [vmem:[%s1] sm:$0x1]
  %v99 = vld [vmem:[#allocation2] sm:$0x1]
  %v101 = vsel %vm87, %v98, 0
  %vm103 = vcmask 1041408
  %v105 = vsel %vm103, %v97, 0
  %107 = vmatprep.subr.mxu0 0.0
  %108 = vmatpush1.msra.mxu0 %v96
  %109 = vmatprep.subr.mxu0 0.0
  %110 = vmatpush1.msra.mxu0 %v105
  %111 = vmatprep.subr.mxu0 0.0
  %112 = vmatpush1.msra.mxu0 0.0
  %113 = vmatprep.subr.mxu0 0.0
  %114 = vmatpush1.msra.mxu0 0.0
  %115 = vmatprep.subr.mxu0 0.0
  %116 = vmatpush1.msra.mxu0 0.0
  %117 = vmatprep.subr.mxu0 0.0
  %118 = vmatpush1.msra.mxu0 0.0
  %119 = vmatprep.subr.mxu0 0.0
  %120 = vmatpush1.msra.mxu0 0.0
  %121 = vmatprep.subr.mxu0 0.0
  %122 = vmatpush1.msra.mxu0 0.0
  %123 = vmatprep.subr.mxu0 0.0
  %124 = vmatpush1.msra.mxu0 0.0
  %125 = vmatprep.subr.mxu0 0.0
  %126 = vmatpush1.msra.mxu0 0.0
  %127 = vmatprep.subr.mxu0 0.0
  %128 = vmatpush1.msra.mxu0 0.0
  %129 = vmatprep.subr.mxu0 0.0
  %130 = vmatpush1.msra.mxu0 0.0
  %131 = vmatprep.subr.mxu0 0.0
  %132 = vmatpush1.msra.mxu0 0.0
  %133 = vmatprep.subr.mxu0 0.0
  %134 = vmatpush1.msra.mxu0 0.0
  %135 = vmatprep.subr.mxu0 0.0
  %136 = vmatpush1.msra.mxu0 0.0
  %137 = vmatprep.subr.mxu0 0.0
  %138 = vmatpush1.msra.mxu0 0.0
  %139 = vmatprep.subr.mxu0 0.0
  %140 = vmatpush1.msra.mxu0 0.0
  %141 = vmatprep.subr.mxu0 0.0
  %142 = vmatpush1.msra.mxu0 0.0
  %143 = vmatprep.subr.mxu0 0.0
  %144 = vmatpush1.msra.mxu0 0.0
  %145 = vmatprep.subr.mxu0 0.0
  %146 = vmatpush1.msra.mxu0 0.0
  %147 = vmatprep.subr.mxu0 0.0
  %148 = vmatpush1.msra.mxu0 0.0
  %149 = vmatprep.subr.mxu0 0.0
  %150 = vmatpush1.msra.mxu0 0.0
  %151 = vmatprep.subr.mxu0 0.0
  %152 = vmatpush1.msra.mxu0 0.0
  %153 = vmatprep.subr.mxu0 0.0
  %154 = vmatpush1.msra.mxu0 0.0
  %155 = vmatprep.subr.mxu0 0.0
  %156 = vmatpush1.msra.mxu0 0.0
  %157 = vmatprep.subr.mxu0 0.0
  %158 = vmatpush1.msra.mxu0 0.0
  %159 = vmatprep.subr.mxu0 0.0
  %160 = vmatpush1.msra.mxu0 0.0
  %161 = vmatprep.subr.mxu0 0.0
  %162 = vmatpush1.msra.mxu0 0.0
  %163 = vmatprep.subr.mxu0 0.0
  %164 = vmatpush1.msra.mxu0 0.0
  %165 = vmatprep.subr.mxu0 0.0
  %166 = vmatpush1.msra.mxu0 0.0
  %167 = vmatprep.subr.mxu0 0.0
  %168 = vmatpush1.msra.mxu0 0.0
  %169 = vmatprep.subr.mxu0 0.0
  %170 = vmatpush1.msra.mxu0 0.0
  %171 = vmatprep.mubr.f32.mxu0 0.0
  %172 = vmatmul.mubr.f32.gmra.mrb[0].mxu0 %v101
  %v173 = vpop.f32.mrb[0].mxu0
  %v174 = vadd.f32 0.0, %v173
  %v175 = vpop.f32.mrb[0].mxu0
  %176 = vdwg.mxu0
  %v177 = vadd.f32 %v99, %v174
  %v178 = vtanh.pop %v177
  %179 = vst.msk [vmem:[#allocation2] sm:$0x1] %vm94, %v178
  %v180 = vld [vmem:[#allocation2 + $0x1] sm:$0x1]
  %v182 = vsel %vm87, %v178, 0
  %184 = vmatprep.subr.mxu0 0.0
  %185 = vmatpush1.msra.mxu0 %v96
  %186 = vmatprep.subr.mxu0 0.0
  %187 = vmatpush1.msra.mxu0 %v105
  %188 = vmatprep.subr.mxu0 0.0
  %189 = vmatpush1.msra.mxu0 0.0
  %190 = vmatprep.subr.mxu0 0.0
  %191 = vmatpush1.msra.mxu0 0.0
  %192 = vmatprep.subr.mxu0 0.0
  %193 = vmatpush1.msra.mxu0 0.0
  %194 = vmatprep.subr.mxu0 0.0
  %195 = vmatpush1.msra.mxu0 0.0
  %196 = vmatprep.subr.mxu0 0.0
  %197 = vmatpush1.msra.mxu0 0.0
  %198 = vmatprep.subr.mxu0 0.0
  %199 = vmatpush1.msra.mxu0 0.0
  %200 = vmatprep.subr.mxu0 0.0
  %201 = vmatpush1.msra.mxu0 0.0
  %202 = vmatprep.subr.mxu0 0.0
  %203 = vmatpush1.msra.mxu0 0.0
  %204 = vmatprep.subr.mxu0 0.0
  %205 = vmatpush1.msra.mxu0 0.0
  %206 = vmatprep.subr.mxu0 0.0
  %207 = vmatpush1.msra.mxu0 0.0
  %208 = vmatprep.subr.mxu0 0.0
  %209 = vmatpush1.msra.mxu0 0.0
  %210 = vmatprep.subr.mxu0 0.0
  %211 = vmatpush1.msra.mxu0 0.0
  %212 = vmatprep.subr.mxu0 0.0
  %213 = vmatpush1.msra.mxu0 0.0
  %214 = vmatprep.subr.mxu0 0.0
  %215 = vmatpush1.msra.mxu0 0.0
  %216 = vmatprep.subr.mxu0 0.0
  %217 = vmatpush1.msra.mxu0 0.0
  %218 = vmatprep.subr.mxu0 0.0
  %219 = vmatpush1.msra.mxu0 0.0
  %220 = vmatprep.subr.mxu0 0.0
  %221 = vmatpush1.msra.mxu0 0.0
  %222 = vmatprep.subr.mxu0 0.0
  %223 = vmatpush1.msra.mxu0 0.0
  %224 = vmatprep.subr.mxu0 0.0
  %225 = vmatpush1.msra.mxu0 0.0
  %226 = vmatprep.subr.mxu0 0.0
  %227 = vmatpush1.msra.mxu0 0.0
  %228 = vmatprep.subr.mxu0 0.0
  %229 = vmatpush1.msra.mxu0 0.0
  %230 = vmatprep.subr.mxu0 0.0
  %231 = vmatpush1.msra.mxu0 0.0
  %232 = vmatprep.subr.mxu0 0.0
  %233 = vmatpush1.msra.mxu0 0.0
  %234 = vmatprep.subr.mxu0 0.0
  %235 = vmatpush1.msra.mxu0 0.0
  %236 = vmatprep.subr.mxu0 0.0
  %237 = vmatpush1.msra.mxu0 0.0
  %238 = vmatprep.subr.mxu0 0.0
  %239 = vmatpush1.msra.mxu0 0.0
  %240 = vmatprep.subr.mxu0 0.0
  %241 = vmatpush1.msra.mxu0 0.0
  %242 = vmatprep.subr.mxu0 0.0
  %243 = vmatpush1.msra.mxu0 0.0
  %244 = vmatprep.subr.mxu0 0.0
  %245 = vmatpush1.msra.mxu0 0.0
  %246 = vmatprep.subr.mxu0 0.0
  %247 = vmatpush1.msra.mxu0 0.0
  %248 = vmatprep.mubr.f32.mxu0 0.0
  %249 = vmatmul.mubr.f32.gmra.mrb[0].mxu0 %v182
  %v250 = vpop.f32.mrb[0].mxu0
  %v251 = vadd.f32 0.0, %v250
  %v252 = vpop.f32.mrb[0].mxu0
  %253 = vdwg.mxu0
  %v254 = vadd.f32 %v180, %v251
  %v255 = vtanh.pop %v254
  %256 = vst.msk [vmem:[#allocation2 + $0x1] sm:$0x1] %vm94, %v255
  %v257 = vld [vmem:[#allocation2 + $0x2] sm:$0x1]
  %v259 = vsel %vm87, %v255, 0
  %261 = vmatprep.subr.mxu0 0.0
  %262 = vmatpush1.msra.mxu0 %v96
  %263 = vmatprep.subr.mxu0 0.0
  %264 = vmatpush1.msra.mxu0 %v105
  %265 = vmatprep.subr.mxu0 0.0
  %266 = vmatpush1.msra.mxu0 0.0
  %267 = vmatprep.subr.mxu0 0.0
  %268 = vmatpush1.msra.mxu0 0.0
  %269 = vmatprep.subr.mxu0 0.0
  %270 = vmatpush1.msra.mxu0 0.0
  %271 = vmatprep.subr.mxu0 0.0
  %272 = vmatpush1.msra.mxu0 0.0
  %273 = vmatprep.subr.mxu0 0.0
  %274 = vmatpush1.msra.mxu0 0.0
  %275 = vmatprep.subr.mxu0 0.0
  %276 = vmatpush1.msra.mxu0 0.0
  %277 = vmatprep.subr.mxu0 0.0
  %278 = vmatpush1.msra.mxu0 0.0
  %279 = vmatprep.subr.mxu0 0.0
  %280 = vmatpush1.msra.mxu0 0.0
  %281 = vmatprep.subr.mxu0 0.0
  %282 = vmatpush1.msra.mxu0 0.0
  %283 = vmatprep.subr.mxu0 0.0
  %284 = vmatpush1.msra.mxu0 0.0
  %285 = vmatprep.subr.mxu0 0.0
  %286 = vmatpush1.msra.mxu0 0.0
  %287 = vmatprep.subr.mxu0 0.0
  %288 = vmatpush1.msra.mxu0 0.0
  %289 = vmatprep.subr.mxu0 0.0
  %290 = vmatpush1.msra.mxu0 0.0
  %291 = vmatprep.subr.mxu0 0.0
  %292 = vmatpush1.msra.mxu0 0.0
  %293 = vmatprep.subr.mxu0 0.0
  %294 = vmatpush1.msra.mxu0 0.0
  %295 = vmatprep.subr.mxu0 0.0
  %296 = vmatpush1.msra.mxu0 0.0
  %297 = vmatprep.subr.mxu0 0.0
  %298 = vmatpush1.msra.mxu0 0.0
  %299 = vmatprep.subr.mxu0 0.0
  %300 = vmatpush1.msra.mxu0 0.0
  %301 = vmatprep.subr.mxu0 0.0
  %302 = vmatpush1.msra.mxu0 0.0
  %303 = vmatprep.subr.mxu0 0.0
  %304 = vmatpush1.msra.mxu0 0.0
  %305 = vmatprep.subr.mxu0 0.0
  %306 = vmatpush1.msra.mxu0 0.0
  %307 = vmatprep.subr.mxu0 0.0
  %308 = vmatpush1.msra.mxu0 0.0
  %309 = vmatprep.subr.mxu0 0.0
  %310 = vmatpush1.msra.mxu0 0.0
  %311 = vmatprep.subr.mxu0 0.0
  %312 = vmatpush1.msra.mxu0 0.0
  %313 = vmatprep.subr.mxu0 0.0
  %314 = vmatpush1.msra.mxu0 0.0
  %315 = vmatprep.subr.mxu0 0.0
  %316 = vmatpush1.msra.mxu0 0.0
  %317 = vmatprep.subr.mxu0 0.0
  %318 = vmatpush1.msra.mxu0 0.0
  %319 = vmatprep.subr.mxu0 0.0
  %320 = vmatpush1.msra.mxu0 0.0
  %321 = vmatprep.subr.mxu0 0.0
  %322 = vmatpush1.msra.mxu0 0.0
  %323 = vmatprep.subr.mxu0 0.0
  %324 = vmatpush1.msra.mxu0 0.0
  %325 = vmatprep.mubr.f32.mxu0 0.0
  %326 = vmatmul.mubr.f32.gmra.mrb[0].mxu0 %v259
  %v327 = vpop.f32.mrb[0].mxu0
  %v328 = vadd.f32 0.0, %v327
  %v329 = vpop.f32.mrb[0].mxu0
  %330 = vdwg.mxu0
  %v331 = vadd.f32 %v257, %v328
  %v332 = vtanh.pop %v331
  %333 = vst.msk [vmem:[#allocation2 + $0x2] sm:$0x1] %vm94, %v332
  %v334 = vld [vmem:[#allocation2 + $0x3] sm:$0x1]
  %v336 = vsel %vm87, %v332, 0
  %338 = vmatprep.subr.mxu0 0.0
  %339 = vmatpush1.msra.mxu0 %v96
  %340 = vmatprep.subr.mxu0 0.0
  %341 = vmatpush1.msra.mxu0 %v105
  %342 = vmatprep.subr.mxu0 0.0
  %343 = vmatpush1.msra.mxu0 0.0
  %344 = vmatprep.subr.mxu0 0.0
  %345 = vmatpush1.msra.mxu0 0.0
  %346 = vmatprep.subr.mxu0 0.0
  %347 = vmatpush1.msra.mxu0 0.0
  %348 = vmatprep.subr.mxu0 0.0
  %349 = vmatpush1.msra.mxu0 0.0
  %350 = vmatprep.subr.mxu0 0.0
  %351 = vmatpush1.msra.mxu0 0.0
  %352 = vmatprep.subr.mxu0 0.0
  %353 = vmatpush1.msra.mxu0 0.0
  %354 = vmatprep.subr.mxu0 0.0
  %355 = vmatpush1.msra.mxu0 0.0
  %356 = vmatprep.subr.mxu0 0.0
  %357 = vmatpush1.msra.mxu0 0.0
  %358 = vmatprep.subr.mxu0 0.0
  %359 = vmatpush1.msra.mxu0 0.0
  %360 = vmatprep.subr.mxu0 0.0
  %361 = vmatpush1.msra.mxu0 0.0
  %362 = vmatprep.subr.mxu0 0.0
  %363 = vmatpush1.msra.mxu0 0.0
  %364 = vmatprep.subr.mxu0 0.0
  %365 = vmatpush1.msra.mxu0 0.0
  %366 = vmatprep.subr.mxu0 0.0
  %367 = vmatpush1.msra.mxu0 0.0
  %368 = vmatprep.subr.mxu0 0.0
  %369 = vmatpush1.msra.mxu0 0.0
  %370 = vmatprep.subr.mxu0 0.0
  %371 = vmatpush1.msra.mxu0 0.0
  %372 = vmatprep.subr.mxu0 0.0
  %373 = vmatpush1.msra.mxu0 0.0
  %374 = vmatprep.subr.mxu0 0.0
  %375 = vmatpush1.msra.mxu0 0.0
  %376 = vmatprep.subr.mxu0 0.0
  %377 = vmatpush1.msra.mxu0 0.0
  %378 = vmatprep.subr.mxu0 0.0
  %379 = vmatpush1.msra.mxu0 0.0
  %380 = vmatprep.subr.mxu0 0.0
  %381 = vmatpush1.msra.mxu0 0.0
  %382 = vmatprep.subr.mxu0 0.0
  %383 = vmatpush1.msra.mxu0 0.0
  %384 = vmatprep.subr.mxu0 0.0
  %385 = vmatpush1.msra.mxu0 0.0
  %386 = vmatprep.subr.mxu0 0.0
  %387 = vmatpush1.msra.mxu0 0.0
  %388 = vmatprep.subr.mxu0 0.0
  %389 = vmatpush1.msra.mxu0 0.0
  %390 = vmatprep.subr.mxu0 0.0
  %391 = vmatpush1.msra.mxu0 0.0
  %392 = vmatprep.subr.mxu0 0.0
  %393 = vmatpush1.msra.mxu0 0.0
  %394 = vmatprep.subr.mxu0 0.0
  %395 = vmatpush1.msra.mxu0 0.0
  %396 = vmatprep.subr.mxu0 0.0
  %397 = vmatpush1.msra.mxu0 0.0
  %398 = vmatprep.subr.mxu0 0.0
  %399 = vmatpush1.msra.mxu0 0.0
  %400 = vmatprep.subr.mxu0 0.0
  %401 = vmatpush1.msra.mxu0 0.0
  %402 = vmatprep.mubr.f32.mxu0 0.0
  %403 = vmatmul.mubr.f32.gmra.mrb[0].mxu0 %v336
  %v404 = vpop.f32.mrb[0].mxu0
  %v405 = vadd.f32 0.0, %v404
  %v406 = vpop.f32.mrb[0].mxu0
  %407 = vdwg.mxu0
  %v408 = vadd.f32 %v334, %v405
  %v409 = vtanh.pop %v408
  %410 = vst.msk [vmem:[#allocation2 + $0x3] sm:$0x1] %vm94, %v409
  %v411 = vld [vmem:[#allocation2 + $0x4] sm:$0x1]
  %v413 = vsel %vm87, %v409, 0
  %415 = vmatprep.subr.mxu0 0.0
  %416 = vmatpush1.msra.mxu0 %v96
  %417 = vmatprep.subr.mxu0 0.0
  %418 = vmatpush1.msra.mxu0 %v105
  %419 = vmatprep.subr.mxu0 0.0
  %420 = vmatpush1.msra.mxu0 0.0
  %421 = vmatprep.subr.mxu0 0.0
  %422 = vmatpush1.msra.mxu0 0.0
  %423 = vmatprep.subr.mxu0 0.0
  %424 = vmatpush1.msra.mxu0 0.0
  %425 = vmatprep.subr.mxu0 0.0
  %426 = vmatpush1.msra.mxu0 0.0
  %427 = vmatprep.subr.mxu0 0.0
  %428 = vmatpush1.msra.mxu0 0.0
  %429 = vmatprep.subr.mxu0 0.0
  %430 = vmatpush1.msra.mxu0 0.0
  %431 = vmatprep.subr.mxu0 0.0
  %432 = vmatpush1.msra.mxu0 0.0
  %433 = vmatprep.subr.mxu0 0.0
  %434 = vmatpush1.msra.mxu0 0.0
  %435 = vmatprep.subr.mxu0 0.0
  %436 = vmatpush1.msra.mxu0 0.0
  %437 = vmatprep.subr.mxu0 0.0
  %438 = vmatpush1.msra.mxu0 0.0
  %439 = vmatprep.subr.mxu0 0.0
  %440 = vmatpush1.msra.mxu0 0.0
  %441 = vmatprep.subr.mxu0 0.0
  %442 = vmatpush1.msra.mxu0 0.0
  %443 = vmatprep.subr.mxu0 0.0
  %444 = vmatpush1.msra.mxu0 0.0
  %445 = vmatprep.subr.mxu0 0.0
  %446 = vmatpush1.msra.mxu0 0.0
  %447 = vmatprep.subr.mxu0 0.0
  %448 = vmatpush1.msra.mxu0 0.0
  %449 = vmatprep.subr.mxu0 0.0
  %450 = vmatpush1.msra.mxu0 0.0
  %451 = vmatprep.subr.mxu0 0.0
  %452 = vmatpush1.msra.mxu0 0.0
  %453 = vmatprep.subr.mxu0 0.0
  %454 = vmatpush1.msra.mxu0 0.0
  %455 = vmatprep.subr.mxu0 0.0
  %456 = vmatpush1.msra.mxu0 0.0
  %457 = vmatprep.subr.mxu0 0.0
  %458 = vmatpush1.msra.mxu0 0.0
  %459 = vmatprep.subr.mxu0 0.0
  %460 = vmatpush1.msra.mxu0 0.0
  %461 = vmatprep.subr.mxu0 0.0
  %462 = vmatpush1.msra.mxu0 0.0
  %463 = vmatprep.subr.mxu0 0.0
  %464 = vmatpush1.msra.mxu0 0.0
  %465 = vmatprep.subr.mxu0 0.0
  %466 = vmatpush1.msra.mxu0 0.0
  %467 = vmatprep.subr.mxu0 0.0
  %468 = vmatpush1.msra.mxu0 0.0
  %469 = vmatprep.subr.mxu0 0.0
  %470 = vmatpush1.msra.mxu0 0.0
  %471 = vmatprep.subr.mxu0 0.0
  %472 = vmatpush1.msra.mxu0 0.0
  %473 = vmatprep.subr.mxu0 0.0
  %474 = vmatpush1.msra.mxu0 0.0
  %475 = vmatprep.subr.mxu0 0.0
  %476 = vmatpush1.msra.mxu0 0.0
  %477 = vmatprep.subr.mxu0 0.0
  %478 = vmatpush1.msra.mxu0 0.0
  %479 = vmatprep.mubr.f32.mxu0 0.0
  %480 = vmatmul.mubr.f32.gmra.mrb[0].mxu0 %v413
  %v481 = vpop.f32.mrb[0].mxu0
  %v482 = vadd.f32 0.0, %v481
  %v483 = vpop.f32.mrb[0].mxu0
  %484 = vdwg.mxu0
  %v485 = vadd.f32 %v411, %v482
  %v486 = vtanh.pop %v485
  %487 = vst.msk [vmem:[#allocation2 + $0x4] sm:$0x1] %vm94, %v486
  %v488 = vld [vmem:[#allocation2 + $0x5] sm:$0x1]
  %v490 = vsel %vm87, %v486, 0
  %492 = vmatprep.subr.mxu0 0.0
  %493 = vmatpush1.msra.mxu0 %v96
  %494 = vmatprep.subr.mxu0 0.0
  %495 = vmatpush1.msra.mxu0 %v105
  %496 = vmatprep.subr.mxu0 0.0
  %497 = vmatpush1.msra.mxu0 0.0
  %498 = vmatprep.subr.mxu0 0.0
  %499 = vmatpush1.msra.mxu0 0.0
  %500 = vmatprep.subr.mxu0 0.0
  %501 = vmatpush1.msra.mxu0 0.0
  %502 = vmatprep.subr.mxu0 0.0
  %503 = vmatpush1.msra.mxu0 0.0
  %504 = vmatprep.subr.mxu0 0.0
  %505 = vmatpush1.msra.mxu0 0.0
  %506 = vmatprep.subr.mxu0 0.0
  %507 = vmatpush1.msra.mxu0 0.0
  %508 = vmatprep.subr.mxu0 0.0
  %509 = vmatpush1.msra.mxu0 0.0
  %510 = vmatprep.subr.mxu0 0.0
  %511 = vmatpush1.msra.mxu0 0.0
  %512 = vmatprep.subr.mxu0 0.0
  %513 = vmatpush1.msra.mxu0 0.0
  %514 = vmatprep.subr.mxu0 0.0
  %515 = vmatpush1.msra.mxu0 0.0
  %516 = vmatprep.subr.mxu0 0.0
  %517 = vmatpush1.msra.mxu0 0.0
  %518 = vmatprep.subr.mxu0 0.0
  %519 = vmatpush1.msra.mxu0 0.0
  %520 = vmatprep.subr.mxu0 0.0
  %521 = vmatpush1.msra.mxu0 0.0
  %522 = vmatprep.subr.mxu0 0.0
  %523 = vmatpush1.msra.mxu0 0.0
  %524 = vmatprep.subr.mxu0 0.0
  %525 = vmatpush1.msra.mxu0 0.0
  %526 = vmatprep.subr.mxu0 0.0
  %527 = vmatpush1.msra.mxu0 0.0
  %528 = vmatprep.subr.mxu0 0.0
  %529 = vmatpush1.msra.mxu0 0.0
  %530 = vmatprep.subr.mxu0 0.0
  %531 = vmatpush1.msra.mxu0 0.0
  %532 = vmatprep.subr.mxu0 0.0
  %533 = vmatpush1.msra.mxu0 0.0
  %534 = vmatprep.subr.mxu0 0.0
  %535 = vmatpush1.msra.mxu0 0.0
  %536 = vmatprep.subr.mxu0 0.0
  %537 = vmatpush1.msra.mxu0 0.0
  %538 = vmatprep.subr.mxu0 0.0
  %539 = vmatpush1.msra.mxu0 0.0
  %540 = vmatprep.subr.mxu0 0.0
  %541 = vmatpush1.msra.mxu0 0.0
  %542 = vmatprep.subr.mxu0 0.0
  %543 = vmatpush1.msra.mxu0 0.0
  %544 = vmatprep.subr.mxu0 0.0
  %545 = vmatpush1.msra.mxu0 0.0
  %546 = vmatprep.subr.mxu0 0.0
  %547 = vmatpush1.msra.mxu0 0.0
  %548 = vmatprep.subr.mxu0 0.0
  %549 = vmatpush1.msra.mxu0 0.0
  %550 = vmatprep.subr.mxu0 0.0
  %551 = vmatpush1.msra.mxu0 0.0
  %552 = vmatprep.subr.mxu0 0.0
  %553 = vmatpush1.msra.mxu0 0.0
  %554 = vmatprep.subr.mxu0 0.0
  %555 = vmatpush1.msra.mxu0 0.0
  %556 = vmatprep.mubr.f32.mxu0 0.0
  %557 = vmatmul.mubr.f32.gmra.mrb[0].mxu0 %v490
  %v558 = vpop.f32.mrb[0].mxu0
  %v559 = vadd.f32 0.0, %v558
  %v560 = vpop.f32.mrb[0].mxu0
  %561 = vdwg.mxu0
  %v562 = vadd.f32 %v488, %v559
  %v563 = vtanh.pop %v562
  %564 = vst.msk [vmem:[#allocation2 + $0x5] sm:$0x1] %vm94, %v563
  %v565 = vld [vmem:[#allocation2 + $0x6] sm:$0x1]
  %v567 = vsel %vm87, %v563, 0
  %569 = vmatprep.subr.mxu0 0.0
  %570 = vmatpush1.msra.mxu0 %v96
  %571 = vmatprep.subr.mxu0 0.0
  %572 = vmatpush1.msra.mxu0 %v105
  %573 = vmatprep.subr.mxu0 0.0
  %574 = vmatpush1.msra.mxu0 0.0
  %575 = vmatprep.subr.mxu0 0.0
  %576 = vmatpush1.msra.mxu0 0.0
  %577 = vmatprep.subr.mxu0 0.0
  %578 = vmatpush1.msra.mxu0 0.0
  %579 = vmatprep.subr.mxu0 0.0
  %580 = vmatpush1.msra.mxu0 0.0
  %581 = vmatprep.subr.mxu0 0.0
  %582 = vmatpush1.msra.mxu0 0.0
  %583 = vmatprep.subr.mxu0 0.0
  %584 = vmatpush1.msra.mxu0 0.0
  %585 = vmatprep.subr.mxu0 0.0
  %586 = vmatpush1.msra.mxu0 0.0
  %587 = vmatprep.subr.mxu0 0.0
  %588 = vmatpush1.msra.mxu0 0.0
  %589 = vmatprep.subr.mxu0 0.0
  %590 = vmatpush1.msra.mxu0 0.0
  %591 = vmatprep.subr.mxu0 0.0
  %592 = vmatpush1.msra.mxu0 0.0
  %593 = vmatprep.subr.mxu0 0.0
  %594 = vmatpush1.msra.mxu0 0.0
  %595 = vmatprep.subr.mxu0 0.0
  %596 = vmatpush1.msra.mxu0 0.0
  %597 = vmatprep.subr.mxu0 0.0
  %598 = vmatpush1.msra.mxu0 0.0
  %599 = vmatprep.subr.mxu0 0.0
  %600 = vmatpush1.msra.mxu0 0.0
  %601 = vmatprep.subr.mxu0 0.0
  %602 = vmatpush1.msra.mxu0 0.0
  %603 = vmatprep.subr.mxu0 0.0
  %604 = vmatpush1.msra.mxu0 0.0
  %605 = vmatprep.subr.mxu0 0.0
  %606 = vmatpush1.msra.mxu0 0.0
  %607 = vmatprep.subr.mxu0 0.0
  %608 = vmatpush1.msra.mxu0 0.0
  %609 = vmatprep.subr.mxu0 0.0
  %610 = vmatpush1.msra.mxu0 0.0
  %611 = vmatprep.subr.mxu0 0.0
  %612 = vmatpush1.msra.mxu0 0.0
  %613 = vmatprep.subr.mxu0 0.0
  %614 = vmatpush1.msra.mxu0 0.0
  %615 = vmatprep.subr.mxu0 0.0
  %616 = vmatpush1.msra.mxu0 0.0
  %617 = vmatprep.subr.mxu0 0.0
  %618 = vmatpush1.msra.mxu0 0.0
  %619 = vmatprep.subr.mxu0 0.0
  %620 = vmatpush1.msra.mxu0 0.0
  %621 = vmatprep.subr.mxu0 0.0
  %622 = vmatpush1.msra.mxu0 0.0
  %623 = vmatprep.subr.mxu0 0.0
  %624 = vmatpush1.msra.mxu0 0.0
  %625 = vmatprep.subr.mxu0 0.0
  %626 = vmatpush1.msra.mxu0 0.0
  %627 = vmatprep.subr.mxu0 0.0
  %628 = vmatpush1.msra.mxu0 0.0
  %629 = vmatprep.subr.mxu0 0.0
  %630 = vmatpush1.msra.mxu0 0.0
  %631 = vmatprep.subr.mxu0 0.0
  %632 = vmatpush1.msra.mxu0 0.0
  %633 = vmatprep.mubr.f32.mxu0 0.0
  %634 = vmatmul.mubr.f32.gmra.mrb[0].mxu0 %v567
  %v635 = vpop.f32.mrb[0].mxu0
  %v636 = vadd.f32 0.0, %v635
  %v637 = vpop.f32.mrb[0].mxu0
  %638 = vdwg.mxu0
  %v639 = vadd.f32 %v565, %v636
  %v640 = vtanh.pop %v639
  %641 = vst.msk [vmem:[#allocation2 + $0x6] sm:$0x1] %vm94, %v640
  %v642 = vld [vmem:[#allocation2 + $0x7] sm:$0x1]
  %v644 = vsel %vm87, %v640, 0
  %646 = vmatprep.subr.mxu0 0.0
  %647 = vmatpush1.msra.mxu0 %v96
  %648 = vmatprep.subr.mxu0 0.0
  %649 = vmatpush1.msra.mxu0 %v105
  %650 = vmatprep.subr.mxu0 0.0
  %651 = vmatpush1.msra.mxu0 0.0
  %652 = vmatprep.subr.mxu0 0.0
  %653 = vmatpush1.msra.mxu0 0.0
  %654 = vmatprep.subr.mxu0 0.0
  %655 = vmatpush1.msra.mxu0 0.0
  %656 = vmatprep.subr.mxu0 0.0
  %657 = vmatpush1.msra.mxu0 0.0
  %658 = vmatprep.subr.mxu0 0.0
  %659 = vmatpush1.msra.mxu0 0.0
  %660 = vmatprep.subr.mxu0 0.0
  %661 = vmatpush1.msra.mxu0 0.0
  %662 = vmatprep.subr.mxu0 0.0
  %663 = vmatpush1.msra.mxu0 0.0
  %664 = vmatprep.subr.mxu0 0.0
  %665 = vmatpush1.msra.mxu0 0.0
  %666 = vmatprep.subr.mxu0 0.0
  %667 = vmatpush1.msra.mxu0 0.0
  %668 = vmatprep.subr.mxu0 0.0
  %669 = vmatpush1.msra.mxu0 0.0
  %670 = vmatprep.subr.mxu0 0.0
  %671 = vmatpush1.msra.mxu0 0.0
  %672 = vmatprep.subr.mxu0 0.0
  %673 = vmatpush1.msra.mxu0 0.0
  %674 = vmatprep.subr.mxu0 0.0
  %675 = vmatpush1.msra.mxu0 0.0
  %676 = vmatprep.subr.mxu0 0.0
  %677 = vmatpush1.msra.mxu0 0.0
  %678 = vmatprep.subr.mxu0 0.0
  %679 = vmatpush1.msra.mxu0 0.0
  %680 = vmatprep.subr.mxu0 0.0
  %681 = vmatpush1.msra.mxu0 0.0
  %682 = vmatprep.subr.mxu0 0.0
  %683 = vmatpush1.msra.mxu0 0.0
  %684 = vmatprep.subr.mxu0 0.0
  %685 = vmatpush1.msra.mxu0 0.0
  %686 = vmatprep.subr.mxu0 0.0
  %687 = vmatpush1.msra.mxu0 0.0
  %688 = vmatprep.subr.mxu0 0.0
  %689 = vmatpush1.msra.mxu0 0.0
  %690 = vmatprep.subr.mxu0 0.0
  %691 = vmatpush1.msra.mxu0 0.0
  %692 = vmatprep.subr.mxu0 0.0
  %693 = vmatpush1.msra.mxu0 0.0
  %694 = vmatprep.subr.mxu0 0.0
  %695 = vmatpush1.msra.mxu0 0.0
  %696 = vmatprep.subr.mxu0 0.0
  %697 = vmatpush1.msra.mxu0 0.0
  %698 = vmatprep.subr.mxu0 0.0
  %699 = vmatpush1.msra.mxu0 0.0
  %700 = vmatprep.subr.mxu0 0.0
  %701 = vmatpush1.msra.mxu0 0.0
  %702 = vmatprep.subr.mxu0 0.0
  %703 = vmatpush1.msra.mxu0 0.0
  %704 = vmatprep.subr.mxu0 0.0
  %705 = vmatpush1.msra.mxu0 0.0
  %706 = vmatprep.subr.mxu0 0.0
  %707 = vmatpush1.msra.mxu0 0.0
  %708 = vmatprep.subr.mxu0 0.0
  %709 = vmatpush1.msra.mxu0 0.0
  %710 = vmatprep.mubr.f32.mxu0 0.0
  %711 = vmatmul.mubr.f32.gmra.mrb[0].mxu0 %v644
  %v712 = vpop.f32.mrb[0].mxu0
  %v713 = vadd.f32 0.0, %v712
  %v714 = vpop.f32.mrb[0].mxu0
  %715 = vdwg.mxu0
  %v716 = vadd.f32 %v642, %v713
  %v717 = vtanh.pop %v716
  %718 = vst.msk [vmem:[#allocation2 + $0x7] sm:$0x1] %vm94, %v717
  %v719 = vld [vmem:[#allocation2 + $0x8] sm:$0x1]
  %v721 = vsel %vm87, %v717, 0
  %723 = vmatprep.subr.mxu0 0.0
  %724 = vmatpush1.msra.mxu0 %v96
  %725 = vmatprep.subr.mxu0 0.0
  %726 = vmatpush1.msra.mxu0 %v105
  %727 = vmatprep.subr.mxu0 0.0
  %728 = vmatpush1.msra.mxu0 0.0
  %729 = vmatprep.subr.mxu0 0.0
  %730 = vmatpush1.msra.mxu0 0.0
  %731 = vmatprep.subr.mxu0 0.0
  %732 = vmatpush1.msra.mxu0 0.0
  %733 = vmatprep.subr.mxu0 0.0
  %734 = vmatpush1.msra.mxu0 0.0
  %735 = vmatprep.subr.mxu0 0.0
  %736 = vmatpush1.msra.mxu0 0.0
  %737 = vmatprep.subr.mxu0 0.0
  %738 = vmatpush1.msra.mxu0 0.0
  %739 = vmatprep.subr.mxu0 0.0
  %740 = vmatpush1.msra.mxu0 0.0
  %741 = vmatprep.subr.mxu0 0.0
  %742 = vmatpush1.msra.mxu0 0.0
  %743 = vmatprep.subr.mxu0 0.0
  %744 = vmatpush1.msra.mxu0 0.0
  %745 = vmatprep.subr.mxu0 0.0
  %746 = vmatpush1.msra.mxu0 0.0
  %747 = vmatprep.subr.mxu0 0.0
  %748 = vmatpush1.msra.mxu0 0.0
  %749 = vmatprep.subr.mxu0 0.0
  %750 = vmatpush1.msra.mxu0 0.0
  %751 = vmatprep.subr.mxu0 0.0
  %752 = vmatpush1.msra.mxu0 0.0
  %753 = vmatprep.subr.mxu0 0.0
  %754 = vmatpush1.msra.mxu0 0.0
  %755 = vmatprep.subr.mxu0 0.0
  %756 = vmatpush1.msra.mxu0 0.0
  %757 = vmatprep.subr.mxu0 0.0
  %758 = vmatpush1.msra.mxu0 0.0
  %759 = vmatprep.subr.mxu0 0.0
  %760 = vmatpush1.msra.mxu0 0.0
  %761 = vmatprep.subr.mxu0 0.0
  %762 = vmatpush1.msra.mxu0 0.0
  %763 = vmatprep.subr.mxu0 0.0
  %764 = vmatpush1.msra.mxu0 0.0
  %765 = vmatprep.subr.mxu0 0.0
  %766 = vmatpush1.msra.mxu0 0.0
  %767 = vmatprep.subr.mxu0 0.0
  %768 = vmatpush1.msra.mxu0 0.0
  %769 = vmatprep.subr.mxu0 0.0
  %770 = vmatpush1.msra.mxu0 0.0
  %771 = vmatprep.subr.mxu0 0.0
  %772 = vmatpush1.msra.mxu0 0.0
  %773 = vmatprep.subr.mxu0 0.0
  %774 = vmatpush1.msra.mxu0 0.0
  %775 = vmatprep.subr.mxu0 0.0
  %776 = vmatpush1.msra.mxu0 0.0
  %777 = vmatprep.subr.mxu0 0.0
  %778 = vmatpush1.msra.mxu0 0.0
  %779 = vmatprep.subr.mxu0 0.0
  %780 = vmatpush1.msra.mxu0 0.0
  %781 = vmatprep.subr.mxu0 0.0
  %782 = vmatpush1.msra.mxu0 0.0
  %783 = vmatprep.subr.mxu0 0.0
  %784 = vmatpush1.msra.mxu0 0.0
  %785 = vmatprep.subr.mxu0 0.0
  %786 = vmatpush1.msra.mxu0 0.0
  %787 = vmatprep.mubr.f32.mxu0 0.0
  %788 = vmatmul.mubr.f32.gmra.mrb[0].mxu0 %v721
  %v789 = vpop.f32.mrb[0].mxu0
  %v790 = vadd.f32 0.0, %v789
  %v791 = vpop.f32.mrb[0].mxu0
  %792 = vdwg.mxu0
  %v793 = vadd.f32 %v719, %v790
  %v794 = vtanh.pop %v793
  %795 = vst.msk [vmem:[#allocation2 + $0x8] sm:$0x1] %vm94, %v794
  %v796 = vld [vmem:[#allocation2 + $0x9] sm:$0x1]
  %v798 = vsel %vm87, %v794, 0
  %800 = vmatprep.subr.mxu0 0.0
  %801 = vmatpush1.msra.mxu0 %v96
  %802 = vmatprep.subr.mxu0 0.0
  %803 = vmatpush1.msra.mxu0 %v105
  %804 = vmatprep.subr.mxu0 0.0
  %805 = vmatpush1.msra.mxu0 0.0
  %806 = vmatprep.subr.mxu0 0.0
  %807 = vmatpush1.msra.mxu0 0.0
  %808 = vmatprep.subr.mxu0 0.0
  %809 = vmatpush1.msra.mxu0 0.0
  %810 = vmatprep.subr.mxu0 0.0
  %811 = vmatpush1.msra.mxu0 0.0
  %812 = vmatprep.subr.mxu0 0.0
  %813 = vmatpush1.msra.mxu0 0.0
  %814 = vmatprep.subr.mxu0 0.0
  %815 = vmatpush1.msra.mxu0 0.0
  %816 = vmatprep.subr.mxu0 0.0
  %817 = vmatpush1.msra.mxu0 0.0
  %818 = vmatprep.subr.mxu0 0.0
  %819 = vmatpush1.msra.mxu0 0.0
  %820 = vmatprep.subr.mxu0 0.0
  %821 = vmatpush1.msra.mxu0 0.0
  %822 = vmatprep.subr.mxu0 0.0
  %823 = vmatpush1.msra.mxu0 0.0
  %824 = vmatprep.subr.mxu0 0.0
  %825 = vmatpush1.msra.mxu0 0.0
  %826 = vmatprep.subr.mxu0 0.0
  %827 = vmatpush1.msra.mxu0 0.0
  %828 = vmatprep.subr.mxu0 0.0
  %829 = vmatpush1.msra.mxu0 0.0
  %830 = vmatprep.subr.mxu0 0.0
  %831 = vmatpush1.msra.mxu0 0.0
  %832 = vmatprep.subr.mxu0 0.0
  %833 = vmatpush1.msra.mxu0 0.0
  %834 = vmatprep.subr.mxu0 0.0
  %835 = vmatpush1.msra.mxu0 0.0
  %836 = vmatprep.subr.mxu0 0.0
  %837 = vmatpush1.msra.mxu0 0.0
  %838 = vmatprep.subr.mxu0 0.0
  %839 = vmatpush1.msra.mxu0 0.0
  %840 = vmatprep.subr.mxu0 0.0
  %841 = vmatpush1.msra.mxu0 0.0
  %842 = vmatprep.subr.mxu0 0.0
  %843 = vmatpush1.msra.mxu0 0.0
  %844 = vmatprep.subr.mxu0 0.0
  %845 = vmatpush1.msra.mxu0 0.0
  %846 = vmatprep.subr.mxu0 0.0
  %847 = vmatpush1.msra.mxu0 0.0
  %848 = vmatprep.subr.mxu0 0.0
  %849 = vmatpush1.msra.mxu0 0.0
  %850 = vmatprep.subr.mxu0 0.0
  %851 = vmatpush1.msra.mxu0 0.0
  %852 = vmatprep.subr.mxu0 0.0
  %853 = vmatpush1.msra.mxu0 0.0
  %854 = vmatprep.subr.mxu0 0.0
  %855 = vmatpush1.msra.mxu0 0.0
  %856 = vmatprep.subr.mxu0 0.0
  %857 = vmatpush1.msra.mxu0 0.0
  %858 = vmatprep.subr.mxu0 0.0
  %859 = vmatpush1.msra.mxu0 0.0
  %860 = vmatprep.subr.mxu0 0.0
  %861 = vmatpush1.msra.mxu0 0.0
  %862 = vmatprep.subr.mxu0 0.0
  %863 = vmatpush1.msra.mxu0 0.0
  %864 = vmatprep.mubr.f32.mxu0 0.0
  %865 = vmatmul.mubr.f32.gmra.mrb[0].mxu0 %v798
  %v866 = vpop.f32.mrb[0].mxu0
  %v867 = vadd.f32 0.0, %v866
  %v868 = vpop.f32.mrb[0].mxu0
  %869 = vdwg.mxu0
  %v870 = vadd.f32 %v796, %v867
  %v871 = vtanh.pop %v870
  %872 = vst.msk [vmem:[#allocation2 + $0x9] sm:$0x1] %vm94, %v871
  %v873 = vld [vmem:[#allocation2 + $0xa] sm:$0x1]
  %v875 = vsel %vm87, %v871, 0
  %877 = vmatprep.subr.mxu0 0.0
  %878 = vmatpush1.msra.mxu0 %v96
  %879 = vmatprep.subr.mxu0 0.0
  %880 = vmatpush1.msra.mxu0 %v105
  %881 = vmatprep.subr.mxu0 0.0
  %882 = vmatpush1.msra.mxu0 0.0
  %883 = vmatprep.subr.mxu0 0.0
  %884 = vmatpush1.msra.mxu0 0.0
  %885 = vmatprep.subr.mxu0 0.0
  %886 = vmatpush1.msra.mxu0 0.0
  %887 = vmatprep.subr.mxu0 0.0
  %888 = vmatpush1.msra.mxu0 0.0
  %889 = vmatprep.subr.mxu0 0.0
  %890 = vmatpush1.msra.mxu0 0.0
  %891 = vmatprep.subr.mxu0 0.0
  %892 = vmatpush1.msra.mxu0 0.0
  %893 = vmatprep.subr.mxu0 0.0
  %894 = vmatpush1.msra.mxu0 0.0
  %895 = vmatprep.subr.mxu0 0.0
  %896 = vmatpush1.msra.mxu0 0.0
  %897 = vmatprep.subr.mxu0 0.0
  %898 = vmatpush1.msra.mxu0 0.0
  %899 = vmatprep.subr.mxu0 0.0
  %900 = vmatpush1.msra.mxu0 0.0
  %901 = vmatprep.subr.mxu0 0.0
  %902 = vmatpush1.msra.mxu0 0.0
  %903 = vmatprep.subr.mxu0 0.0
  %904 = vmatpush1.msra.mxu0 0.0
  %905 = vmatprep.subr.mxu0 0.0
  %906 = vmatpush1.msra.mxu0 0.0
  %907 = vmatprep.subr.mxu0 0.0
  %908 = vmatpush1.msra.mxu0 0.0
  %909 = vmatprep.subr.mxu0 0.0
  %910 = vmatpush1.msra.mxu0 0.0
  %911 = vmatprep.subr.mxu0 0.0
  %912 = vmatpush1.msra.mxu0 0.0
  %913 = vmatprep.subr.mxu0 0.0
  %914 = vmatpush1.msra.mxu0 0.0
  %915 = vmatprep.subr.mxu0 0.0
  %916 = vmatpush1.msra.mxu0 0.0
  %917 = vmatprep.subr.mxu0 0.0
  %918 = vmatpush1.msra.mxu0 0.0
  %919 = vmatprep.subr.mxu0 0.0
  %920 = vmatpush1.msra.mxu0 0.0
  %921 = vmatprep.subr.mxu0 0.0
  %922 = vmatpush1.msra.mxu0 0.0
  %923 = vmatprep.subr.mxu0 0.0
  %924 = vmatpush1.msra.mxu0 0.0
  %925 = vmatprep.subr.mxu0 0.0
  %926 = vmatpush1.msra.mxu0 0.0
  %927 = vmatprep.subr.mxu0 0.0
  %928 = vmatpush1.msra.mxu0 0.0
  %929 = vmatprep.subr.mxu0 0.0
  %930 = vmatpush1.msra.mxu0 0.0
  %931 = vmatprep.subr.mxu0 0.0
  %932 = vmatpush1.msra.mxu0 0.0
  %933 = vmatprep.subr.mxu0 0.0
  %934 = vmatpush1.msra.mxu0 0.0
  %935 = vmatprep.subr.mxu0 0.0
  %936 = vmatpush1.msra.mxu0 0.0
  %937 = vmatprep.subr.mxu0 0.0
  %938 = vmatpush1.msra.mxu0 0.0
  %939 = vmatprep.subr.mxu0 0.0
  %940 = vmatpush1.msra.mxu0 0.0
  %941 = vmatprep.mubr.f32.mxu0 0.0
  %942 = vmatmul.mubr.f32.gmra.mrb[0].mxu0 %v875
  %v943 = vpop.f32.mrb[0].mxu0
  %v944 = vadd.f32 0.0, %v943
  %v945 = vpop.f32.mrb[0].mxu0
  %946 = vdwg.mxu0
  %v947 = vadd.f32 %v873, %v944
  %v948 = vtanh.pop %v947
  %949 = vst.msk [vmem:[#allocation2 + $0xa] sm:$0x1] %vm94, %v948
  %v950 = vld [vmem:[#allocation2 + $0xb] sm:$0x1]
  %v952 = vsel %vm87, %v948, 0
  %954 = vmatprep.subr.mxu0 0.0
  %955 = vmatpush1.msra.mxu0 %v96
  %956 = vmatprep.subr.mxu0 0.0
  %957 = vmatpush1.msra.mxu0 %v105
  %958 = vmatprep.subr.mxu0 0.0
  %959 = vmatpush1.msra.mxu0 0.0
  %960 = vmatprep.subr.mxu0 0.0
  %961 = vmatpush1.msra.mxu0 0.0
  %962 = vmatprep.subr.mxu0 0.0
  %963 = vmatpush1.msra.mxu0 0.0
  %964 = vmatprep.subr.mxu0 0.0
  %965 = vmatpush1.msra.mxu0 0.0
  %966 = vmatprep.subr.mxu0 0.0
  %967 = vmatpush1.msra.mxu0 0.0
  %968 = vmatprep.subr.mxu0 0.0
  %969 = vmatpush1.msra.mxu0 0.0
  %970 = vmatprep.subr.mxu0 0.0
  %971 = vmatpush1.msra.mxu0 0.0
  %972 = vmatprep.subr.mxu0 0.0
  %973 = vmatpush1.msra.mxu0 0.0
  %974 = vmatprep.subr.mxu0 0.0
  %975 = vmatpush1.msra.mxu0 0.0
  %976 = vmatprep.subr.mxu0 0.0
  %977 = vmatpush1.msra.mxu0 0.0
  %978 = vmatprep.subr.mxu0 0.0
  %979 = vmatpush1.msra.mxu0 0.0
  %980 = vmatprep.subr.mxu0 0.0
  %981 = vmatpush1.msra.mxu0 0.0
  %982 = vmatprep.subr.mxu0 0.0
  %983 = vmatpush1.msra.mxu0 0.0
  %984 = vmatprep.subr.mxu0 0.0
  %985 = vmatpush1.msra.mxu0 0.0
  %986 = vmatprep.subr.mxu0 0.0
  %987 = vmatpush1.msra.mxu0 0.0
  %988 = vmatprep.subr.mxu0 0.0
  %989 = vmatpush1.msra.mxu0 0.0
  %990 = vmatprep.subr.mxu0 0.0
  %991 = vmatpush1.msra.mxu0 0.0
  %992 = vmatprep.subr.mxu0 0.0
  %993 = vmatpush1.msra.mxu0 0.0
  %994 = vmatprep.subr.mxu0 0.0
  %995 = vmatpush1.msra.mxu0 0.0
  %996 = vmatprep.subr.mxu0 0.0
  %997 = vmatpush1.msra.mxu0 0.0
  %998 = vmatprep.subr.mxu0 0.0
  %999 = vmatpush1.msra.mxu0 0.0
  %1000 = vmatprep.subr.mxu0 0.0
  %1001 = vmatpush1.msra.mxu0 0.0
  %1002 = vmatprep.subr.mxu0 0.0
  %1003 = vmatpush1.msra.mxu0 0.0
  %1004 = vmatprep.subr.mxu0 0.0
  %1005 = vmatpush1.msra.mxu0 0.0
  %1006 = vmatprep.subr.mxu0 0.0
  %1007 = vmatpush1.msra.mxu0 0.0
  %1008 = vmatprep.subr.mxu0 0.0
  %1009 = vmatpush1.msra.mxu0 0.0
  %1010 = vmatprep.subr.mxu0 0.0
  %1011 = vmatpush1.msra.mxu0 0.0
  %1012 = vmatprep.subr.mxu0 0.0
  %1013 = vmatpush1.msra.mxu0 0.0
  %1014 = vmatprep.subr.mxu0 0.0
  %1015 = vmatpush1.msra.mxu0 0.0
  %1016 = vmatprep.subr.mxu0 0.0
  %1017 = vmatpush1.msra.mxu0 0.0
  %1018 = vmatprep.mubr.f32.mxu0 0.0
  %1019 = vmatmul.mubr.f32.gmra.mrb[0].mxu0 %v952
  %v1020 = vpop.f32.mrb[0].mxu0
  %v1021 = vadd.f32 0.0, %v1020
  %v1022 = vpop.f32.mrb[0].mxu0
  %1023 = vdwg.mxu0
  %v1024 = vadd.f32 %v950, %v1021
  %v1025 = vtanh.pop %v1024
  %1026 = vst.msk [vmem:[#allocation2 + $0xb] sm:$0x1] %vm94, %v1025
  %v1027 = vld [vmem:[#allocation2 + $0xc] sm:$0x1]
  %v1029 = vsel %vm87, %v1025, 0
  %1031 = vmatprep.subr.mxu0 0.0
  %1032 = vmatpush1.msra.mxu0 %v96
  %1033 = vmatprep.subr.mxu0 0.0
  %1034 = vmatpush1.msra.mxu0 %v105
  %1035 = vmatprep.subr.mxu0 0.0
  %1036 = vmatpush1.msra.mxu0 0.0
  %1037 = vmatprep.subr.mxu0 0.0
  %1038 = vmatpush1.msra.mxu0 0.0
  %1039 = vmatprep.subr.mxu0 0.0
  %1040 = vmatpush1.msra.mxu0 0.0
  %1041 = vmatprep.subr.mxu0 0.0
  %1042 = vmatpush1.msra.mxu0 0.0
  %1043 = vmatprep.subr.mxu0 0.0
  %1044 = vmatpush1.msra.mxu0 0.0
  %1045 = vmatprep.subr.mxu0 0.0
  %1046 = vmatpush1.msra.mxu0 0.0
  %1047 = vmatprep.subr.mxu0 0.0
  %1048 = vmatpush1.msra.mxu0 0.0
  %1049 = vmatprep.subr.mxu0 0.0
  %1050 = vmatpush1.msra.mxu0 0.0
  %1051 = vmatprep.subr.mxu0 0.0
  %1052 = vmatpush1.msra.mxu0 0.0
  %1053 = vmatprep.subr.mxu0 0.0
  %1054 = vmatpush1.msra.mxu0 0.0
  %1055 = vmatprep.subr.mxu0 0.0
  %1056 = vmatpush1.msra.mxu0 0.0
  %1057 = vmatprep.subr.mxu0 0.0
  %1058 = vmatpush1.msra.mxu0 0.0
  %1059 = vmatprep.subr.mxu0 0.0
  %1060 = vmatpush1.msra.mxu0 0.0
  %1061 = vmatprep.subr.mxu0 0.0
  %1062 = vmatpush1.msra.mxu0 0.0
  %1063 = vmatprep.subr.mxu0 0.0
  %1064 = vmatpush1.msra.mxu0 0.0
  %1065 = vmatprep.subr.mxu0 0.0
  %1066 = vmatpush1.msra.mxu0 0.0
  %1067 = vmatprep.subr.mxu0 0.0
  %1068 = vmatpush1.msra.mxu0 0.0
  %1069 = vmatprep.subr.mxu0 0.0
  %1070 = vmatpush1.msra.mxu0 0.0
  %1071 = vmatprep.subr.mxu0 0.0
  %1072 = vmatpush1.msra.mxu0 0.0
  %1073 = vmatprep.subr.mxu0 0.0
  %1074 = vmatpush1.msra.mxu0 0.0
  %1075 = vmatprep.subr.mxu0 0.0
  %1076 = vmatpush1.msra.mxu0 0.0
  %1077 = vmatprep.subr.mxu0 0.0
  %1078 = vmatpush1.msra.mxu0 0.0
  %1079 = vmatprep.subr.mxu0 0.0
  %1080 = vmatpush1.msra.mxu0 0.0
  %1081 = vmatprep.subr.mxu0 0.0
  %1082 = vmatpush1.msra.mxu0 0.0
  %1083 = vmatprep.subr.mxu0 0.0
  %1084 = vmatpush1.msra.mxu0 0.0
  %1085 = vmatprep.subr.mxu0 0.0
  %1086 = vmatpush1.msra.mxu0 0.0
  %1087 = vmatprep.subr.mxu0 0.0
  %1088 = vmatpush1.msra.mxu0 0.0
  %1089 = vmatprep.subr.mxu0 0.0
  %1090 = vmatpush1.msra.mxu0 0.0
  %1091 = vmatprep.subr.mxu0 0.0
  %1092 = vmatpush1.msra.mxu0 0.0
  %1093 = vmatprep.subr.mxu0 0.0
  %1094 = vmatpush1.msra.mxu0 0.0
  %1095 = vmatprep.mubr.f32.mxu0 0.0
  %1096 = vmatmul.mubr.f32.gmra.mrb[0].mxu0 %v1029
  %v1097 = vpop.f32.mrb[0].mxu0
  %v1098 = vadd.f32 0.0, %v1097
  %v1099 = vpop.f32.mrb[0].mxu0
  %1100 = vdwg.mxu0
  %v1101 = vadd.f32 %v1027, %v1098
  %v1102 = vtanh.pop %v1101
  %1103 = vst.msk [vmem:[#allocation2 + $0xc] sm:$0x1] %vm94, %v1102
  %v1104 = vld [vmem:[#allocation2 + $0xd] sm:$0x1]
  %v1106 = vsel %vm87, %v1102, 0
  %1108 = vmatprep.subr.mxu0 0.0
  %1109 = vmatpush1.msra.mxu0 %v96
  %1110 = vmatprep.subr.mxu0 0.0
  %1111 = vmatpush1.msra.mxu0 %v105
  %1112 = vmatprep.subr.mxu0 0.0
  %1113 = vmatpush1.msra.mxu0 0.0
  %1114 = vmatprep.subr.mxu0 0.0
  %1115 = vmatpush1.msra.mxu0 0.0
  %1116 = vmatprep.subr.mxu0 0.0
  %1117 = vmatpush1.msra.mxu0 0.0
  %1118 = vmatprep.subr.mxu0 0.0
  %1119 = vmatpush1.msra.mxu0 0.0
  %1120 = vmatprep.subr.mxu0 0.0
  %1121 = vmatpush1.msra.mxu0 0.0
  %1122 = vmatprep.subr.mxu0 0.0
  %1123 = vmatpush1.msra.mxu0 0.0
  %1124 = vmatprep.subr.mxu0 0.0
  %1125 = vmatpush1.msra.mxu0 0.0
  %1126 = vmatprep.subr.mxu0 0.0
  %1127 = vmatpush1.msra.mxu0 0.0
  %1128 = vmatprep.subr.mxu0 0.0
  %1129 = vmatpush1.msra.mxu0 0.0
  %1130 = vmatprep.subr.mxu0 0.0
  %1131 = vmatpush1.msra.mxu0 0.0
  %1132 = vmatprep.subr.mxu0 0.0
  %1133 = vmatpush1.msra.mxu0 0.0
  %1134 = vmatprep.subr.mxu0 0.0
  %1135 = vmatpush1.msra.mxu0 0.0
  %1136 = vmatprep.subr.mxu0 0.0
  %1137 = vmatpush1.msra.mxu0 0.0
  %1138 = vmatprep.subr.mxu0 0.0
  %1139 = vmatpush1.msra.mxu0 0.0
  %1140 = vmatprep.subr.mxu0 0.0
  %1141 = vmatpush1.msra.mxu0 0.0
  %1142 = vmatprep.subr.mxu0 0.0
  %1143 = vmatpush1.msra.mxu0 0.0
  %1144 = vmatprep.subr.mxu0 0.0
  %1145 = vmatpush1.msra.mxu0 0.0
  %1146 = vmatprep.subr.mxu0 0.0
  %1147 = vmatpush1.msra.mxu0 0.0
  %1148 = vmatprep.subr.mxu0 0.0
  %1149 = vmatpush1.msra.mxu0 0.0
  %1150 = vmatprep.subr.mxu0 0.0
  %1151 = vmatpush1.msra.mxu0 0.0
  %1152 = vmatprep.subr.mxu0 0.0
  %1153 = vmatpush1.msra.mxu0 0.0
  %1154 = vmatprep.subr.mxu0 0.0
  %1155 = vmatpush1.msra.mxu0 0.0
  %1156 = vmatprep.subr.mxu0 0.0
  %1157 = vmatpush1.msra.mxu0 0.0
  %1158 = vmatprep.subr.mxu0 0.0
  %1159 = vmatpush1.msra.mxu0 0.0
  %1160 = vmatprep.subr.mxu0 0.0
  %1161 = vmatpush1.msra.mxu0 0.0
  %1162 = vmatprep.subr.mxu0 0.0
  %1163 = vmatpush1.msra.mxu0 0.0
  %1164 = vmatprep.subr.mxu0 0.0
  %1165 = vmatpush1.msra.mxu0 0.0
  %1166 = vmatprep.subr.mxu0 0.0
  %1167 = vmatpush1.msra.mxu0 0.0
  %1168 = vmatprep.subr.mxu0 0.0
  %1169 = vmatpush1.msra.mxu0 0.0
  %1170 = vmatprep.subr.mxu0 0.0
  %1171 = vmatpush1.msra.mxu0 0.0
  %1172 = vmatprep.mubr.f32.mxu0 0.0
  %1173 = vmatmul.mubr.f32.gmra.mrb[0].mxu0 %v1106
  %v1174 = vpop.f32.mrb[0].mxu0
  %v1175 = vadd.f32 0.0, %v1174
  %v1176 = vpop.f32.mrb[0].mxu0
  %1177 = vdwg.mxu0
  %v1178 = vadd.f32 %v1104, %v1175
  %v1179 = vtanh.pop %v1178
  %1180 = vst.msk [vmem:[#allocation2 + $0xd] sm:$0x1] %vm94, %v1179
  %v1181 = vld [vmem:[#allocation2 + $0xe] sm:$0x1]
  %v1183 = vsel %vm87, %v1179, 0
  %1185 = vmatprep.subr.mxu0 0.0
  %1186 = vmatpush1.msra.mxu0 %v96
  %1187 = vmatprep.subr.mxu0 0.0
  %1188 = vmatpush1.msra.mxu0 %v105
  %1189 = vmatprep.subr.mxu0 0.0
  %1190 = vmatpush1.msra.mxu0 0.0
  %1191 = vmatprep.subr.mxu0 0.0
  %1192 = vmatpush1.msra.mxu0 0.0
  %1193 = vmatprep.subr.mxu0 0.0
  %1194 = vmatpush1.msra.mxu0 0.0
  %1195 = vmatprep.subr.mxu0 0.0
  %1196 = vmatpush1.msra.mxu0 0.0
  %1197 = vmatprep.subr.mxu0 0.0
  %1198 = vmatpush1.msra.mxu0 0.0
  %1199 = vmatprep.subr.mxu0 0.0
  %1200 = vmatpush1.msra.mxu0 0.0
  %1201 = vmatprep.subr.mxu0 0.0
  %1202 = vmatpush1.msra.mxu0 0.0
  %1203 = vmatprep.subr.mxu0 0.0
  %1204 = vmatpush1.msra.mxu0 0.0
  %1205 = vmatprep.subr.mxu0 0.0
  %1206 = vmatpush1.msra.mxu0 0.0
  %1207 = vmatprep.subr.mxu0 0.0
  %1208 = vmatpush1.msra.mxu0 0.0
  %1209 = vmatprep.subr.mxu0 0.0
  %1210 = vmatpush1.msra.mxu0 0.0
  %1211 = vmatprep.subr.mxu0 0.0
  %1212 = vmatpush1.msra.mxu0 0.0
  %1213 = vmatprep.subr.mxu0 0.0
  %1214 = vmatpush1.msra.mxu0 0.0
  %1215 = vmatprep.subr.mxu0 0.0
  %1216 = vmatpush1.msra.mxu0 0.0
  %1217 = vmatprep.subr.mxu0 0.0
  %1218 = vmatpush1.msra.mxu0 0.0
  %1219 = vmatprep.subr.mxu0 0.0
  %1220 = vmatpush1.msra.mxu0 0.0
  %1221 = vmatprep.subr.mxu0 0.0
  %1222 = vmatpush1.msra.mxu0 0.0
  %1223 = vmatprep.subr.mxu0 0.0
  %1224 = vmatpush1.msra.mxu0 0.0
  %1225 = vmatprep.subr.mxu0 0.0
  %1226 = vmatpush1.msra.mxu0 0.0
  %1227 = vmatprep.subr.mxu0 0.0
  %1228 = vmatpush1.msra.mxu0 0.0
  %1229 = vmatprep.subr.mxu0 0.0
  %1230 = vmatpush1.msra.mxu0 0.0
  %1231 = vmatprep.subr.mxu0 0.0
  %1232 = vmatpush1.msra.mxu0 0.0
  %1233 = vmatprep.subr.mxu0 0.0
  %1234 = vmatpush1.msra.mxu0 0.0
  %1235 = vmatprep.subr.mxu0 0.0
  %1236 = vmatpush1.msra.mxu0 0.0
  %1237 = vmatprep.subr.mxu0 0.0
  %1238 = vmatpush1.msra.mxu0 0.0
  %1239 = vmatprep.subr.mxu0 0.0
  %1240 = vmatpush1.msra.mxu0 0.0
  %1241 = vmatprep.subr.mxu0 0.0
  %1242 = vmatpush1.msra.mxu0 0.0
  %1243 = vmatprep.subr.mxu0 0.0
  %1244 = vmatpush1.msra.mxu0 0.0
  %1245 = vmatprep.subr.mxu0 0.0
  %1246 = vmatpush1.msra.mxu0 0.0
  %1247 = vmatprep.subr.mxu0 0.0
  %1248 = vmatpush1.msra.mxu0 0.0
  %1249 = vmatprep.mubr.f32.mxu0 0.0
  %1250 = vmatmul.mubr.f32.gmra.mrb[0].mxu0 %v1183
  %v1251 = vpop.f32.mrb[0].mxu0
  %v1252 = vadd.f32 0.0, %v1251
  %v1253 = vpop.f32.mrb[0].mxu0
  %1254 = vdwg.mxu0
  %v1255 = vadd.f32 %v1181, %v1252
  %v1256 = vtanh.pop %v1255
  %1257 = vst.msk [vmem:[#allocation2 + $0xe] sm:$0x1] %vm94, %v1256
  %v1258 = vld [vmem:[#allocation2 + $0xf] sm:$0x1]
  %v1260 = vsel %vm87, %v1256, 0
  %1262 = vmatprep.subr.mxu0 0.0
  %1263 = vmatpush1.msra.mxu0 %v96
  %1264 = vmatprep.subr.mxu0 0.0
  %1265 = vmatpush1.msra.mxu0 %v105
  %1266 = vmatprep.subr.mxu0 0.0
  %1267 = vmatpush1.msra.mxu0 0.0
  %1268 = vmatprep.subr.mxu0 0.0
  %1269 = vmatpush1.msra.mxu0 0.0
  %1270 = vmatprep.subr.mxu0 0.0
  %1271 = vmatpush1.msra.mxu0 0.0
  %1272 = vmatprep.subr.mxu0 0.0
  %1273 = vmatpush1.msra.mxu0 0.0
  %1274 = vmatprep.subr.mxu0 0.0
  %1275 = vmatpush1.msra.mxu0 0.0
  %1276 = vmatprep.subr.mxu0 0.0
  %1277 = vmatpush1.msra.mxu0 0.0
  %1278 = vmatprep.subr.mxu0 0.0
  %1279 = vmatpush1.msra.mxu0 0.0
  %1280 = vmatprep.subr.mxu0 0.0
  %1281 = vmatpush1.msra.mxu0 0.0
  %1282 = vmatprep.subr.mxu0 0.0
  %1283 = vmatpush1.msra.mxu0 0.0
  %1284 = vmatprep.subr.mxu0 0.0
  %1285 = vmatpush1.msra.mxu0 0.0
  %1286 = vmatprep.subr.mxu0 0.0
  %1287 = vmatpush1.msra.mxu0 0.0
  %1288 = vmatprep.subr.mxu0 0.0
  %1289 = vmatpush1.msra.mxu0 0.0
  %1290 = vmatprep.subr.mxu0 0.0
  %1291 = vmatpush1.msra.mxu0 0.0
  %1292 = vmatprep.subr.mxu0 0.0
  %1293 = vmatpush1.msra.mxu0 0.0
  %1294 = vmatprep.subr.mxu0 0.0
  %1295 = vmatpush1.msra.mxu0 0.0
  %1296 = vmatprep.subr.mxu0 0.0
  %1297 = vmatpush1.msra.mxu0 0.0
  %1298 = vmatprep.subr.mxu0 0.0
  %1299 = vmatpush1.msra.mxu0 0.0
  %1300 = vmatprep.subr.mxu0 0.0
  %1301 = vmatpush1.msra.mxu0 0.0
  %1302 = vmatprep.subr.mxu0 0.0
  %1303 = vmatpush1.msra.mxu0 0.0
  %1304 = vmatprep.subr.mxu0 0.0
  %1305 = vmatpush1.msra.mxu0 0.0
  %1306 = vmatprep.subr.mxu0 0.0
  %1307 = vmatpush1.msra.mxu0 0.0
  %1308 = vmatprep.subr.mxu0 0.0
  %1309 = vmatpush1.msra.mxu0 0.0
  %1310 = vmatprep.subr.mxu0 0.0
  %1311 = vmatpush1.msra.mxu0 0.0
  %1312 = vmatprep.subr.mxu0 0.0
  %1313 = vmatpush1.msra.mxu0 0.0
  %1314 = vmatprep.subr.mxu0 0.0
  %1315 = vmatpush1.msra.mxu0 0.0
  %1316 = vmatprep.subr.mxu0 0.0
  %1317 = vmatpush1.msra.mxu0 0.0
  %1318 = vmatprep.subr.mxu0 0.0
  %1319 = vmatpush1.msra.mxu0 0.0
  %1320 = vmatprep.subr.mxu0 0.0
  %1321 = vmatpush1.msra.mxu0 0.0
  %1322 = vmatprep.subr.mxu0 0.0
  %1323 = vmatpush1.msra.mxu0 0.0
  %1324 = vmatprep.subr.mxu0 0.0
  %1325 = vmatpush1.msra.mxu0 0.0
  %1326 = vmatprep.mubr.f32.mxu0 0.0
  %1327 = vmatmul.mubr.f32.gmra.mrb[0].mxu0 %v1260
  %v1328 = vpop.f32.mrb[0].mxu0
  %v1329 = vadd.f32 0.0, %v1328
  %v1330 = vpop.f32.mrb[0].mxu0
  %1331 = vdwg.mxu0
  %v1332 = vadd.f32 %v1258, %v1329
  %v1333 = vtanh.pop %v1332
  %1334 = vst.msk [vmem:[#allocation2 + $0xf] sm:$0x1] %vm94, %v1333
  %v1335 = vld [vmem:[#allocation2 + $0x10] sm:$0x1]
  %v1337 = vsel %vm87, %v1333, 0
  %1339 = vmatprep.subr.mxu0 0.0
  %1340 = vmatpush1.msra.mxu0 %v96
  %1341 = vmatprep.subr.mxu0 0.0
  %1342 = vmatpush1.msra.mxu0 %v105
  %1343 = vmatprep.subr.mxu0 0.0
  %1344 = vmatpush1.msra.mxu0 0.0
  %1345 = vmatprep.subr.mxu0 0.0
  %1346 = vmatpush1.msra.mxu0 0.0
  %1347 = vmatprep.subr.mxu0 0.0
  %1348 = vmatpush1.msra.mxu0 0.0
  %1349 = vmatprep.subr.mxu0 0.0
  %1350 = vmatpush1.msra.mxu0 0.0
  %1351 = vmatprep.subr.mxu0 0.0
  %1352 = vmatpush1.msra.mxu0 0.0
  %1353 = vmatprep.subr.mxu0 0.0
  %1354 = vmatpush1.msra.mxu0 0.0
  %1355 = vmatprep.subr.mxu0 0.0
  %1356 = vmatpush1.msra.mxu0 0.0
  %1357 = vmatprep.subr.mxu0 0.0
  %1358 = vmatpush1.msra.mxu0 0.0
  %1359 = vmatprep.subr.mxu0 0.0
  %1360 = vmatpush1.msra.mxu0 0.0
  %1361 = vmatprep.subr.mxu0 0.0
  %1362 = vmatpush1.msra.mxu0 0.0
  %1363 = vmatprep.subr.mxu0 0.0
  %1364 = vmatpush1.msra.mxu0 0.0
  %1365 = vmatprep.subr.mxu0 0.0
  %1366 = vmatpush1.msra.mxu0 0.0
  %1367 = vmatprep.subr.mxu0 0.0
  %1368 = vmatpush1.msra.mxu0 0.0
  %1369 = vmatprep.subr.mxu0 0.0
  %1370 = vmatpush1.msra.mxu0 0.0
  %1371 = vmatprep.subr.mxu0 0.0
  %1372 = vmatpush1.msra.mxu0 0.0
  %1373 = vmatprep.subr.mxu0 0.0
  %1374 = vmatpush1.msra.mxu0 0.0
  %1375 = vmatprep.subr.mxu0 0.0
  %1376 = vmatpush1.msra.mxu0 0.0
  %1377 = vmatprep.subr.mxu0 0.0
  %1378 = vmatpush1.msra.mxu0 0.0
  %1379 = vmatprep.subr.mxu0 0.0
  %1380 = vmatpush1.msra.mxu0 0.0
  %1381 = vmatprep.subr.mxu0 0.0
  %1382 = vmatpush1.msra.mxu0 0.0
  %1383 = vmatprep.subr.mxu0 0.0
  %1384 = vmatpush1.msra.mxu0 0.0
  %1385 = vmatprep.subr.mxu0 0.0
  %1386 = vmatpush1.msra.mxu0 0.0
  %1387 = vmatprep.subr.mxu0 0.0
  %1388 = vmatpush1.msra.mxu0 0.0
  %1389 = vmatprep.subr.mxu0 0.0
  %1390 = vmatpush1.msra.mxu0 0.0
  %1391 = vmatprep.subr.mxu0 0.0
  %1392 = vmatpush1.msra.mxu0 0.0
  %1393 = vmatprep.subr.mxu0 0.0
  %1394 = vmatpush1.msra.mxu0 0.0
  %1395 = vmatprep.subr.mxu0 0.0
  %1396 = vmatpush1.msra.mxu0 0.0
  %1397 = vmatprep.subr.mxu0 0.0
  %1398 = vmatpush1.msra.mxu0 0.0
  %1399 = vmatprep.subr.mxu0 0.0
  %1400 = vmatpush1.msra.mxu0 0.0
  %1401 = vmatprep.subr.mxu0 0.0
  %1402 = vmatpush1.msra.mxu0 0.0
  %1403 = vmatprep.mubr.f32.mxu0 0.0
  %1404 = vmatmul.mubr.f32.gmra.mrb[0].mxu0 %v1337
  %v1405 = vpop.f32.mrb[0].mxu0
  %v1406 = vadd.f32 0.0, %v1405
  %v1407 = vpop.f32.mrb[0].mxu0
  %1408 = vdwg.mxu0
  %v1409 = vadd.f32 %v1335, %v1406
  %v1410 = vtanh.pop %v1409
  %1411 = vst.msk [vmem:[#allocation2 + $0x10] sm:$0x1] %vm94, %v1410
  %v1412 = vld [vmem:[#allocation2 + $0x11] sm:$0x1]
  %v1414 = vsel %vm87, %v1410, 0
  %1416 = vmatprep.subr.mxu0 0.0
  %1417 = vmatpush1.msra.mxu0 %v96
  %1418 = vmatprep.subr.mxu0 0.0
  %1419 = vmatpush1.msra.mxu0 %v105
  %1420 = vmatprep.subr.mxu0 0.0
  %1421 = vmatpush1.msra.mxu0 0.0
  %1422 = vmatprep.subr.mxu0 0.0
  %1423 = vmatpush1.msra.mxu0 0.0
  %1424 = vmatprep.subr.mxu0 0.0
  %1425 = vmatpush1.msra.mxu0 0.0
  %1426 = vmatprep.subr.mxu0 0.0
  %1427 = vmatpush1.msra.mxu0 0.0
  %1428 = vmatprep.subr.mxu0 0.0
  %1429 = vmatpush1.msra.mxu0 0.0
  %1430 = vmatprep.subr.mxu0 0.0
  %1431 = vmatpush1.msra.mxu0 0.0
  %1432 = vmatprep.subr.mxu0 0.0
  %1433 = vmatpush1.msra.mxu0 0.0
  %1434 = vmatprep.subr.mxu0 0.0
  %1435 = vmatpush1.msra.mxu0 0.0
  %1436 = vmatprep.subr.mxu0 0.0
  %1437 = vmatpush1.msra.mxu0 0.0
  %1438 = vmatprep.subr.mxu0 0.0
  %1439 = vmatpush1.msra.mxu0 0.0
  %1440 = vmatprep.subr.mxu0 0.0
  %1441 = vmatpush1.msra.mxu0 0.0
  %1442 = vmatprep.subr.mxu0 0.0
  %1443 = vmatpush1.msra.mxu0 0.0
  %1444 = vmatprep.subr.mxu0 0.0
  %1445 = vmatpush1.msra.mxu0 0.0
  %1446 = vmatprep.subr.mxu0 0.0
  %1447 = vmatpush1.msra.mxu0 0.0
  %1448 = vmatprep.subr.mxu0 0.0
  %1449 = vmatpush1.msra.mxu0 0.0
  %1450 = vmatprep.subr.mxu0 0.0
  %1451 = vmatpush1.msra.mxu0 0.0
  %1452 = vmatprep.subr.mxu0 0.0
  %1453 = vmatpush1.msra.mxu0 0.0
  %1454 = vmatprep.subr.mxu0 0.0
  %1455 = vmatpush1.msra.mxu0 0.0
  %1456 = vmatprep.subr.mxu0 0.0
  %1457 = vmatpush1.msra.mxu0 0.0
  %1458 = vmatprep.subr.mxu0 0.0
  %1459 = vmatpush1.msra.mxu0 0.0
  %1460 = vmatprep.subr.mxu0 0.0
  %1461 = vmatpush1.msra.mxu0 0.0
  %1462 = vmatprep.subr.mxu0 0.0
  %1463 = vmatpush1.msra.mxu0 0.0
  %1464 = vmatprep.subr.mxu0 0.0
  %1465 = vmatpush1.msra.mxu0 0.0
  %1466 = vmatprep.subr.mxu0 0.0
  %1467 = vmatpush1.msra.mxu0 0.0
  %1468 = vmatprep.subr.mxu0 0.0
  %1469 = vmatpush1.msra.mxu0 0.0
  %1470 = vmatprep.subr.mxu0 0.0
  %1471 = vmatpush1.msra.mxu0 0.0
  %1472 = vmatprep.subr.mxu0 0.0
  %1473 = vmatpush1.msra.mxu0 0.0
  %1474 = vmatprep.subr.mxu0 0.0
  %1475 = vmatpush1.msra.mxu0 0.0
  %1476 = vmatprep.subr.mxu0 0.0
  %1477 = vmatpush1.msra.mxu0 0.0
  %1478 = vmatprep.subr.mxu0 0.0
  %1479 = vmatpush1.msra.mxu0 0.0
  %1480 = vmatprep.mubr.f32.mxu0 0.0
  %1481 = vmatmul.mubr.f32.gmra.mrb[0].mxu0 %v1414
  %v1482 = vpop.f32.mrb[0].mxu0
  %v1483 = vadd.f32 0.0, %v1482
  %v1484 = vpop.f32.mrb[0].mxu0
  %1485 = vdwg.mxu0
  %v1486 = vadd.f32 %v1412, %v1483
  %v1487 = vtanh.pop %v1486
  %1488 = vst.msk [vmem:[#allocation2 + $0x11] sm:$0x1] %vm94, %v1487
  %v1489 = vld [vmem:[#allocation2 + $0x12] sm:$0x1]
  %v1491 = vsel %vm87, %v1487, 0
  %1493 = vmatprep.subr.mxu0 0.0
  %1494 = vmatpush1.msra.mxu0 %v96
  %1495 = vmatprep.subr.mxu0 0.0
  %1496 = vmatpush1.msra.mxu0 %v105
  %1497 = vmatprep.subr.mxu0 0.0
  %1498 = vmatpush1.msra.mxu0 0.0
  %1499 = vmatprep.subr.mxu0 0.0
  %1500 = vmatpush1.msra.mxu0 0.0
  %1501 = vmatprep.subr.mxu0 0.0
  %1502 = vmatpush1.msra.mxu0 0.0
  %1503 = vmatprep.subr.mxu0 0.0
  %1504 = vmatpush1.msra.mxu0 0.0
  %1505 = vmatprep.subr.mxu0 0.0
  %1506 = vmatpush1.msra.mxu0 0.0
  %1507 = vmatprep.subr.mxu0 0.0
  %1508 = vmatpush1.msra.mxu0 0.0
  %1509 = vmatprep.subr.mxu0 0.0
  %1510 = vmatpush1.msra.mxu0 0.0
  %1511 = vmatprep.subr.mxu0 0.0
  %1512 = vmatpush1.msra.mxu0 0.0
  %1513 = vmatprep.subr.mxu0 0.0
  %1514 = vmatpush1.msra.mxu0 0.0
  %1515 = vmatprep.subr.mxu0 0.0
  %1516 = vmatpush1.msra.mxu0 0.0
  %1517 = vmatprep.subr.mxu0 0.0
  %1518 = vmatpush1.msra.mxu0 0.0
  %1519 = vmatprep.subr.mxu0 0.0
  %1520 = vmatpush1.msra.mxu0 0.0
  %1521 = vmatprep.subr.mxu0 0.0
  %1522 = vmatpush1.msra.mxu0 0.0
  %1523 = vmatprep.subr.mxu0 0.0
  %1524 = vmatpush1.msra.mxu0 0.0
  %1525 = vmatprep.subr.mxu0 0.0
  %1526 = vmatpush1.msra.mxu0 0.0
  %1527 = vmatprep.subr.mxu0 0.0
  %1528 = vmatpush1.msra.mxu0 0.0
  %1529 = vmatprep.subr.mxu0 0.0
  %1530 = vmatpush1.msra.mxu0 0.0
  %1531 = vmatprep.subr.mxu0 0.0
  %1532 = vmatpush1.msra.mxu0 0.0
  %1533 = vmatprep.subr.mxu0 0.0
  %1534 = vmatpush1.msra.mxu0 0.0
  %1535 = vmatprep.subr.mxu0 0.0
  %1536 = vmatpush1.msra.mxu0 0.0
  %1537 = vmatprep.subr.mxu0 0.0
  %1538 = vmatpush1.msra.mxu0 0.0
  %1539 = vmatprep.subr.mxu0 0.0
  %1540 = vmatpush1.msra.mxu0 0.0
  %1541 = vmatprep.subr.mxu0 0.0
  %1542 = vmatpush1.msra.mxu0 0.0
  %1543 = vmatprep.subr.mxu0 0.0
  %1544 = vmatpush1.msra.mxu0 0.0
  %1545 = vmatprep.subr.mxu0 0.0
  %1546 = vmatpush1.msra.mxu0 0.0
  %1547 = vmatprep.subr.mxu0 0.0
  %1548 = vmatpush1.msra.mxu0 0.0
  %1549 = vmatprep.subr.mxu0 0.0
  %1550 = vmatpush1.msra.mxu0 0.0
  %1551 = vmatprep.subr.mxu0 0.0
  %1552 = vmatpush1.msra.mxu0 0.0
  %1553 = vmatprep.subr.mxu0 0.0
  %1554 = vmatpush1.msra.mxu0 0.0
  %1555 = vmatprep.subr.mxu0 0.0
  %1556 = vmatpush1.msra.mxu0 0.0
  %1557 = vmatprep.mubr.f32.mxu0 0.0
  %1558 = vmatmul.mubr.f32.gmra.mrb[0].mxu0 %v1491
  %v1559 = vpop.f32.mrb[0].mxu0
  %v1560 = vadd.f32 0.0, %v1559
  %v1561 = vpop.f32.mrb[0].mxu0
  %1562 = vdwg.mxu0
  %v1563 = vadd.f32 %v1489, %v1560
  %v1564 = vtanh.pop %v1563
  %1565 = vst.msk [vmem:[#allocation2 + $0x12] sm:$0x1] %vm94, %v1564
  %v1566 = vld [vmem:[#allocation2 + $0x13] sm:$0x1]
  %v1568 = vsel %vm87, %v1564, 0
  %1570 = vmatprep.subr.mxu0 0.0
  %1571 = vmatpush1.msra.mxu0 %v96
  %1572 = vmatprep.subr.mxu0 0.0
  %1573 = vmatpush1.msra.mxu0 %v105
  %1574 = vmatprep.subr.mxu0 0.0
  %1575 = vmatpush1.msra.mxu0 0.0
  %1576 = vmatprep.subr.mxu0 0.0
  %1577 = vmatpush1.msra.mxu0 0.0
  %1578 = vmatprep.subr.mxu0 0.0
  %1579 = vmatpush1.msra.mxu0 0.0
  %1580 = vmatprep.subr.mxu0 0.0
  %1581 = vmatpush1.msra.mxu0 0.0
  %1582 = vmatprep.subr.mxu0 0.0
  %1583 = vmatpush1.msra.mxu0 0.0
  %1584 = vmatprep.subr.mxu0 0.0
  %1585 = vmatpush1.msra.mxu0 0.0
  %1586 = vmatprep.subr.mxu0 0.0
  %1587 = vmatpush1.msra.mxu0 0.0
  %1588 = vmatprep.subr.mxu0 0.0
  %1589 = vmatpush1.msra.mxu0 0.0
  %1590 = vmatprep.subr.mxu0 0.0
  %1591 = vmatpush1.msra.mxu0 0.0
  %1592 = vmatprep.subr.mxu0 0.0
  %1593 = vmatpush1.msra.mxu0 0.0
  %1594 = vmatprep.subr.mxu0 0.0
  %1595 = vmatpush1.msra.mxu0 0.0
  %1596 = vmatprep.subr.mxu0 0.0
  %1597 = vmatpush1.msra.mxu0 0.0
  %1598 = vmatprep.subr.mxu0 0.0
  %1599 = vmatpush1.msra.mxu0 0.0
  %1600 = vmatprep.subr.mxu0 0.0
  %1601 = vmatpush1.msra.mxu0 0.0
  %1602 = vmatprep.subr.mxu0 0.0
  %1603 = vmatpush1.msra.mxu0 0.0
  %1604 = vmatprep.subr.mxu0 0.0
  %1605 = vmatpush1.msra.mxu0 0.0
  %1606 = vmatprep.subr.mxu0 0.0
  %1607 = vmatpush1.msra.mxu0 0.0
  %1608 = vmatprep.subr.mxu0 0.0
  %1609 = vmatpush1.msra.mxu0 0.0
  %1610 = vmatprep.subr.mxu0 0.0
  %1611 = vmatpush1.msra.mxu0 0.0
  %1612 = vmatprep.subr.mxu0 0.0
  %1613 = vmatpush1.msra.mxu0 0.0
  %1614 = vmatprep.subr.mxu0 0.0
  %1615 = vmatpush1.msra.mxu0 0.0
  %1616 = vmatprep.subr.mxu0 0.0
  %1617 = vmatpush1.msra.mxu0 0.0
  %1618 = vmatprep.subr.mxu0 0.0
  %1619 = vmatpush1.msra.mxu0 0.0
  %1620 = vmatprep.subr.mxu0 0.0
  %1621 = vmatpush1.msra.mxu0 0.0
  %1622 = vmatprep.subr.mxu0 0.0
  %1623 = vmatpush1.msra.mxu0 0.0
  %1624 = vmatprep.subr.mxu0 0.0
  %1625 = vmatpush1.msra.mxu0 0.0
  %1626 = vmatprep.subr.mxu0 0.0
  %1627 = vmatpush1.msra.mxu0 0.0
  %1628 = vmatprep.subr.mxu0 0.0
  %1629 = vmatpush1.msra.mxu0 0.0
  %1630 = vmatprep.subr.mxu0 0.0
  %1631 = vmatpush1.msra.mxu0 0.0
  %1632 = vmatprep.subr.mxu0 0.0
  %1633 = vmatpush1.msra.mxu0 0.0
  %1634 = vmatprep.mubr.f32.mxu0 0.0
  %1635 = vmatmul.mubr.f32.gmra.mrb[0].mxu0 %v1568
  %v1636 = vpop.f32.mrb[0].mxu0
  %v1637 = vadd.f32 0.0, %v1636
  %v1638 = vpop.f32.mrb[0].mxu0
  %1639 = vdwg.mxu0
  %v1640 = vadd.f32 %v1566, %v1637
  %v1641 = vtanh.pop %v1640
  %1642 = vst.msk [vmem:[#allocation2 + $0x13] sm:$0x1] %vm94, %v1641
  %v1643 = vld [vmem:[#allocation2 + $0x14] sm:$0x1]
  %v1645 = vsel %vm87, %v1641, 0
  %1647 = vmatprep.subr.mxu0 0.0
  %1648 = vmatpush1.msra.mxu0 %v96
  %1649 = vmatprep.subr.mxu0 0.0
  %1650 = vmatpush1.msra.mxu0 %v105
  %1651 = vmatprep.subr.mxu0 0.0
  %1652 = vmatpush1.msra.mxu0 0.0
  %1653 = vmatprep.subr.mxu0 0.0
  %1654 = vmatpush1.msra.mxu0 0.0
  %1655 = vmatprep.subr.mxu0 0.0
  %1656 = vmatpush1.msra.mxu0 0.0
  %1657 = vmatprep.subr.mxu0 0.0
  %1658 = vmatpush1.msra.mxu0 0.0
  %1659 = vmatprep.subr.mxu0 0.0
  %1660 = vmatpush1.msra.mxu0 0.0
  %1661 = vmatprep.subr.mxu0 0.0
  %1662 = vmatpush1.msra.mxu0 0.0
  %1663 = vmatprep.subr.mxu0 0.0
  %1664 = vmatpush1.msra.mxu0 0.0
  %1665 = vmatprep.subr.mxu0 0.0
  %1666 = vmatpush1.msra.mxu0 0.0
  %1667 = vmatprep.subr.mxu0 0.0
  %1668 = vmatpush1.msra.mxu0 0.0
  %1669 = vmatprep.subr.mxu0 0.0
  %1670 = vmatpush1.msra.mxu0 0.0
  %1671 = vmatprep.subr.mxu0 0.0
  %1672 = vmatpush1.msra.mxu0 0.0
  %1673 = vmatprep.subr.mxu0 0.0
  %1674 = vmatpush1.msra.mxu0 0.0
  %1675 = vmatprep.subr.mxu0 0.0
  %1676 = vmatpush1.msra.mxu0 0.0
  %1677 = vmatprep.subr.mxu0 0.0
  %1678 = vmatpush1.msra.mxu0 0.0
  %1679 = vmatprep.subr.mxu0 0.0
  %1680 = vmatpush1.msra.mxu0 0.0
  %1681 = vmatprep.subr.mxu0 0.0
  %1682 = vmatpush1.msra.mxu0 0.0
  %1683 = vmatprep.subr.mxu0 0.0
  %1684 = vmatpush1.msra.mxu0 0.0
  %1685 = vmatprep.subr.mxu0 0.0
  %1686 = vmatpush1.msra.mxu0 0.0
  %1687 = vmatprep.subr.mxu0 0.0
  %1688 = vmatpush1.msra.mxu0 0.0
  %1689 = vmatprep.subr.mxu0 0.0
  %1690 = vmatpush1.msra.mxu0 0.0
  %1691 = vmatprep.subr.mxu0 0.0
  %1692 = vmatpush1.msra.mxu0 0.0
  %1693 = vmatprep.subr.mxu0 0.0
  %1694 = vmatpush1.msra.mxu0 0.0
  %1695 = vmatprep.subr.mxu0 0.0
  %1696 = vmatpush1.msra.mxu0 0.0
  %1697 = vmatprep.subr.mxu0 0.0
  %1698 = vmatpush1.msra.mxu0 0.0
  %1699 = vmatprep.subr.mxu0 0.0
  %1700 = vmatpush1.msra.mxu0 0.0
  %1701 = vmatprep.subr.mxu0 0.0
  %1702 = vmatpush1.msra.mxu0 0.0
  %1703 = vmatprep.subr.mxu0 0.0
  %1704 = vmatpush1.msra.mxu0 0.0
  %1705 = vmatprep.subr.mxu0 0.0
  %1706 = vmatpush1.msra.mxu0 0.0
  %1707 = vmatprep.subr.mxu0 0.0
  %1708 = vmatpush1.msra.mxu0 0.0
  %1709 = vmatprep.subr.mxu0 0.0
  %1710 = vmatpush1.msra.mxu0 0.0
  %1711 = vmatprep.mubr.f32.mxu0 0.0
  %1712 = vmatmul.mubr.f32.gmra.mrb[0].mxu0 %v1645
  %v1713 = vpop.f32.mrb[0].mxu0
  %v1714 = vadd.f32 0.0, %v1713
  %v1715 = vpop.f32.mrb[0].mxu0
  %1716 = vdwg.mxu0
  %v1717 = vadd.f32 %v1643, %v1714
  %v1718 = vtanh.pop %v1717
  %1719 = vst.msk [vmem:[#allocation2 + $0x14] sm:$0x1] %vm94, %v1718
  %v1720 = vld [vmem:[#allocation2 + $0x15] sm:$0x1]
  %v1722 = vsel %vm87, %v1718, 0
  %1724 = vmatprep.subr.mxu0 0.0
  %1725 = vmatpush1.msra.mxu0 %v96
  %1726 = vmatprep.subr.mxu0 0.0
  %1727 = vmatpush1.msra.mxu0 %v105
  %1728 = vmatprep.subr.mxu0 0.0
  %1729 = vmatpush1.msra.mxu0 0.0
  %1730 = vmatprep.subr.mxu0 0.0
  %1731 = vmatpush1.msra.mxu0 0.0
  %1732 = vmatprep.subr.mxu0 0.0
  %1733 = vmatpush1.msra.mxu0 0.0
  %1734 = vmatprep.subr.mxu0 0.0
  %1735 = vmatpush1.msra.mxu0 0.0
  %1736 = vmatprep.subr.mxu0 0.0
  %1737 = vmatpush1.msra.mxu0 0.0
  %1738 = vmatprep.subr.mxu0 0.0
  %1739 = vmatpush1.msra.mxu0 0.0
  %1740 = vmatprep.subr.mxu0 0.0
  %1741 = vmatpush1.msra.mxu0 0.0
  %1742 = vmatprep.subr.mxu0 0.0
  %1743 = vmatpush1.msra.mxu0 0.0
  %1744 = vmatprep.subr.mxu0 0.0
  %1745 = vmatpush1.msra.mxu0 0.0
  %1746 = vmatprep.subr.mxu0 0.0
  %1747 = vmatpush1.msra.mxu0 0.0
  %1748 = vmatprep.subr.mxu0 0.0
  %1749 = vmatpush1.msra.mxu0 0.0
  %1750 = vmatprep.subr.mxu0 0.0
  %1751 = vmatpush1.msra.mxu0 0.0
  %1752 = vmatprep.subr.mxu0 0.0
  %1753 = vmatpush1.msra.mxu0 0.0
  %1754 = vmatprep.subr.mxu0 0.0
  %1755 = vmatpush1.msra.mxu0 0.0
  %1756 = vmatprep.subr.mxu0 0.0
  %1757 = vmatpush1.msra.mxu0 0.0
  %1758 = vmatprep.subr.mxu0 0.0
  %1759 = vmatpush1.msra.mxu0 0.0
  %1760 = vmatprep.subr.mxu0 0.0
  %1761 = vmatpush1.msra.mxu0 0.0
  %1762 = vmatprep.subr.mxu0 0.0
  %1763 = vmatpush1.msra.mxu0 0.0
  %1764 = vmatprep.subr.mxu0 0.0
  %1765 = vmatpush1.msra.mxu0 0.0
  %1766 = vmatprep.subr.mxu0 0.0
  %1767 = vmatpush1.msra.mxu0 0.0
  %1768 = vmatprep.subr.mxu0 0.0
  %1769 = vmatpush1.msra.mxu0 0.0
  %1770 = vmatprep.subr.mxu0 0.0
  %1771 = vmatpush1.msra.mxu0 0.0
  %1772 = vmatprep.subr.mxu0 0.0
  %1773 = vmatpush1.msra.mxu0 0.0
  %1774 = vmatprep.subr.mxu0 0.0
  %1775 = vmatpush1.msra.mxu0 0.0
  %1776 = vmatprep.subr.mxu0 0.0
  %1777 = vmatpush1.msra.mxu0 0.0
  %1778 = vmatprep.subr.mxu0 0.0
  %1779 = vmatpush1.msra.mxu0 0.0
  %1780 = vmatprep.subr.mxu0 0.0
  %1781 = vmatpush1.msra.mxu0 0.0
  %1782 = vmatprep.subr.mxu0 0.0
  %1783 = vmatpush1.msra.mxu0 0.0
  %1784 = vmatprep.subr.mxu0 0.0
  %1785 = vmatpush1.msra.mxu0 0.0
  %1786 = vmatprep.subr.mxu0 0.0
  %1787 = vmatpush1.msra.mxu0 0.0
  %1788 = vmatprep.mubr.f32.mxu0 0.0
  %1789 = vmatmul.mubr.f32.gmra.mrb[0].mxu0 %v1722
  %v1790 = vpop.f32.mrb[0].mxu0
  %v1791 = vadd.f32 0.0, %v1790
  %v1792 = vpop.f32.mrb[0].mxu0
  %1793 = vdwg.mxu0
  %v1794 = vadd.f32 %v1720, %v1791
  %v1795 = vtanh.pop %v1794
  %1796 = vst.msk [vmem:[#allocation2 + $0x15] sm:$0x1] %vm94, %v1795
  %v1797 = vld [vmem:[#allocation2 + $0x16] sm:$0x1]
  %v1799 = vsel %vm87, %v1795, 0
  %1801 = vmatprep.subr.mxu0 0.0
  %1802 = vmatpush1.msra.mxu0 %v96
  %1803 = vmatprep.subr.mxu0 0.0
  %1804 = vmatpush1.msra.mxu0 %v105
  %1805 = vmatprep.subr.mxu0 0.0
  %1806 = vmatpush1.msra.mxu0 0.0
  %1807 = vmatprep.subr.mxu0 0.0
  %1808 = vmatpush1.msra.mxu0 0.0
  %1809 = vmatprep.subr.mxu0 0.0
  %1810 = vmatpush1.msra.mxu0 0.0
  %1811 = vmatprep.subr.mxu0 0.0
  %1812 = vmatpush1.msra.mxu0 0.0
  %1813 = vmatprep.subr.mxu0 0.0
  %1814 = vmatpush1.msra.mxu0 0.0
  %1815 = vmatprep.subr.mxu0 0.0
  %1816 = vmatpush1.msra.mxu0 0.0
  %1817 = vmatprep.subr.mxu0 0.0
  %1818 = vmatpush1.msra.mxu0 0.0
  %1819 = vmatprep.subr.mxu0 0.0
  %1820 = vmatpush1.msra.mxu0 0.0
  %1821 = vmatprep.subr.mxu0 0.0
  %1822 = vmatpush1.msra.mxu0 0.0
  %1823 = vmatprep.subr.mxu0 0.0
  %1824 = vmatpush1.msra.mxu0 0.0
  %1825 = vmatprep.subr.mxu0 0.0
  %1826 = vmatpush1.msra.mxu0 0.0
  %1827 = vmatprep.subr.mxu0 0.0
  %1828 = vmatpush1.msra.mxu0 0.0
  %1829 = vmatprep.subr.mxu0 0.0
  %1830 = vmatpush1.msra.mxu0 0.0
  %1831 = vmatprep.subr.mxu0 0.0
  %1832 = vmatpush1.msra.mxu0 0.0
  %1833 = vmatprep.subr.mxu0 0.0
  %1834 = vmatpush1.msra.mxu0 0.0
  %1835 = vmatprep.subr.mxu0 0.0
  %1836 = vmatpush1.msra.mxu0 0.0
  %1837 = vmatprep.subr.mxu0 0.0
  %1838 = vmatpush1.msra.mxu0 0.0
  %1839 = vmatprep.subr.mxu0 0.0
  %1840 = vmatpush1.msra.mxu0 0.0
  %1841 = vmatprep.subr.mxu0 0.0
  %1842 = vmatpush1.msra.mxu0 0.0
  %1843 = vmatprep.subr.mxu0 0.0
  %1844 = vmatpush1.msra.mxu0 0.0
  %1845 = vmatprep.subr.mxu0 0.0
  %1846 = vmatpush1.msra.mxu0 0.0
  %1847 = vmatprep.subr.mxu0 0.0
  %1848 = vmatpush1.msra.mxu0 0.0
  %1849 = vmatprep.subr.mxu0 0.0
  %1850 = vmatpush1.msra.mxu0 0.0
  %1851 = vmatprep.subr.mxu0 0.0
  %1852 = vmatpush1.msra.mxu0 0.0
  %1853 = vmatprep.subr.mxu0 0.0
  %1854 = vmatpush1.msra.mxu0 0.0
  %1855 = vmatprep.subr.mxu0 0.0
  %1856 = vmatpush1.msra.mxu0 0.0
  %1857 = vmatprep.subr.mxu0 0.0
  %1858 = vmatpush1.msra.mxu0 0.0
  %1859 = vmatprep.subr.mxu0 0.0
  %1860 = vmatpush1.msra.mxu0 0.0
  %1861 = vmatprep.subr.mxu0 0.0
  %1862 = vmatpush1.msra.mxu0 0.0
  %1863 = vmatprep.subr.mxu0 0.0
  %1864 = vmatpush1.msra.mxu0 0.0
  %1865 = vmatprep.mubr.f32.mxu0 0.0
  %1866 = vmatmul.mubr.f32.gmra.mrb[0].mxu0 %v1799
  %v1867 = vpop.f32.mrb[0].mxu0
  %v1868 = vadd.f32 0.0, %v1867
  %v1869 = vpop.f32.mrb[0].mxu0
  %1870 = vdwg.mxu0
  %v1871 = vadd.f32 %v1797, %v1868
  %v1872 = vtanh.pop %v1871
  %1873 = vst.msk [vmem:[#allocation2 + $0x16] sm:$0x1] %vm94, %v1872
  %v1874 = vld [vmem:[#allocation2 + $0x17] sm:$0x1]
  %v1876 = vsel %vm87, %v1872, 0
  %1878 = vmatprep.subr.mxu0 0.0
  %1879 = vmatpush1.msra.mxu0 %v96
  %1880 = vmatprep.subr.mxu0 0.0
  %1881 = vmatpush1.msra.mxu0 %v105
  %1882 = vmatprep.subr.mxu0 0.0
  %1883 = vmatpush1.msra.mxu0 0.0
  %1884 = vmatprep.subr.mxu0 0.0
  %1885 = vmatpush1.msra.mxu0 0.0
  %1886 = vmatprep.subr.mxu0 0.0
  %1887 = vmatpush1.msra.mxu0 0.0
  %1888 = vmatprep.subr.mxu0 0.0
  %1889 = vmatpush1.msra.mxu0 0.0
  %1890 = vmatprep.subr.mxu0 0.0
  %1891 = vmatpush1.msra.mxu0 0.0
  %1892 = vmatprep.subr.mxu0 0.0
  %1893 = vmatpush1.msra.mxu0 0.0
  %1894 = vmatprep.subr.mxu0 0.0
  %1895 = vmatpush1.msra.mxu0 0.0
  %1896 = vmatprep.subr.mxu0 0.0
  %1897 = vmatpush1.msra.mxu0 0.0
  %1898 = vmatprep.subr.mxu0 0.0
  %1899 = vmatpush1.msra.mxu0 0.0
  %1900 = vmatprep.subr.mxu0 0.0
  %1901 = vmatpush1.msra.mxu0 0.0
  %1902 = vmatprep.subr.mxu0 0.0
  %1903 = vmatpush1.msra.mxu0 0.0
  %1904 = vmatprep.subr.mxu0 0.0
  %1905 = vmatpush1.msra.mxu0 0.0
  %1906 = vmatprep.subr.mxu0 0.0
  %1907 = vmatpush1.msra.mxu0 0.0
  %1908 = vmatprep.subr.mxu0 0.0
  %1909 = vmatpush1.msra.mxu0 0.0
  %1910 = vmatprep.subr.mxu0 0.0
  %1911 = vmatpush1.msra.mxu0 0.0
  %1912 = vmatprep.subr.mxu0 0.0
  %1913 = vmatpush1.msra.mxu0 0.0
  %1914 = vmatprep.subr.mxu0 0.0
  %1915 = vmatpush1.msra.mxu0 0.0
  %1916 = vmatprep.subr.mxu0 0.0
  %1917 = vmatpush1.msra.mxu0 0.0
  %1918 = vmatprep.subr.mxu0 0.0
  %1919 = vmatpush1.msra.mxu0 0.0
  %1920 = vmatprep.subr.mxu0 0.0
  %1921 = vmatpush1.msra.mxu0 0.0
  %1922 = vmatprep.subr.mxu0 0.0
  %1923 = vmatpush1.msra.mxu0 0.0
  %1924 = vmatprep.subr.mxu0 0.0
  %1925 = vmatpush1.msra.mxu0 0.0
  %1926 = vmatprep.subr.mxu0 0.0
  %1927 = vmatpush1.msra.mxu0 0.0
  %1928 = vmatprep.subr.mxu0 0.0
  %1929 = vmatpush1.msra.mxu0 0.0
  %1930 = vmatprep.subr.mxu0 0.0
  %1931 = vmatpush1.msra.mxu0 0.0
  %1932 = vmatprep.subr.mxu0 0.0
  %1933 = vmatpush1.msra.mxu0 0.0
  %1934 = vmatprep.subr.mxu0 0.0
  %1935 = vmatpush1.msra.mxu0 0.0
  %1936 = vmatprep.subr.mxu0 0.0
  %1937 = vmatpush1.msra.mxu0 0.0
  %1938 = vmatprep.subr.mxu0 0.0
  %1939 = vmatpush1.msra.mxu0 0.0
  %1940 = vmatprep.subr.mxu0 0.0
  %1941 = vmatpush1.msra.mxu0 0.0
  %1942 = vmatprep.mubr.f32.mxu0 0.0
  %1943 = vmatmul.mubr.f32.gmra.mrb[0].mxu0 %v1876
  %v1944 = vpop.f32.mrb[0].mxu0
  %v1945 = vadd.f32 0.0, %v1944
  %v1946 = vpop.f32.mrb[0].mxu0
  %1947 = vdwg.mxu0
  %v1948 = vadd.f32 %v1874, %v1945
  %v1949 = vtanh.pop %v1948
  %1950 = vst.msk [vmem:[#allocation2 + $0x17] sm:$0x1] %vm94, %v1949
  %v1951 = vld [vmem:[#allocation2 + $0x18] sm:$0x1]
  %v1953 = vsel %vm87, %v1949, 0
  %1955 = vmatprep.subr.mxu0 0.0
  %1956 = vmatpush1.msra.mxu0 %v96
  %1957 = vmatprep.subr.mxu0 0.0
  %1958 = vmatpush1.msra.mxu0 %v105
  %1959 = vmatprep.subr.mxu0 0.0
  %1960 = vmatpush1.msra.mxu0 0.0
  %1961 = vmatprep.subr.mxu0 0.0
  %1962 = vmatpush1.msra.mxu0 0.0
  %1963 = vmatprep.subr.mxu0 0.0
  %1964 = vmatpush1.msra.mxu0 0.0
  %1965 = vmatprep.subr.mxu0 0.0
  %1966 = vmatpush1.msra.mxu0 0.0
  %1967 = vmatprep.subr.mxu0 0.0
  %1968 = vmatpush1.msra.mxu0 0.0
  %1969 = vmatprep.subr.mxu0 0.0
  %1970 = vmatpush1.msra.mxu0 0.0
  %1971 = vmatprep.subr.mxu0 0.0
  %1972 = vmatpush1.msra.mxu0 0.0
  %1973 = vmatprep.subr.mxu0 0.0
  %1974 = vmatpush1.msra.mxu0 0.0
  %1975 = vmatprep.subr.mxu0 0.0
  %1976 = vmatpush1.msra.mxu0 0.0
  %1977 = vmatprep.subr.mxu0 0.0
  %1978 = vmatpush1.msra.mxu0 0.0
  %1979 = vmatprep.subr.mxu0 0.0
  %1980 = vmatpush1.msra.mxu0 0.0
  %1981 = vmatprep.subr.mxu0 0.0
  %1982 = vmatpush1.msra.mxu0 0.0
  %1983 = vmatprep.subr.mxu0 0.0
  %1984 = vmatpush1.msra.mxu0 0.0
  %1985 = vmatprep.subr.mxu0 0.0
  %1986 = vmatpush1.msra.mxu0 0.0
  %1987 = vmatprep.subr.mxu0 0.0
  %1988 = vmatpush1.msra.mxu0 0.0
  %1989 = vmatprep.subr.mxu0 0.0
  %1990 = vmatpush1.msra.mxu0 0.0
  %1991 = vmatprep.subr.mxu0 0.0
  %1992 = vmatpush1.msra.mxu0 0.0
  %1993 = vmatprep.subr.mxu0 0.0
  %1994 = vmatpush1.msra.mxu0 0.0
  %1995 = vmatprep.subr.mxu0 0.0
  %1996 = vmatpush1.msra.mxu0 0.0
  %1997 = vmatprep.subr.mxu0 0.0
  %1998 = vmatpush1.msra.mxu0 0.0
  %1999 = vmatprep.subr.mxu0 0.0
  %2000 = vmatpush1.msra.mxu0 0.0
  %2001 = vmatprep.subr.mxu0 0.0
  %2002 = vmatpush1.msra.mxu0 0.0
  %2003 = vmatprep.subr.mxu0 0.0
  %2004 = vmatpush1.msra.mxu0 0.0
  %2005 = vmatprep.subr.mxu0 0.0
  %2006 = vmatpush1.msra.mxu0 0.0
  %2007 = vmatprep.subr.mxu0 0.0
  %2008 = vmatpush1.msra.mxu0 0.0
  %2009 = vmatprep.subr.mxu0 0.0
  %2010 = vmatpush1.msra.mxu0 0.0
  %2011 = vmatprep.subr.mxu0 0.0
  %2012 = vmatpush1.msra.mxu0 0.0
  %2013 = vmatprep.subr.mxu0 0.0
  %2014 = vmatpush1.msra.mxu0 0.0
  %2015 = vmatprep.subr.mxu0 0.0
  %2016 = vmatpush1.msra.mxu0 0.0
  %2017 = vmatprep.subr.mxu0 0.0
  %2018 = vmatpush1.msra.mxu0 0.0
  %2019 = vmatprep.mubr.f32.mxu0 0.0
  %2020 = vmatmul.mubr.f32.gmra.mrb[0].mxu0 %v1953
  %v2021 = vpop.f32.mrb[0].mxu0
  %v2022 = vadd.f32 0.0, %v2021
  %v2023 = vpop.f32.mrb[0].mxu0
  %2024 = vdwg.mxu0
  %v2025 = vadd.f32 %v1951, %v2022
  %v2026 = vtanh.pop %v2025
  %2027 = vst.msk [vmem:[#allocation2 + $0x18] sm:$0x1] %vm94, %v2026
  %v2028 = vld [vmem:[#allocation2 + $0x19] sm:$0x1]
  %v2030 = vsel %vm87, %v2026, 0
  %2032 = vmatprep.subr.mxu0 0.0
  %2033 = vmatpush1.msra.mxu0 %v96
  %2034 = vmatprep.subr.mxu0 0.0
  %2035 = vmatpush1.msra.mxu0 %v105
  %2036 = vmatprep.subr.mxu0 0.0
  %2037 = vmatpush1.msra.mxu0 0.0
  %2038 = vmatprep.subr.mxu0 0.0
  %2039 = vmatpush1.msra.mxu0 0.0
  %2040 = vmatprep.subr.mxu0 0.0
  %2041 = vmatpush1.msra.mxu0 0.0
  %2042 = vmatprep.subr.mxu0 0.0
  %2043 = vmatpush1.msra.mxu0 0.0
  %2044 = vmatprep.subr.mxu0 0.0
  %2045 = vmatpush1.msra.mxu0 0.0
  %2046 = vmatprep.subr.mxu0 0.0
  %2047 = vmatpush1.msra.mxu0 0.0
  %2048 = vmatprep.subr.mxu0 0.0
  %2049 = vmatpush1.msra.mxu0 0.0
  %2050 = vmatprep.subr.mxu0 0.0
  %2051 = vmatpush1.msra.mxu0 0.0
  %2052 = vmatprep.subr.mxu0 0.0
  %2053 = vmatpush1.msra.mxu0 0.0
  %2054 = vmatprep.subr.mxu0 0.0
  %2055 = vmatpush1.msra.mxu0 0.0
  %2056 = vmatprep.subr.mxu0 0.0
  %2057 = vmatpush1.msra.mxu0 0.0
  %2058 = vmatprep.subr.mxu0 0.0
  %2059 = vmatpush1.msra.mxu0 0.0
  %2060 = vmatprep.subr.mxu0 0.0
  %2061 = vmatpush1.msra.mxu0 0.0
  %2062 = vmatprep.subr.mxu0 0.0
  %2063 = vmatpush1.msra.mxu0 0.0
  %2064 = vmatprep.subr.mxu0 0.0
  %2065 = vmatpush1.msra.mxu0 0.0
  %2066 = vmatprep.subr.mxu0 0.0
  %2067 = vmatpush1.msra.mxu0 0.0
  %2068 = vmatprep.subr.mxu0 0.0
  %2069 = vmatpush1.msra.mxu0 0.0
  %2070 = vmatprep.subr.mxu0 0.0
  %2071 = vmatpush1.msra.mxu0 0.0
  %2072 = vmatprep.subr.mxu0 0.0
  %2073 = vmatpush1.msra.mxu0 0.0
  %2074 = vmatprep.subr.mxu0 0.0
  %2075 = vmatpush1.msra.mxu0 0.0
  %2076 = vmatprep.subr.mxu0 0.0
  %2077 = vmatpush1.msra.mxu0 0.0
  %2078 = vmatprep.subr.mxu0 0.0
  %2079 = vmatpush1.msra.mxu0 0.0
  %2080 = vmatprep.subr.mxu0 0.0
  %2081 = vmatpush1.msra.mxu0 0.0
  %2082 = vmatprep.subr.mxu0 0.0
  %2083 = vmatpush1.msra.mxu0 0.0
  %2084 = vmatprep.subr.mxu0 0.0
  %2085 = vmatpush1.msra.mxu0 0.0
  %2086 = vmatprep.subr.mxu0 0.0
  %2087 = vmatpush1.msra.mxu0 0.0
  %2088 = vmatprep.subr.mxu0 0.0
  %2089 = vmatpush1.msra.mxu0 0.0
  %2090 = vmatprep.subr.mxu0 0.0
  %2091 = vmatpush1.msra.mxu0 0.0
  %2092 = vmatprep.subr.mxu0 0.0
  %2093 = vmatpush1.msra.mxu0 0.0
  %2094 = vmatprep.subr.mxu0 0.0
  %2095 = vmatpush1.msra.mxu0 0.0
  %2096 = vmatprep.mubr.f32.mxu0 0.0
  %2097 = vmatmul.mubr.f32.gmra.mrb[0].mxu0 %v2030
  %v2098 = vpop.f32.mrb[0].mxu0
  %v2099 = vadd.f32 0.0, %v2098
  %v2100 = vpop.f32.mrb[0].mxu0
  %2101 = vdwg.mxu0
  %v2102 = vadd.f32 %v2028, %v2099
  %v2103 = vtanh.pop %v2102
  %2104 = vst.msk [vmem:[#allocation2 + $0x19] sm:$0x1] %vm94, %v2103
  %v2105 = vld [vmem:[#allocation2 + $0x1a] sm:$0x1]
  %v2107 = vsel %vm87, %v2103, 0
  %2109 = vmatprep.subr.mxu0 0.0
  %2110 = vmatpush1.msra.mxu0 %v96
  %2111 = vmatprep.subr.mxu0 0.0
  %2112 = vmatpush1.msra.mxu0 %v105
  %2113 = vmatprep.subr.mxu0 0.0
  %2114 = vmatpush1.msra.mxu0 0.0
  %2115 = vmatprep.subr.mxu0 0.0
  %2116 = vmatpush1.msra.mxu0 0.0
  %2117 = vmatprep.subr.mxu0 0.0
  %2118 = vmatpush1.msra.mxu0 0.0
  %2119 = vmatprep.subr.mxu0 0.0
  %2120 = vmatpush1.msra.mxu0 0.0
  %2121 = vmatprep.subr.mxu0 0.0
  %2122 = vmatpush1.msra.mxu0 0.0
  %2123 = vmatprep.subr.mxu0 0.0
  %2124 = vmatpush1.msra.mxu0 0.0
  %2125 = vmatprep.subr.mxu0 0.0
  %2126 = vmatpush1.msra.mxu0 0.0
  %2127 = vmatprep.subr.mxu0 0.0
  %2128 = vmatpush1.msra.mxu0 0.0
  %2129 = vmatprep.subr.mxu0 0.0
  %2130 = vmatpush1.msra.mxu0 0.0
  %2131 = vmatprep.subr.mxu0 0.0
  %2132 = vmatpush1.msra.mxu0 0.0
  %2133 = vmatprep.subr.mxu0 0.0
  %2134 = vmatpush1.msra.mxu0 0.0
  %2135 = vmatprep.subr.mxu0 0.0
  %2136 = vmatpush1.msra.mxu0 0.0
  %2137 = vmatprep.subr.mxu0 0.0
  %2138 = vmatpush1.msra.mxu0 0.0
  %2139 = vmatprep.subr.mxu0 0.0
  %2140 = vmatpush1.msra.mxu0 0.0
  %2141 = vmatprep.subr.mxu0 0.0
  %2142 = vmatpush1.msra.mxu0 0.0
  %2143 = vmatprep.subr.mxu0 0.0
  %2144 = vmatpush1.msra.mxu0 0.0
  %2145 = vmatprep.subr.mxu0 0.0
  %2146 = vmatpush1.msra.mxu0 0.0
  %2147 = vmatprep.subr.mxu0 0.0
  %2148 = vmatpush1.msra.mxu0 0.0
  %2149 = vmatprep.subr.mxu0 0.0
  %2150 = vmatpush1.msra.mxu0 0.0
  %2151 = vmatprep.subr.mxu0 0.0
  %2152 = vmatpush1.msra.mxu0 0.0
  %2153 = vmatprep.subr.mxu0 0.0
  %2154 = vmatpush1.msra.mxu0 0.0
  %2155 = vmatprep.subr.mxu0 0.0
  %2156 = vmatpush1.msra.mxu0 0.0
  %2157 = vmatprep.subr.mxu0 0.0
  %2158 = vmatpush1.msra.mxu0 0.0
  %2159 = vmatprep.subr.mxu0 0.0
  %2160 = vmatpush1.msra.mxu0 0.0
  %2161 = vmatprep.subr.mxu0 0.0
  %2162 = vmatpush1.msra.mxu0 0.0
  %2163 = vmatprep.subr.mxu0 0.0
  %2164 = vmatpush1.msra.mxu0 0.0
  %2165 = vmatprep.subr.mxu0 0.0
  %2166 = vmatpush1.msra.mxu0 0.0
  %2167 = vmatprep.subr.mxu0 0.0
  %2168 = vmatpush1.msra.mxu0 0.0
  %2169 = vmatprep.subr.mxu0 0.0
  %2170 = vmatpush1.msra.mxu0 0.0
  %2171 = vmatprep.subr.mxu0 0.0
  %2172 = vmatpush1.msra.mxu0 0.0
  %2173 = vmatprep.mubr.f32.mxu0 0.0
  %2174 = vmatmul.mubr.f32.gmra.mrb[0].mxu0 %v2107
  %v2175 = vpop.f32.mrb[0].mxu0
  %v2176 = vadd.f32 0.0, %v2175
  %v2177 = vpop.f32.mrb[0].mxu0
  %2178 = vdwg.mxu0
  %v2179 = vadd.f32 %v2105, %v2176
  %v2180 = vtanh.pop %v2179
  %2181 = vst.msk [vmem:[#allocation2 + $0x1a] sm:$0x1] %vm94, %v2180
  %v2182 = vld [vmem:[#allocation2 + $0x1b] sm:$0x1]
  %v2184 = vsel %vm87, %v2180, 0
  %2186 = vmatprep.subr.mxu0 0.0
  %2187 = vmatpush1.msra.mxu0 %v96
  %2188 = vmatprep.subr.mxu0 0.0
  %2189 = vmatpush1.msra.mxu0 %v105
  %2190 = vmatprep.subr.mxu0 0.0
  %2191 = vmatpush1.msra.mxu0 0.0
  %2192 = vmatprep.subr.mxu0 0.0
  %2193 = vmatpush1.msra.mxu0 0.0
  %2194 = vmatprep.subr.mxu0 0.0
  %2195 = vmatpush1.msra.mxu0 0.0
  %2196 = vmatprep.subr.mxu0 0.0
  %2197 = vmatpush1.msra.mxu0 0.0
  %2198 = vmatprep.subr.mxu0 0.0
  %2199 = vmatpush1.msra.mxu0 0.0
  %2200 = vmatprep.subr.mxu0 0.0
  %2201 = vmatpush1.msra.mxu0 0.0
  %2202 = vmatprep.subr.mxu0 0.0
  %2203 = vmatpush1.msra.mxu0 0.0
  %2204 = vmatprep.subr.mxu0 0.0
  %2205 = vmatpush1.msra.mxu0 0.0
  %2206 = vmatprep.subr.mxu0 0.0
  %2207 = vmatpush1.msra.mxu0 0.0
  %2208 = vmatprep.subr.mxu0 0.0
  %2209 = vmatpush1.msra.mxu0 0.0
  %2210 = vmatprep.subr.mxu0 0.0
  %2211 = vmatpush1.msra.mxu0 0.0
  %2212 = vmatprep.subr.mxu0 0.0
  %2213 = vmatpush1.msra.mxu0 0.0
  %2214 = vmatprep.subr.mxu0 0.0
  %2215 = vmatpush1.msra.mxu0 0.0
  %2216 = vmatprep.subr.mxu0 0.0
  %2217 = vmatpush1.msra.mxu0 0.0
  %2218 = vmatprep.subr.mxu0 0.0
  %2219 = vmatpush1.msra.mxu0 0.0
  %2220 = vmatprep.subr.mxu0 0.0
  %2221 = vmatpush1.msra.mxu0 0.0
  %2222 = vmatprep.subr.mxu0 0.0
  %2223 = vmatpush1.msra.mxu0 0.0
  %2224 = vmatprep.subr.mxu0 0.0
  %2225 = vmatpush1.msra.mxu0 0.0
  %2226 = vmatprep.subr.mxu0 0.0
  %2227 = vmatpush1.msra.mxu0 0.0
  %2228 = vmatprep.subr.mxu0 0.0
  %2229 = vmatpush1.msra.mxu0 0.0
  %2230 = vmatprep.subr.mxu0 0.0
  %2231 = vmatpush1.msra.mxu0 0.0
  %2232 = vmatprep.subr.mxu0 0.0
  %2233 = vmatpush1.msra.mxu0 0.0
  %2234 = vmatprep.subr.mxu0 0.0
  %2235 = vmatpush1.msra.mxu0 0.0
  %2236 = vmatprep.subr.mxu0 0.0
  %2237 = vmatpush1.msra.mxu0 0.0
  %2238 = vmatprep.subr.mxu0 0.0
  %2239 = vmatpush1.msra.mxu0 0.0
  %2240 = vmatprep.subr.mxu0 0.0
  %2241 = vmatpush1.msra.mxu0 0.0
  %2242 = vmatprep.subr.mxu0 0.0
  %2243 = vmatpush1.msra.mxu0 0.0
  %2244 = vmatprep.subr.mxu0 0.0
  %2245 = vmatpush1.msra.mxu0 0.0
  %2246 = vmatprep.subr.mxu0 0.0
  %2247 = vmatpush1.msra.mxu0 0.0
  %2248 = vmatprep.subr.mxu0 0.0
  %2249 = vmatpush1.msra.mxu0 0.0
  %2250 = vmatprep.mubr.f32.mxu0 0.0
  %2251 = vmatmul.mubr.f32.gmra.mrb[0].mxu0 %v2184
  %v2252 = vpop.f32.mrb[0].mxu0
  %v2253 = vadd.f32 0.0, %v2252
  %v2254 = vpop.f32.mrb[0].mxu0
  %2255 = vdwg.mxu0
  %v2256 = vadd.f32 %v2182, %v2253
  %v2257 = vtanh.pop %v2256
  %2258 = vst.msk [vmem:[#allocation2 + $0x1b] sm:$0x1] %vm94, %v2257
  %v2259 = vld [vmem:[#allocation2 + $0x1c] sm:$0x1]
  %v2261 = vsel %vm87, %v2257, 0
  %2263 = vmatprep.subr.mxu0 0.0
  %2264 = vmatpush1.msra.mxu0 %v96
  %2265 = vmatprep.subr.mxu0 0.0
  %2266 = vmatpush1.msra.mxu0 %v105
  %2267 = vmatprep.subr.mxu0 0.0
  %2268 = vmatpush1.msra.mxu0 0.0
  %2269 = vmatprep.subr.mxu0 0.0
  %2270 = vmatpush1.msra.mxu0 0.0
  %2271 = vmatprep.subr.mxu0 0.0
  %2272 = vmatpush1.msra.mxu0 0.0
  %2273 = vmatprep.subr.mxu0 0.0
  %2274 = vmatpush1.msra.mxu0 0.0
  %2275 = vmatprep.subr.mxu0 0.0
  %2276 = vmatpush1.msra.mxu0 0.0
  %2277 = vmatprep.subr.mxu0 0.0
  %2278 = vmatpush1.msra.mxu0 0.0
  %2279 = vmatprep.subr.mxu0 0.0
  %2280 = vmatpush1.msra.mxu0 0.0
  %2281 = vmatprep.subr.mxu0 0.0
  %2282 = vmatpush1.msra.mxu0 0.0
  %2283 = vmatprep.subr.mxu0 0.0
  %2284 = vmatpush1.msra.mxu0 0.0
  %2285 = vmatprep.subr.mxu0 0.0
  %2286 = vmatpush1.msra.mxu0 0.0
  %2287 = vmatprep.subr.mxu0 0.0
  %2288 = vmatpush1.msra.mxu0 0.0
  %2289 = vmatprep.subr.mxu0 0.0
  %2290 = vmatpush1.msra.mxu0 0.0
  %2291 = vmatprep.subr.mxu0 0.0
  %2292 = vmatpush1.msra.mxu0 0.0
  %2293 = vmatprep.subr.mxu0 0.0
  %2294 = vmatpush1.msra.mxu0 0.0
  %2295 = vmatprep.subr.mxu0 0.0
  %2296 = vmatpush1.msra.mxu0 0.0
  %2297 = vmatprep.subr.mxu0 0.0
  %2298 = vmatpush1.msra.mxu0 0.0
  %2299 = vmatprep.subr.mxu0 0.0
  %2300 = vmatpush1.msra.mxu0 0.0
  %2301 = vmatprep.subr.mxu0 0.0
  %2302 = vmatpush1.msra.mxu0 0.0
  %2303 = vmatprep.subr.mxu0 0.0
  %2304 = vmatpush1.msra.mxu0 0.0
  %2305 = vmatprep.subr.mxu0 0.0
  %2306 = vmatpush1.msra.mxu0 0.0
  %2307 = vmatprep.subr.mxu0 0.0
  %2308 = vmatpush1.msra.mxu0 0.0
  %2309 = vmatprep.subr.mxu0 0.0
  %2310 = vmatpush1.msra.mxu0 0.0
  %2311 = vmatprep.subr.mxu0 0.0
  %2312 = vmatpush1.msra.mxu0 0.0
  %2313 = vmatprep.subr.mxu0 0.0
  %2314 = vmatpush1.msra.mxu0 0.0
  %2315 = vmatprep.subr.mxu0 0.0
  %2316 = vmatpush1.msra.mxu0 0.0
  %2317 = vmatprep.subr.mxu0 0.0
  %2318 = vmatpush1.msra.mxu0 0.0
  %2319 = vmatprep.subr.mxu0 0.0
  %2320 = vmatpush1.msra.mxu0 0.0
  %2321 = vmatprep.subr.mxu0 0.0
  %2322 = vmatpush1.msra.mxu0 0.0
  %2323 = vmatprep.subr.mxu0 0.0
  %2324 = vmatpush1.msra.mxu0 0.0
  %2325 = vmatprep.subr.mxu0 0.0
  %2326 = vmatpush1.msra.mxu0 0.0
  %2327 = vmatprep.mubr.f32.mxu0 0.0
  %2328 = vmatmul.mubr.f32.gmra.mrb[0].mxu0 %v2261
  %v2329 = vpop.f32.mrb[0].mxu0
  %v2330 = vadd.f32 0.0, %v2329
  %v2331 = vpop.f32.mrb[0].mxu0
  %2332 = vdwg.mxu0
  %v2333 = vadd.f32 %v2259, %v2330
  %v2334 = vtanh.pop %v2333
  %2335 = vst.msk [vmem:[#allocation2 + $0x1c] sm:$0x1] %vm94, %v2334
  %v2336 = vld [vmem:[#allocation2 + $0x1d] sm:$0x1]
  %v2338 = vsel %vm87, %v2334, 0
  %2340 = vmatprep.subr.mxu0 0.0
  %2341 = vmatpush1.msra.mxu0 %v96
  %2342 = vmatprep.subr.mxu0 0.0
  %2343 = vmatpush1.msra.mxu0 %v105
  %2344 = vmatprep.subr.mxu0 0.0
  %2345 = vmatpush1.msra.mxu0 0.0
  %2346 = vmatprep.subr.mxu0 0.0
  %2347 = vmatpush1.msra.mxu0 0.0
  %2348 = vmatprep.subr.mxu0 0.0
  %2349 = vmatpush1.msra.mxu0 0.0
  %2350 = vmatprep.subr.mxu0 0.0
  %2351 = vmatpush1.msra.mxu0 0.0
  %2352 = vmatprep.subr.mxu0 0.0
  %2353 = vmatpush1.msra.mxu0 0.0
  %2354 = vmatprep.subr.mxu0 0.0
  %2355 = vmatpush1.msra.mxu0 0.0
  %2356 = vmatprep.subr.mxu0 0.0
  %2357 = vmatpush1.msra.mxu0 0.0
  %2358 = vmatprep.subr.mxu0 0.0
  %2359 = vmatpush1.msra.mxu0 0.0
  %2360 = vmatprep.subr.mxu0 0.0
  %2361 = vmatpush1.msra.mxu0 0.0
  %2362 = vmatprep.subr.mxu0 0.0
  %2363 = vmatpush1.msra.mxu0 0.0
  %2364 = vmatprep.subr.mxu0 0.0
  %2365 = vmatpush1.msra.mxu0 0.0
  %2366 = vmatprep.subr.mxu0 0.0
  %2367 = vmatpush1.msra.mxu0 0.0
  %2368 = vmatprep.subr.mxu0 0.0
  %2369 = vmatpush1.msra.mxu0 0.0
  %2370 = vmatprep.subr.mxu0 0.0
  %2371 = vmatpush1.msra.mxu0 0.0
  %2372 = vmatprep.subr.mxu0 0.0
  %2373 = vmatpush1.msra.mxu0 0.0
  %2374 = vmatprep.subr.mxu0 0.0
  %2375 = vmatpush1.msra.mxu0 0.0
  %2376 = vmatprep.subr.mxu0 0.0
  %2377 = vmatpush1.msra.mxu0 0.0
  %2378 = vmatprep.subr.mxu0 0.0
  %2379 = vmatpush1.msra.mxu0 0.0
  %2380 = vmatprep.subr.mxu0 0.0
  %2381 = vmatpush1.msra.mxu0 0.0
  %2382 = vmatprep.subr.mxu0 0.0
  %2383 = vmatpush1.msra.mxu0 0.0
  %2384 = vmatprep.subr.mxu0 0.0
  %2385 = vmatpush1.msra.mxu0 0.0
  %2386 = vmatprep.subr.mxu0 0.0
  %2387 = vmatpush1.msra.mxu0 0.0
  %2388 = vmatprep.subr.mxu0 0.0
  %2389 = vmatpush1.msra.mxu0 0.0
  %2390 = vmatprep.subr.mxu0 0.0
  %2391 = vmatpush1.msra.mxu0 0.0
  %2392 = vmatprep.subr.mxu0 0.0
  %2393 = vmatpush1.msra.mxu0 0.0
  %2394 = vmatprep.subr.mxu0 0.0
  %2395 = vmatpush1.msra.mxu0 0.0
  %2396 = vmatprep.subr.mxu0 0.0
  %2397 = vmatpush1.msra.mxu0 0.0
  %2398 = vmatprep.subr.mxu0 0.0
  %2399 = vmatpush1.msra.mxu0 0.0
  %2400 = vmatprep.subr.mxu0 0.0
  %2401 = vmatpush1.msra.mxu0 0.0
  %2402 = vmatprep.subr.mxu0 0.0
  %2403 = vmatpush1.msra.mxu0 0.0
  %2404 = vmatprep.mubr.f32.mxu0 0.0
  %2405 = vmatmul.mubr.f32.gmra.mrb[0].mxu0 %v2338
  %v2406 = vpop.f32.mrb[0].mxu0
  %v2407 = vadd.f32 0.0, %v2406
  %v2408 = vpop.f32.mrb[0].mxu0
  %2409 = vdwg.mxu0
  %v2410 = vadd.f32 %v2336, %v2407
  %v2411 = vtanh.pop %v2410
  %2412 = vst.msk [vmem:[#allocation2 + $0x1d] sm:$0x1] %vm94, %v2411
  %v2413 = vld [vmem:[#allocation2 + $0x1e] sm:$0x1]
  %v2415 = vsel %vm87, %v2411, 0
  %2417 = vmatprep.subr.mxu0 0.0
  %2418 = vmatpush1.msra.mxu0 %v96
  %2419 = vmatprep.subr.mxu0 0.0
  %2420 = vmatpush1.msra.mxu0 %v105
  %2421 = vmatprep.subr.mxu0 0.0
  %2422 = vmatpush1.msra.mxu0 0.0
  %2423 = vmatprep.subr.mxu0 0.0
  %2424 = vmatpush1.msra.mxu0 0.0
  %2425 = vmatprep.subr.mxu0 0.0
  %2426 = vmatpush1.msra.mxu0 0.0
  %2427 = vmatprep.subr.mxu0 0.0
  %2428 = vmatpush1.msra.mxu0 0.0
  %2429 = vmatprep.subr.mxu0 0.0
  %2430 = vmatpush1.msra.mxu0 0.0
  %2431 = vmatprep.subr.mxu0 0.0
  %2432 = vmatpush1.msra.mxu0 0.0
  %2433 = vmatprep.subr.mxu0 0.0
  %2434 = vmatpush1.msra.mxu0 0.0
  %2435 = vmatprep.subr.mxu0 0.0
  %2436 = vmatpush1.msra.mxu0 0.0
  %2437 = vmatprep.subr.mxu0 0.0
  %2438 = vmatpush1.msra.mxu0 0.0
  %2439 = vmatprep.subr.mxu0 0.0
  %2440 = vmatpush1.msra.mxu0 0.0
  %2441 = vmatprep.subr.mxu0 0.0
  %2442 = vmatpush1.msra.mxu0 0.0
  %2443 = vmatprep.subr.mxu0 0.0
  %2444 = vmatpush1.msra.mxu0 0.0
  %2445 = vmatprep.subr.mxu0 0.0
  %2446 = vmatpush1.msra.mxu0 0.0
  %2447 = vmatprep.subr.mxu0 0.0
  %2448 = vmatpush1.msra.mxu0 0.0
  %2449 = vmatprep.subr.mxu0 0.0
  %2450 = vmatpush1.msra.mxu0 0.0
  %2451 = vmatprep.subr.mxu0 0.0
  %2452 = vmatpush1.msra.mxu0 0.0
  %2453 = vmatprep.subr.mxu0 0.0
  %2454 = vmatpush1.msra.mxu0 0.0
  %2455 = vmatprep.subr.mxu0 0.0
  %2456 = vmatpush1.msra.mxu0 0.0
  %2457 = vmatprep.subr.mxu0 0.0
  %2458 = vmatpush1.msra.mxu0 0.0
  %2459 = vmatprep.subr.mxu0 0.0
  %2460 = vmatpush1.msra.mxu0 0.0
  %2461 = vmatprep.subr.mxu0 0.0
  %2462 = vmatpush1.msra.mxu0 0.0
  %2463 = vmatprep.subr.mxu0 0.0
  %2464 = vmatpush1.msra.mxu0 0.0
  %2465 = vmatprep.subr.mxu0 0.0
  %2466 = vmatpush1.msra.mxu0 0.0
  %2467 = vmatprep.subr.mxu0 0.0
  %2468 = vmatpush1.msra.mxu0 0.0
  %2469 = vmatprep.subr.mxu0 0.0
  %2470 = vmatpush1.msra.mxu0 0.0
  %2471 = vmatprep.subr.mxu0 0.0
  %2472 = vmatpush1.msra.mxu0 0.0
  %2473 = vmatprep.subr.mxu0 0.0
  %2474 = vmatpush1.msra.mxu0 0.0
  %2475 = vmatprep.subr.mxu0 0.0
  %2476 = vmatpush1.msra.mxu0 0.0
  %2477 = vmatprep.subr.mxu0 0.0
  %2478 = vmatpush1.msra.mxu0 0.0
  %2479 = vmatprep.subr.mxu0 0.0
  %2480 = vmatpush1.msra.mxu0 0.0
  %2481 = vmatprep.mubr.f32.mxu0 0.0
  %2482 = vmatmul.mubr.f32.gmra.mrb[0].mxu0 %v2415
  %v2483 = vpop.f32.mrb[0].mxu0
  %v2484 = vadd.f32 0.0, %v2483
  %v2485 = vpop.f32.mrb[0].mxu0
  %2486 = vdwg.mxu0
  %v2487 = vadd.f32 %v2413, %v2484
  %v2488 = vtanh.pop %v2487
  %2489 = vst.msk [vmem:[#allocation2 + $0x1e] sm:$0x1] %vm94, %v2488
  %v2490 = vld [vmem:[#allocation2 + $0x1f] sm:$0x1]
  %v2492 = vsel %vm87, %v2488, 0
  %2494 = vmatprep.subr.mxu0 0.0
  %2495 = vmatpush1.msra.mxu0 %v96
  %2496 = vmatprep.subr.mxu0 0.0
  %2497 = vmatpush1.msra.mxu0 %v105
  %2498 = vmatprep.subr.mxu0 0.0
  %2499 = vmatpush1.msra.mxu0 0.0
  %2500 = vmatprep.subr.mxu0 0.0
  %2501 = vmatpush1.msra.mxu0 0.0
  %2502 = vmatprep.subr.mxu0 0.0
  %2503 = vmatpush1.msra.mxu0 0.0
  %2504 = vmatprep.subr.mxu0 0.0
  %2505 = vmatpush1.msra.mxu0 0.0
  %2506 = vmatprep.subr.mxu0 0.0
  %2507 = vmatpush1.msra.mxu0 0.0
  %2508 = vmatprep.subr.mxu0 0.0
  %2509 = vmatpush1.msra.mxu0 0.0
  %2510 = vmatprep.subr.mxu0 0.0
  %2511 = vmatpush1.msra.mxu0 0.0
  %2512 = vmatprep.subr.mxu0 0.0
  %2513 = vmatpush1.msra.mxu0 0.0
  %2514 = vmatprep.subr.mxu0 0.0
  %2515 = vmatpush1.msra.mxu0 0.0
  %2516 = vmatprep.subr.mxu0 0.0
  %2517 = vmatpush1.msra.mxu0 0.0
  %2518 = vmatprep.subr.mxu0 0.0
  %2519 = vmatpush1.msra.mxu0 0.0
  %2520 = vmatprep.subr.mxu0 0.0
  %2521 = vmatpush1.msra.mxu0 0.0
  %2522 = vmatprep.subr.mxu0 0.0
  %2523 = vmatpush1.msra.mxu0 0.0
  %2524 = vmatprep.subr.mxu0 0.0
  %2525 = vmatpush1.msra.mxu0 0.0
  %2526 = vmatprep.subr.mxu0 0.0
  %2527 = vmatpush1.msra.mxu0 0.0
  %2528 = vmatprep.subr.mxu0 0.0
  %2529 = vmatpush1.msra.mxu0 0.0
  %2530 = vmatprep.subr.mxu0 0.0
  %2531 = vmatpush1.msra.mxu0 0.0
  %2532 = vmatprep.subr.mxu0 0.0
  %2533 = vmatpush1.msra.mxu0 0.0
  %2534 = vmatprep.subr.mxu0 0.0
  %2535 = vmatpush1.msra.mxu0 0.0
  %2536 = vmatprep.subr.mxu0 0.0
  %2537 = vmatpush1.msra.mxu0 0.0
  %2538 = vmatprep.subr.mxu0 0.0
  %2539 = vmatpush1.msra.mxu0 0.0
  %2540 = vmatprep.subr.mxu0 0.0
  %2541 = vmatpush1.msra.mxu0 0.0
  %2542 = vmatprep.subr.mxu0 0.0
  %2543 = vmatpush1.msra.mxu0 0.0
  %2544 = vmatprep.subr.mxu0 0.0
  %2545 = vmatpush1.msra.mxu0 0.0
  %2546 = vmatprep.subr.mxu0 0.0
  %2547 = vmatpush1.msra.mxu0 0.0
  %2548 = vmatprep.subr.mxu0 0.0
  %2549 = vmatpush1.msra.mxu0 0.0
  %2550 = vmatprep.subr.mxu0 0.0
  %2551 = vmatpush1.msra.mxu0 0.0
  %2552 = vmatprep.subr.mxu0 0.0
  %2553 = vmatpush1.msra.mxu0 0.0
  %2554 = vmatprep.subr.mxu0 0.0
  %2555 = vmatpush1.msra.mxu0 0.0
  %2556 = vmatprep.subr.mxu0 0.0
  %2557 = vmatpush1.msra.mxu0 0.0
  %2558 = vmatprep.mubr.f32.mxu0 0.0
  %2559 = vmatmul.mubr.f32.gmra.mrb[0].mxu0 %v2492
  %v2560 = vpop.f32.mrb[0].mxu0
  %v2561 = vadd.f32 0.0, %v2560
  %v2562 = vpop.f32.mrb[0].mxu0
  %2563 = vdwg.mxu0
  %v2564 = vadd.f32 %v2490, %v2561
  %v2565 = vtanh.pop %v2564
  %2566 = vst.msk [vmem:[#allocation2 + $0x1f] sm:$0x1] %vm94, %v2565
  %v2567 = vld [vmem:[#allocation2 + $0x20] sm:$0x1]
  %v2569 = vsel %vm87, %v2565, 0
  %2571 = vmatprep.subr.mxu0 0.0
  %2572 = vmatpush1.msra.mxu0 %v96
  %2573 = vmatprep.subr.mxu0 0.0
  %2574 = vmatpush1.msra.mxu0 %v105
  %2575 = vmatprep.subr.mxu0 0.0
  %2576 = vmatpush1.msra.mxu0 0.0
  %2577 = vmatprep.subr.mxu0 0.0
  %2578 = vmatpush1.msra.mxu0 0.0
  %2579 = vmatprep.subr.mxu0 0.0
  %2580 = vmatpush1.msra.mxu0 0.0
  %2581 = vmatprep.subr.mxu0 0.0
  %2582 = vmatpush1.msra.mxu0 0.0
  %2583 = vmatprep.subr.mxu0 0.0
  %2584 = vmatpush1.msra.mxu0 0.0
  %2585 = vmatprep.subr.mxu0 0.0
  %2586 = vmatpush1.msra.mxu0 0.0
  %2587 = vmatprep.subr.mxu0 0.0
  %2588 = vmatpush1.msra.mxu0 0.0
  %2589 = vmatprep.subr.mxu0 0.0
  %2590 = vmatpush1.msra.mxu0 0.0
  %2591 = vmatprep.subr.mxu0 0.0
  %2592 = vmatpush1.msra.mxu0 0.0
  %2593 = vmatprep.subr.mxu0 0.0
  %2594 = vmatpush1.msra.mxu0 0.0
  %2595 = vmatprep.subr.mxu0 0.0
  %2596 = vmatpush1.msra.mxu0 0.0
  %2597 = vmatprep.subr.mxu0 0.0
  %2598 = vmatpush1.msra.mxu0 0.0
  %2599 = vmatprep.subr.mxu0 0.0
  %2600 = vmatpush1.msra.mxu0 0.0
  %2601 = vmatprep.subr.mxu0 0.0
  %2602 = vmatpush1.msra.mxu0 0.0
  %2603 = vmatprep.subr.mxu0 0.0
  %2604 = vmatpush1.msra.mxu0 0.0
  %2605 = vmatprep.subr.mxu0 0.0
  %2606 = vmatpush1.msra.mxu0 0.0
  %2607 = vmatprep.subr.mxu0 0.0
  %2608 = vmatpush1.msra.mxu0 0.0
  %2609 = vmatprep.subr.mxu0 0.0
  %2610 = vmatpush1.msra.mxu0 0.0
  %2611 = vmatprep.subr.mxu0 0.0
  %2612 = vmatpush1.msra.mxu0 0.0
  %2613 = vmatprep.subr.mxu0 0.0
  %2614 = vmatpush1.msra.mxu0 0.0
  %2615 = vmatprep.subr.mxu0 0.0
  %2616 = vmatpush1.msra.mxu0 0.0
  %2617 = vmatprep.subr.mxu0 0.0
  %2618 = vmatpush1.msra.mxu0 0.0
  %2619 = vmatprep.subr.mxu0 0.0
  %2620 = vmatpush1.msra.mxu0 0.0
  %2621 = vmatprep.subr.mxu0 0.0
  %2622 = vmatpush1.msra.mxu0 0.0
  %2623 = vmatprep.subr.mxu0 0.0
  %2624 = vmatpush1.msra.mxu0 0.0
  %2625 = vmatprep.subr.mxu0 0.0
  %2626 = vmatpush1.msra.mxu0 0.0
  %2627 = vmatprep.subr.mxu0 0.0
  %2628 = vmatpush1.msra.mxu0 0.0
  %2629 = vmatprep.subr.mxu0 0.0
  %2630 = vmatpush1.msra.mxu0 0.0
  %2631 = vmatprep.subr.mxu0 0.0
  %2632 = vmatpush1.msra.mxu0 0.0
  %2633 = vmatprep.subr.mxu0 0.0
  %2634 = vmatpush1.msra.mxu0 0.0
  %2635 = vmatprep.mubr.f32.mxu0 0.0
  %2636 = vmatmul.mubr.f32.gmra.mrb[0].mxu0 %v2569
  %v2637 = vpop.f32.mrb[0].mxu0
  %v2638 = vadd.f32 0.0, %v2637
  %v2639 = vpop.f32.mrb[0].mxu0
  %2640 = vdwg.mxu0
  %v2641 = vadd.f32 %v2567, %v2638
  %v2642 = vtanh.pop %v2641
  %2643 = vst.msk [vmem:[#allocation2 + $0x20] sm:$0x1] %vm94, %v2642
  %v2644 = vld [vmem:[#allocation2 + $0x21] sm:$0x1]
  %v2646 = vsel %vm87, %v2642, 0
  %2648 = vmatprep.subr.mxu0 0.0
  %2649 = vmatpush1.msra.mxu0 %v96
  %2650 = vmatprep.subr.mxu0 0.0
  %2651 = vmatpush1.msra.mxu0 %v105
  %2652 = vmatprep.subr.mxu0 0.0
  %2653 = vmatpush1.msra.mxu0 0.0
  %2654 = vmatprep.subr.mxu0 0.0
  %2655 = vmatpush1.msra.mxu0 0.0
  %2656 = vmatprep.subr.mxu0 0.0
  %2657 = vmatpush1.msra.mxu0 0.0
  %2658 = vmatprep.subr.mxu0 0.0
  %2659 = vmatpush1.msra.mxu0 0.0
  %2660 = vmatprep.subr.mxu0 0.0
  %2661 = vmatpush1.msra.mxu0 0.0
  %2662 = vmatprep.subr.mxu0 0.0
  %2663 = vmatpush1.msra.mxu0 0.0
  %2664 = vmatprep.subr.mxu0 0.0
  %2665 = vmatpush1.msra.mxu0 0.0
  %2666 = vmatprep.subr.mxu0 0.0
  %2667 = vmatpush1.msra.mxu0 0.0
  %2668 = vmatprep.subr.mxu0 0.0
  %2669 = vmatpush1.msra.mxu0 0.0
  %2670 = vmatprep.subr.mxu0 0.0
  %2671 = vmatpush1.msra.mxu0 0.0
  %2672 = vmatprep.subr.mxu0 0.0
  %2673 = vmatpush1.msra.mxu0 0.0
  %2674 = vmatprep.subr.mxu0 0.0
  %2675 = vmatpush1.msra.mxu0 0.0
  %2676 = vmatprep.subr.mxu0 0.0
  %2677 = vmatpush1.msra.mxu0 0.0
  %2678 = vmatprep.subr.mxu0 0.0
  %2679 = vmatpush1.msra.mxu0 0.0
  %2680 = vmatprep.subr.mxu0 0.0
  %2681 = vmatpush1.msra.mxu0 0.0
  %2682 = vmatprep.subr.mxu0 0.0
  %2683 = vmatpush1.msra.mxu0 0.0
  %2684 = vmatprep.subr.mxu0 0.0
  %2685 = vmatpush1.msra.mxu0 0.0
  %2686 = vmatprep.subr.mxu0 0.0
  %2687 = vmatpush1.msra.mxu0 0.0
  %2688 = vmatprep.subr.mxu0 0.0
  %2689 = vmatpush1.msra.mxu0 0.0
  %2690 = vmatprep.subr.mxu0 0.0
  %2691 = vmatpush1.msra.mxu0 0.0
  %2692 = vmatprep.subr.mxu0 0.0
  %2693 = vmatpush1.msra.mxu0 0.0
  %2694 = vmatprep.subr.mxu0 0.0
  %2695 = vmatpush1.msra.mxu0 0.0
  %2696 = vmatprep.subr.mxu0 0.0
  %2697 = vmatpush1.msra.mxu0 0.0
  %2698 = vmatprep.subr.mxu0 0.0
  %2699 = vmatpush1.msra.mxu0 0.0
  %2700 = vmatprep.subr.mxu0 0.0
  %2701 = vmatpush1.msra.mxu0 0.0
  %2702 = vmatprep.subr.mxu0 0.0
  %2703 = vmatpush1.msra.mxu0 0.0
  %2704 = vmatprep.subr.mxu0 0.0
  %2705 = vmatpush1.msra.mxu0 0.0
  %2706 = vmatprep.subr.mxu0 0.0
  %2707 = vmatpush1.msra.mxu0 0.0
  %2708 = vmatprep.subr.mxu0 0.0
  %2709 = vmatpush1.msra.mxu0 0.0
  %2710 = vmatprep.subr.mxu0 0.0
  %2711 = vmatpush1.msra.mxu0 0.0
  %2712 = vmatprep.mubr.f32.mxu0 0.0
  %2713 = vmatmul.mubr.f32.gmra.mrb[0].mxu0 %v2646
  %v2714 = vpop.f32.mrb[0].mxu0
  %v2715 = vadd.f32 0.0, %v2714
  %v2716 = vpop.f32.mrb[0].mxu0
  %2717 = vdwg.mxu0
  %v2718 = vadd.f32 %v2644, %v2715
  %v2719 = vtanh.pop %v2718
  %2720 = vst.msk [vmem:[#allocation2 + $0x21] sm:$0x1] %vm94, %v2719
  %v2721 = vld [vmem:[#allocation2 + $0x22] sm:$0x1]
  %v2723 = vsel %vm87, %v2719, 0
  %2725 = vmatprep.subr.mxu0 0.0
  %2726 = vmatpush1.msra.mxu0 %v96
  %2727 = vmatprep.subr.mxu0 0.0
  %2728 = vmatpush1.msra.mxu0 %v105
  %2729 = vmatprep.subr.mxu0 0.0
  %2730 = vmatpush1.msra.mxu0 0.0
  %2731 = vmatprep.subr.mxu0 0.0
  %2732 = vmatpush1.msra.mxu0 0.0
  %2733 = vmatprep.subr.mxu0 0.0
  %2734 = vmatpush1.msra.mxu0 0.0
  %2735 = vmatprep.subr.mxu0 0.0
  %2736 = vmatpush1.msra.mxu0 0.0
  %2737 = vmatprep.subr.mxu0 0.0
  %2738 = vmatpush1.msra.mxu0 0.0
  %2739 = vmatprep.subr.mxu0 0.0
  %2740 = vmatpush1.msra.mxu0 0.0
  %2741 = vmatprep.subr.mxu0 0.0
  %2742 = vmatpush1.msra.mxu0 0.0
  %2743 = vmatprep.subr.mxu0 0.0
  %2744 = vmatpush1.msra.mxu0 0.0
  %2745 = vmatprep.subr.mxu0 0.0
  %2746 = vmatpush1.msra.mxu0 0.0
  %2747 = vmatprep.subr.mxu0 0.0
  %2748 = vmatpush1.msra.mxu0 0.0
  %2749 = vmatprep.subr.mxu0 0.0
  %2750 = vmatpush1.msra.mxu0 0.0
  %2751 = vmatprep.subr.mxu0 0.0
  %2752 = vmatpush1.msra.mxu0 0.0
  %2753 = vmatprep.subr.mxu0 0.0
  %2754 = vmatpush1.msra.mxu0 0.0
  %2755 = vmatprep.subr.mxu0 0.0
  %2756 = vmatpush1.msra.mxu0 0.0
  %2757 = vmatprep.subr.mxu0 0.0
  %2758 = vmatpush1.msra.mxu0 0.0
  %2759 = vmatprep.subr.mxu0 0.0
  %2760 = vmatpush1.msra.mxu0 0.0
  %2761 = vmatprep.subr.mxu0 0.0
  %2762 = vmatpush1.msra.mxu0 0.0
  %2763 = vmatprep.subr.mxu0 0.0
  %2764 = vmatpush1.msra.mxu0 0.0
  %2765 = vmatprep.subr.mxu0 0.0
  %2766 = vmatpush1.msra.mxu0 0.0
  %2767 = vmatprep.subr.mxu0 0.0
  %2768 = vmatpush1.msra.mxu0 0.0
  %2769 = vmatprep.subr.mxu0 0.0
  %2770 = vmatpush1.msra.mxu0 0.0
  %2771 = vmatprep.subr.mxu0 0.0
  %2772 = vmatpush1.msra.mxu0 0.0
  %2773 = vmatprep.subr.mxu0 0.0
  %2774 = vmatpush1.msra.mxu0 0.0
  %2775 = vmatprep.subr.mxu0 0.0
  %2776 = vmatpush1.msra.mxu0 0.0
  %2777 = vmatprep.subr.mxu0 0.0
  %2778 = vmatpush1.msra.mxu0 0.0
  %2779 = vmatprep.subr.mxu0 0.0
  %2780 = vmatpush1.msra.mxu0 0.0
  %2781 = vmatprep.subr.mxu0 0.0
  %2782 = vmatpush1.msra.mxu0 0.0
  %2783 = vmatprep.subr.mxu0 0.0
  %2784 = vmatpush1.msra.mxu0 0.0
  %2785 = vmatprep.subr.mxu0 0.0
  %2786 = vmatpush1.msra.mxu0 0.0
  %2787 = vmatprep.subr.mxu0 0.0
  %2788 = vmatpush1.msra.mxu0 0.0
  %2789 = vmatprep.mubr.f32.mxu0 0.0
  %2790 = vmatmul.mubr.f32.gmra.mrb[0].mxu0 %v2723
  %v2791 = vpop.f32.mrb[0].mxu0
  %v2792 = vadd.f32 0.0, %v2791
  %v2793 = vpop.f32.mrb[0].mxu0
  %2794 = vdwg.mxu0
  %v2795 = vadd.f32 %v2721, %v2792
  %v2796 = vtanh.pop %v2795
  %2797 = vst.msk [vmem:[#allocation2 + $0x22] sm:$0x1] %vm94, %v2796
  %v2798 = vld [vmem:[#allocation2 + $0x23] sm:$0x1]
  %v2800 = vsel %vm87, %v2796, 0
  %2802 = vmatprep.subr.mxu0 0.0
  %2803 = vmatpush1.msra.mxu0 %v96
  %2804 = vmatprep.subr.mxu0 0.0
  %2805 = vmatpush1.msra.mxu0 %v105
  %2806 = vmatprep.subr.mxu0 0.0
  %2807 = vmatpush1.msra.mxu0 0.0
  %2808 = vmatprep.subr.mxu0 0.0
  %2809 = vmatpush1.msra.mxu0 0.0
  %2810 = vmatprep.subr.mxu0 0.0
  %2811 = vmatpush1.msra.mxu0 0.0
  %2812 = vmatprep.subr.mxu0 0.0
  %2813 = vmatpush1.msra.mxu0 0.0
  %2814 = vmatprep.subr.mxu0 0.0
  %2815 = vmatpush1.msra.mxu0 0.0
  %2816 = vmatprep.subr.mxu0 0.0
  %2817 = vmatpush1.msra.mxu0 0.0
  %2818 = vmatprep.subr.mxu0 0.0
  %2819 = vmatpush1.msra.mxu0 0.0
  %2820 = vmatprep.subr.mxu0 0.0
  %2821 = vmatpush1.msra.mxu0 0.0
  %2822 = vmatprep.subr.mxu0 0.0
  %2823 = vmatpush1.msra.mxu0 0.0
  %2824 = vmatprep.subr.mxu0 0.0
  %2825 = vmatpush1.msra.mxu0 0.0
  %2826 = vmatprep.subr.mxu0 0.0
  %2827 = vmatpush1.msra.mxu0 0.0
  %2828 = vmatprep.subr.mxu0 0.0
  %2829 = vmatpush1.msra.mxu0 0.0
  %2830 = vmatprep.subr.mxu0 0.0
  %2831 = vmatpush1.msra.mxu0 0.0
  %2832 = vmatprep.subr.mxu0 0.0
  %2833 = vmatpush1.msra.mxu0 0.0
  %2834 = vmatprep.subr.mxu0 0.0
  %2835 = vmatpush1.msra.mxu0 0.0
  %2836 = vmatprep.subr.mxu0 0.0
  %2837 = vmatpush1.msra.mxu0 0.0
  %2838 = vmatprep.subr.mxu0 0.0
  %2839 = vmatpush1.msra.mxu0 0.0
  %2840 = vmatprep.subr.mxu0 0.0
  %2841 = vmatpush1.msra.mxu0 0.0
  %2842 = vmatprep.subr.mxu0 0.0
  %2843 = vmatpush1.msra.mxu0 0.0
  %2844 = vmatprep.subr.mxu0 0.0
  %2845 = vmatpush1.msra.mxu0 0.0
  %2846 = vmatprep.subr.mxu0 0.0
  %2847 = vmatpush1.msra.mxu0 0.0
  %2848 = vmatprep.subr.mxu0 0.0
  %2849 = vmatpush1.msra.mxu0 0.0
  %2850 = vmatprep.subr.mxu0 0.0
  %2851 = vmatpush1.msra.mxu0 0.0
  %2852 = vmatprep.subr.mxu0 0.0
  %2853 = vmatpush1.msra.mxu0 0.0
  %2854 = vmatprep.subr.mxu0 0.0
  %2855 = vmatpush1.msra.mxu0 0.0
  %2856 = vmatprep.subr.mxu0 0.0
  %2857 = vmatpush1.msra.mxu0 0.0
  %2858 = vmatprep.subr.mxu0 0.0
  %2859 = vmatpush1.msra.mxu0 0.0
  %2860 = vmatprep.subr.mxu0 0.0
  %2861 = vmatpush1.msra.mxu0 0.0
  %2862 = vmatprep.subr.mxu0 0.0
  %2863 = vmatpush1.msra.mxu0 0.0
  %2864 = vmatprep.subr.mxu0 0.0
  %2865 = vmatpush1.msra.mxu0 0.0
  %2866 = vmatprep.mubr.f32.mxu0 0.0
  %2867 = vmatmul.mubr.f32.gmra.mrb[0].mxu0 %v2800
  %v2868 = vpop.f32.mrb[0].mxu0
  %v2869 = vadd.f32 0.0, %v2868
  %v2870 = vpop.f32.mrb[0].mxu0
  %2871 = vdwg.mxu0
  %v2872 = vadd.f32 %v2798, %v2869
  %v2873 = vtanh.pop %v2872
  %2874 = vst.msk [vmem:[#allocation2 + $0x23] sm:$0x1] %vm94, %v2873
  %v2875 = vld [vmem:[#allocation2 + $0x24] sm:$0x1]
  %v2877 = vsel %vm87, %v2873, 0
  %2879 = vmatprep.subr.mxu0 0.0
  %2880 = vmatpush1.msra.mxu0 %v96
  %2881 = vmatprep.subr.mxu0 0.0
  %2882 = vmatpush1.msra.mxu0 %v105
  %2883 = vmatprep.subr.mxu0 0.0
  %2884 = vmatpush1.msra.mxu0 0.0
  %2885 = vmatprep.subr.mxu0 0.0
  %2886 = vmatpush1.msra.mxu0 0.0
  %2887 = vmatprep.subr.mxu0 0.0
  %2888 = vmatpush1.msra.mxu0 0.0
  %2889 = vmatprep.subr.mxu0 0.0
  %2890 = vmatpush1.msra.mxu0 0.0
  %2891 = vmatprep.subr.mxu0 0.0
  %2892 = vmatpush1.msra.mxu0 0.0
  %2893 = vmatprep.subr.mxu0 0.0
  %2894 = vmatpush1.msra.mxu0 0.0
  %2895 = vmatprep.subr.mxu0 0.0
  %2896 = vmatpush1.msra.mxu0 0.0
  %2897 = vmatprep.subr.mxu0 0.0
  %2898 = vmatpush1.msra.mxu0 0.0
  %2899 = vmatprep.subr.mxu0 0.0
  %2900 = vmatpush1.msra.mxu0 0.0
  %2901 = vmatprep.subr.mxu0 0.0
  %2902 = vmatpush1.msra.mxu0 0.0
  %2903 = vmatprep.subr.mxu0 0.0
  %2904 = vmatpush1.msra.mxu0 0.0
  %2905 = vmatprep.subr.mxu0 0.0
  %2906 = vmatpush1.msra.mxu0 0.0
  %2907 = vmatprep.subr.mxu0 0.0
  %2908 = vmatpush1.msra.mxu0 0.0
  %2909 = vmatprep.subr.mxu0 0.0
  %2910 = vmatpush1.msra.mxu0 0.0
  %2911 = vmatprep.subr.mxu0 0.0
  %2912 = vmatpush1.msra.mxu0 0.0
  %2913 = vmatprep.subr.mxu0 0.0
  %2914 = vmatpush1.msra.mxu0 0.0
  %2915 = vmatprep.subr.mxu0 0.0
  %2916 = vmatpush1.msra.mxu0 0.0
  %2917 = vmatprep.subr.mxu0 0.0
  %2918 = vmatpush1.msra.mxu0 0.0
  %2919 = vmatprep.subr.mxu0 0.0
  %2920 = vmatpush1.msra.mxu0 0.0
  %2921 = vmatprep.subr.mxu0 0.0
  %2922 = vmatpush1.msra.mxu0 0.0
  %2923 = vmatprep.subr.mxu0 0.0
  %2924 = vmatpush1.msra.mxu0 0.0
  %2925 = vmatprep.subr.mxu0 0.0
  %2926 = vmatpush1.msra.mxu0 0.0
  %2927 = vmatprep.subr.mxu0 0.0
  %2928 = vmatpush1.msra.mxu0 0.0
  %2929 = vmatprep.subr.mxu0 0.0
  %2930 = vmatpush1.msra.mxu0 0.0
  %2931 = vmatprep.subr.mxu0 0.0
  %2932 = vmatpush1.msra.mxu0 0.0
  %2933 = vmatprep.subr.mxu0 0.0
  %2934 = vmatpush1.msra.mxu0 0.0
  %2935 = vmatprep.subr.mxu0 0.0
  %2936 = vmatpush1.msra.mxu0 0.0
  %2937 = vmatprep.subr.mxu0 0.0
  %2938 = vmatpush1.msra.mxu0 0.0
  %2939 = vmatprep.subr.mxu0 0.0
  %2940 = vmatpush1.msra.mxu0 0.0
  %2941 = vmatprep.subr.mxu0 0.0
  %2942 = vmatpush1.msra.mxu0 0.0
  %2943 = vmatprep.mubr.f32.mxu0 0.0
  %2944 = vmatmul.mubr.f32.gmra.mrb[0].mxu0 %v2877
  %v2945 = vpop.f32.mrb[0].mxu0
  %v2946 = vadd.f32 0.0, %v2945
  %v2947 = vpop.f32.mrb[0].mxu0
  %2948 = vdwg.mxu0
  %v2949 = vadd.f32 %v2875, %v2946
  %v2950 = vtanh.pop %v2949
  %2951 = vst.msk [vmem:[#allocation2 + $0x24] sm:$0x1] %vm94, %v2950
  %v2952 = vld [vmem:[#allocation2 + $0x25] sm:$0x1]
  %v2954 = vsel %vm87, %v2950, 0
  %2956 = vmatprep.subr.mxu0 0.0
  %2957 = vmatpush1.msra.mxu0 %v96
  %2958 = vmatprep.subr.mxu0 0.0
  %2959 = vmatpush1.msra.mxu0 %v105
  %2960 = vmatprep.subr.mxu0 0.0
  %2961 = vmatpush1.msra.mxu0 0.0
  %2962 = vmatprep.subr.mxu0 0.0
  %2963 = vmatpush1.msra.mxu0 0.0
  %2964 = vmatprep.subr.mxu0 0.0
  %2965 = vmatpush1.msra.mxu0 0.0
  %2966 = vmatprep.subr.mxu0 0.0
  %2967 = vmatpush1.msra.mxu0 0.0
  %2968 = vmatprep.subr.mxu0 0.0
  %2969 = vmatpush1.msra.mxu0 0.0
  %2970 = vmatprep.subr.mxu0 0.0
  %2971 = vmatpush1.msra.mxu0 0.0
  %2972 = vmatprep.subr.mxu0 0.0
  %2973 = vmatpush1.msra.mxu0 0.0
  %2974 = vmatprep.subr.mxu0 0.0
  %2975 = vmatpush1.msra.mxu0 0.0
  %2976 = vmatprep.subr.mxu0 0.0
  %2977 = vmatpush1.msra.mxu0 0.0
  %2978 = vmatprep.subr.mxu0 0.0
  %2979 = vmatpush1.msra.mxu0 0.0
  %2980 = vmatprep.subr.mxu0 0.0
  %2981 = vmatpush1.msra.mxu0 0.0
  %2982 = vmatprep.subr.mxu0 0.0
  %2983 = vmatpush1.msra.mxu0 0.0
  %2984 = vmatprep.subr.mxu0 0.0
  %2985 = vmatpush1.msra.mxu0 0.0
  %2986 = vmatprep.subr.mxu0 0.0
  %2987 = vmatpush1.msra.mxu0 0.0
  %2988 = vmatprep.subr.mxu0 0.0
  %2989 = vmatpush1.msra.mxu0 0.0
  %2990 = vmatprep.subr.mxu0 0.0
  %2991 = vmatpush1.msra.mxu0 0.0
  %2992 = vmatprep.subr.mxu0 0.0
  %2993 = vmatpush1.msra.mxu0 0.0
  %2994 = vmatprep.subr.mxu0 0.0
  %2995 = vmatpush1.msra.mxu0 0.0
  %2996 = vmatprep.subr.mxu0 0.0
  %2997 = vmatpush1.msra.mxu0 0.0
  %2998 = vmatprep.subr.mxu0 0.0
  %2999 = vmatpush1.msra.mxu0 0.0
  %3000 = vmatprep.subr.mxu0 0.0
  %3001 = vmatpush1.msra.mxu0 0.0
  %3002 = vmatprep.subr.mxu0 0.0
  %3003 = vmatpush1.msra.mxu0 0.0
  %3004 = vmatprep.subr.mxu0 0.0
  %3005 = vmatpush1.msra.mxu0 0.0
  %3006 = vmatprep.subr.mxu0 0.0
  %3007 = vmatpush1.msra.mxu0 0.0
  %3008 = vmatprep.subr.mxu0 0.0
  %3009 = vmatpush1.msra.mxu0 0.0
  %3010 = vmatprep.subr.mxu0 0.0
  %3011 = vmatpush1.msra.mxu0 0.0
  %3012 = vmatprep.subr.mxu0 0.0
  %3013 = vmatpush1.msra.mxu0 0.0
  %3014 = vmatprep.subr.mxu0 0.0
  %3015 = vmatpush1.msra.mxu0 0.0
  %3016 = vmatprep.subr.mxu0 0.0
  %3017 = vmatpush1.msra.mxu0 0.0
  %3018 = vmatprep.subr.mxu0 0.0
  %3019 = vmatpush1.msra.mxu0 0.0
  %3020 = vmatprep.mubr.f32.mxu0 0.0
  %3021 = vmatmul.mubr.f32.gmra.mrb[0].mxu0 %v2954
  %v3022 = vpop.f32.mrb[0].mxu0
  %v3023 = vadd.f32 0.0, %v3022
  %v3024 = vpop.f32.mrb[0].mxu0
  %3025 = vdwg.mxu0
  %v3026 = vadd.f32 %v2952, %v3023
  %v3027 = vtanh.pop %v3026
  %3028 = vst.msk [vmem:[#allocation2 + $0x25] sm:$0x1] %vm94, %v3027
  %v3029 = vld [vmem:[#allocation2 + $0x26] sm:$0x1]
  %v3031 = vsel %vm87, %v3027, 0
  %3033 = vmatprep.subr.mxu0 0.0
  %3034 = vmatpush1.msra.mxu0 %v96
  %3035 = vmatprep.subr.mxu0 0.0
  %3036 = vmatpush1.msra.mxu0 %v105
  %3037 = vmatprep.subr.mxu0 0.0
  %3038 = vmatpush1.msra.mxu0 0.0
  %3039 = vmatprep.subr.mxu0 0.0
  %3040 = vmatpush1.msra.mxu0 0.0
  %3041 = vmatprep.subr.mxu0 0.0
  %3042 = vmatpush1.msra.mxu0 0.0
  %3043 = vmatprep.subr.mxu0 0.0
  %3044 = vmatpush1.msra.mxu0 0.0
  %3045 = vmatprep.subr.mxu0 0.0
  %3046 = vmatpush1.msra.mxu0 0.0
  %3047 = vmatprep.subr.mxu0 0.0
  %3048 = vmatpush1.msra.mxu0 0.0
  %3049 = vmatprep.subr.mxu0 0.0
  %3050 = vmatpush1.msra.mxu0 0.0
  %3051 = vmatprep.subr.mxu0 0.0
  %3052 = vmatpush1.msra.mxu0 0.0
  %3053 = vmatprep.subr.mxu0 0.0
  %3054 = vmatpush1.msra.mxu0 0.0
  %3055 = vmatprep.subr.mxu0 0.0
  %3056 = vmatpush1.msra.mxu0 0.0
  %3057 = vmatprep.subr.mxu0 0.0
  %3058 = vmatpush1.msra.mxu0 0.0
  %3059 = vmatprep.subr.mxu0 0.0
  %3060 = vmatpush1.msra.mxu0 0.0
  %3061 = vmatprep.subr.mxu0 0.0
  %3062 = vmatpush1.msra.mxu0 0.0
  %3063 = vmatprep.subr.mxu0 0.0
  %3064 = vmatpush1.msra.mxu0 0.0
  %3065 = vmatprep.subr.mxu0 0.0
  %3066 = vmatpush1.msra.mxu0 0.0
  %3067 = vmatprep.subr.mxu0 0.0
  %3068 = vmatpush1.msra.mxu0 0.0
  %3069 = vmatprep.subr.mxu0 0.0
  %3070 = vmatpush1.msra.mxu0 0.0
  %3071 = vmatprep.subr.mxu0 0.0
  %3072 = vmatpush1.msra.mxu0 0.0
  %3073 = vmatprep.subr.mxu0 0.0
  %3074 = vmatpush1.msra.mxu0 0.0
  %3075 = vmatprep.subr.mxu0 0.0
  %3076 = vmatpush1.msra.mxu0 0.0
  %3077 = vmatprep.subr.mxu0 0.0
  %3078 = vmatpush1.msra.mxu0 0.0
  %3079 = vmatprep.subr.mxu0 0.0
  %3080 = vmatpush1.msra.mxu0 0.0
  %3081 = vmatprep.subr.mxu0 0.0
  %3082 = vmatpush1.msra.mxu0 0.0
  %3083 = vmatprep.subr.mxu0 0.0
  %3084 = vmatpush1.msra.mxu0 0.0
  %3085 = vmatprep.subr.mxu0 0.0
  %3086 = vmatpush1.msra.mxu0 0.0
  %3087 = vmatprep.subr.mxu0 0.0
  %3088 = vmatpush1.msra.mxu0 0.0
  %3089 = vmatprep.subr.mxu0 0.0
  %3090 = vmatpush1.msra.mxu0 0.0
  %3091 = vmatprep.subr.mxu0 0.0
  %3092 = vmatpush1.msra.mxu0 0.0
  %3093 = vmatprep.subr.mxu0 0.0
  %3094 = vmatpush1.msra.mxu0 0.0
  %3095 = vmatprep.subr.mxu0 0.0
  %3096 = vmatpush1.msra.mxu0 0.0
  %3097 = vmatprep.mubr.f32.mxu0 0.0
  %3098 = vmatmul.mubr.f32.gmra.mrb[0].mxu0 %v3031
  %v3099 = vpop.f32.mrb[0].mxu0
  %v3100 = vadd.f32 0.0, %v3099
  %v3101 = vpop.f32.mrb[0].mxu0
  %3102 = vdwg.mxu0
  %v3103 = vadd.f32 %v3029, %v3100
  %v3104 = vtanh.pop %v3103
  %3105 = vst.msk [vmem:[#allocation2 + $0x26] sm:$0x1] %vm94, %v3104
  %v3106 = vld [vmem:[#allocation2 + $0x27] sm:$0x1]
  %v3108 = vsel %vm87, %v3104, 0
  %3110 = vmatprep.subr.mxu0 0.0
  %3111 = vmatpush1.msra.mxu0 %v96
  %3112 = vmatprep.subr.mxu0 0.0
  %3113 = vmatpush1.msra.mxu0 %v105
  %3114 = vmatprep.subr.mxu0 0.0
  %3115 = vmatpush1.msra.mxu0 0.0
  %3116 = vmatprep.subr.mxu0 0.0
  %3117 = vmatpush1.msra.mxu0 0.0
  %3118 = vmatprep.subr.mxu0 0.0
  %3119 = vmatpush1.msra.mxu0 0.0
  %3120 = vmatprep.subr.mxu0 0.0
  %3121 = vmatpush1.msra.mxu0 0.0
  %3122 = vmatprep.subr.mxu0 0.0
  %3123 = vmatpush1.msra.mxu0 0.0
  %3124 = vmatprep.subr.mxu0 0.0
  %3125 = vmatpush1.msra.mxu0 0.0
  %3126 = vmatprep.subr.mxu0 0.0
  %3127 = vmatpush1.msra.mxu0 0.0
  %3128 = vmatprep.subr.mxu0 0.0
  %3129 = vmatpush1.msra.mxu0 0.0
  %3130 = vmatprep.subr.mxu0 0.0
  %3131 = vmatpush1.msra.mxu0 0.0
  %3132 = vmatprep.subr.mxu0 0.0
  %3133 = vmatpush1.msra.mxu0 0.0
  %3134 = vmatprep.subr.mxu0 0.0
  %3135 = vmatpush1.msra.mxu0 0.0
  %3136 = vmatprep.subr.mxu0 0.0
  %3137 = vmatpush1.msra.mxu0 0.0
  %3138 = vmatprep.subr.mxu0 0.0
  %3139 = vmatpush1.msra.mxu0 0.0
  %3140 = vmatprep.subr.mxu0 0.0
  %3141 = vmatpush1.msra.mxu0 0.0
  %3142 = vmatprep.subr.mxu0 0.0
  %3143 = vmatpush1.msra.mxu0 0.0
  %3144 = vmatprep.subr.mxu0 0.0
  %3145 = vmatpush1.msra.mxu0 0.0
  %3146 = vmatprep.subr.mxu0 0.0
  %3147 = vmatpush1.msra.mxu0 0.0
  %3148 = vmatprep.subr.mxu0 0.0
  %3149 = vmatpush1.msra.mxu0 0.0
  %3150 = vmatprep.subr.mxu0 0.0
  %3151 = vmatpush1.msra.mxu0 0.0
  %3152 = vmatprep.subr.mxu0 0.0
  %3153 = vmatpush1.msra.mxu0 0.0
  %3154 = vmatprep.subr.mxu0 0.0
  %3155 = vmatpush1.msra.mxu0 0.0
  %3156 = vmatprep.subr.mxu0 0.0
  %3157 = vmatpush1.msra.mxu0 0.0
  %3158 = vmatprep.subr.mxu0 0.0
  %3159 = vmatpush1.msra.mxu0 0.0
  %3160 = vmatprep.subr.mxu0 0.0
  %3161 = vmatpush1.msra.mxu0 0.0
  %3162 = vmatprep.subr.mxu0 0.0
  %3163 = vmatpush1.msra.mxu0 0.0
  %3164 = vmatprep.subr.mxu0 0.0
  %3165 = vmatpush1.msra.mxu0 0.0
  %3166 = vmatprep.subr.mxu0 0.0
  %3167 = vmatpush1.msra.mxu0 0.0
  %3168 = vmatprep.subr.mxu0 0.0
  %3169 = vmatpush1.msra.mxu0 0.0
  %3170 = vmatprep.subr.mxu0 0.0
  %3171 = vmatpush1.msra.mxu0 0.0
  %3172 = vmatprep.subr.mxu0 0.0
  %3173 = vmatpush1.msra.mxu0 0.0
  %3174 = vmatprep.mubr.f32.mxu0 0.0
  %3175 = vmatmul.mubr.f32.gmra.mrb[0].mxu0 %v3108
  %v3176 = vpop.f32.mrb[0].mxu0
  %v3177 = vadd.f32 0.0, %v3176
  %v3178 = vpop.f32.mrb[0].mxu0
  %3179 = vdwg.mxu0
  %v3180 = vadd.f32 %v3106, %v3177
  %v3181 = vtanh.pop %v3180
  %3182 = vst.msk [vmem:[#allocation2 + $0x27] sm:$0x1] %vm94, %v3181
  %v3183 = vld [vmem:[#allocation2 + $0x28] sm:$0x1]
  %v3185 = vsel %vm87, %v3181, 0
  %3187 = vmatprep.subr.mxu0 0.0
  %3188 = vmatpush1.msra.mxu0 %v96
  %3189 = vmatprep.subr.mxu0 0.0
  %3190 = vmatpush1.msra.mxu0 %v105
  %3191 = vmatprep.subr.mxu0 0.0
  %3192 = vmatpush1.msra.mxu0 0.0
  %3193 = vmatprep.subr.mxu0 0.0
  %3194 = vmatpush1.msra.mxu0 0.0
  %3195 = vmatprep.subr.mxu0 0.0
  %3196 = vmatpush1.msra.mxu0 0.0
  %3197 = vmatprep.subr.mxu0 0.0
  %3198 = vmatpush1.msra.mxu0 0.0
  %3199 = vmatprep.subr.mxu0 0.0
  %3200 = vmatpush1.msra.mxu0 0.0
  %3201 = vmatprep.subr.mxu0 0.0
  %3202 = vmatpush1.msra.mxu0 0.0
  %3203 = vmatprep.subr.mxu0 0.0
  %3204 = vmatpush1.msra.mxu0 0.0
  %3205 = vmatprep.subr.mxu0 0.0
  %3206 = vmatpush1.msra.mxu0 0.0
  %3207 = vmatprep.subr.mxu0 0.0
  %3208 = vmatpush1.msra.mxu0 0.0
  %3209 = vmatprep.subr.mxu0 0.0
  %3210 = vmatpush1.msra.mxu0 0.0
  %3211 = vmatprep.subr.mxu0 0.0
  %3212 = vmatpush1.msra.mxu0 0.0
  %3213 = vmatprep.subr.mxu0 0.0
  %3214 = vmatpush1.msra.mxu0 0.0
  %3215 = vmatprep.subr.mxu0 0.0
  %3216 = vmatpush1.msra.mxu0 0.0
  %3217 = vmatprep.subr.mxu0 0.0
  %3218 = vmatpush1.msra.mxu0 0.0
  %3219 = vmatprep.subr.mxu0 0.0
  %3220 = vmatpush1.msra.mxu0 0.0
  %3221 = vmatprep.subr.mxu0 0.0
  %3222 = vmatpush1.msra.mxu0 0.0
  %3223 = vmatprep.subr.mxu0 0.0
  %3224 = vmatpush1.msra.mxu0 0.0
  %3225 = vmatprep.subr.mxu0 0.0
  %3226 = vmatpush1.msra.mxu0 0.0
  %3227 = vmatprep.subr.mxu0 0.0
  %3228 = vmatpush1.msra.mxu0 0.0
  %3229 = vmatprep.subr.mxu0 0.0
  %3230 = vmatpush1.msra.mxu0 0.0
  %3231 = vmatprep.subr.mxu0 0.0
  %3232 = vmatpush1.msra.mxu0 0.0
  %3233 = vmatprep.subr.mxu0 0.0
  %3234 = vmatpush1.msra.mxu0 0.0
  %3235 = vmatprep.subr.mxu0 0.0
  %3236 = vmatpush1.msra.mxu0 0.0
  %3237 = vmatprep.subr.mxu0 0.0
  %3238 = vmatpush1.msra.mxu0 0.0
  %3239 = vmatprep.subr.mxu0 0.0
  %3240 = vmatpush1.msra.mxu0 0.0
  %3241 = vmatprep.subr.mxu0 0.0
  %3242 = vmatpush1.msra.mxu0 0.0
  %3243 = vmatprep.subr.mxu0 0.0
  %3244 = vmatpush1.msra.mxu0 0.0
  %3245 = vmatprep.subr.mxu0 0.0
  %3246 = vmatpush1.msra.mxu0 0.0
  %3247 = vmatprep.subr.mxu0 0.0
  %3248 = vmatpush1.msra.mxu0 0.0
  %3249 = vmatprep.subr.mxu0 0.0
  %3250 = vmatpush1.msra.mxu0 0.0
  %3251 = vmatprep.mubr.f32.mxu0 0.0
  %3252 = vmatmul.mubr.f32.gmra.mrb[0].mxu0 %v3185
  %v3253 = vpop.f32.mrb[0].mxu0
  %v3254 = vadd.f32 0.0, %v3253
  %v3255 = vpop.f32.mrb[0].mxu0
  %3256 = vdwg.mxu0
  %v3257 = vadd.f32 %v3183, %v3254
  %v3258 = vtanh.pop %v3257
  %3259 = vst.msk [vmem:[#allocation2 + $0x28] sm:$0x1] %vm94, %v3258
  %v3260 = vld [vmem:[#allocation2 + $0x29] sm:$0x1]
  %v3262 = vsel %vm87, %v3258, 0
  %3264 = vmatprep.subr.mxu0 0.0
  %3265 = vmatpush1.msra.mxu0 %v96
  %3266 = vmatprep.subr.mxu0 0.0
  %3267 = vmatpush1.msra.mxu0 %v105
  %3268 = vmatprep.subr.mxu0 0.0
  %3269 = vmatpush1.msra.mxu0 0.0
  %3270 = vmatprep.subr.mxu0 0.0
  %3271 = vmatpush1.msra.mxu0 0.0
  %3272 = vmatprep.subr.mxu0 0.0
  %3273 = vmatpush1.msra.mxu0 0.0
  %3274 = vmatprep.subr.mxu0 0.0
  %3275 = vmatpush1.msra.mxu0 0.0
  %3276 = vmatprep.subr.mxu0 0.0
  %3277 = vmatpush1.msra.mxu0 0.0
  %3278 = vmatprep.subr.mxu0 0.0
  %3279 = vmatpush1.msra.mxu0 0.0
  %3280 = vmatprep.subr.mxu0 0.0
  %3281 = vmatpush1.msra.mxu0 0.0
  %3282 = vmatprep.subr.mxu0 0.0
  %3283 = vmatpush1.msra.mxu0 0.0
  %3284 = vmatprep.subr.mxu0 0.0
  %3285 = vmatpush1.msra.mxu0 0.0
  %3286 = vmatprep.subr.mxu0 0.0
  %3287 = vmatpush1.msra.mxu0 0.0
  %3288 = vmatprep.subr.mxu0 0.0
  %3289 = vmatpush1.msra.mxu0 0.0
  %3290 = vmatprep.subr.mxu0 0.0
  %3291 = vmatpush1.msra.mxu0 0.0
  %3292 = vmatprep.subr.mxu0 0.0
  %3293 = vmatpush1.msra.mxu0 0.0
  %3294 = vmatprep.subr.mxu0 0.0
  %3295 = vmatpush1.msra.mxu0 0.0
  %3296 = vmatprep.subr.mxu0 0.0
  %3297 = vmatpush1.msra.mxu0 0.0
  %3298 = vmatprep.subr.mxu0 0.0
  %3299 = vmatpush1.msra.mxu0 0.0
  %3300 = vmatprep.subr.mxu0 0.0
  %3301 = vmatpush1.msra.mxu0 0.0
  %3302 = vmatprep.subr.mxu0 0.0
  %3303 = vmatpush1.msra.mxu0 0.0
  %3304 = vmatprep.subr.mxu0 0.0
  %3305 = vmatpush1.msra.mxu0 0.0
  %3306 = vmatprep.subr.mxu0 0.0
  %3307 = vmatpush1.msra.mxu0 0.0
  %3308 = vmatprep.subr.mxu0 0.0
  %3309 = vmatpush1.msra.mxu0 0.0
  %3310 = vmatprep.subr.mxu0 0.0
  %3311 = vmatpush1.msra.mxu0 0.0
  %3312 = vmatprep.subr.mxu0 0.0
  %3313 = vmatpush1.msra.mxu0 0.0
  %3314 = vmatprep.subr.mxu0 0.0
  %3315 = vmatpush1.msra.mxu0 0.0
  %3316 = vmatprep.subr.mxu0 0.0
  %3317 = vmatpush1.msra.mxu0 0.0
  %3318 = vmatprep.subr.mxu0 0.0
  %3319 = vmatpush1.msra.mxu0 0.0
  %3320 = vmatprep.subr.mxu0 0.0
  %3321 = vmatpush1.msra.mxu0 0.0
  %3322 = vmatprep.subr.mxu0 0.0
  %3323 = vmatpush1.msra.mxu0 0.0
  %3324 = vmatprep.subr.mxu0 0.0
  %3325 = vmatpush1.msra.mxu0 0.0
  %3326 = vmatprep.subr.mxu0 0.0
  %3327 = vmatpush1.msra.mxu0 0.0
  %3328 = vmatprep.mubr.f32.mxu0 0.0
  %3329 = vmatmul.mubr.f32.gmra.mrb[0].mxu0 %v3262
  %v3330 = vpop.f32.mrb[0].mxu0
  %v3331 = vadd.f32 0.0, %v3330
  %v3332 = vpop.f32.mrb[0].mxu0
  %3333 = vdwg.mxu0
  %v3334 = vadd.f32 %v3260, %v3331
  %v3335 = vtanh.pop %v3334
  %3336 = vst.msk [vmem:[#allocation2 + $0x29] sm:$0x1] %vm94, %v3335
  %v3337 = vld [vmem:[#allocation2 + $0x2a] sm:$0x1]
  %v3339 = vsel %vm87, %v3335, 0
  %3341 = vmatprep.subr.mxu0 0.0
  %3342 = vmatpush1.msra.mxu0 %v96
  %3343 = vmatprep.subr.mxu0 0.0
  %3344 = vmatpush1.msra.mxu0 %v105
  %3345 = vmatprep.subr.mxu0 0.0
  %3346 = vmatpush1.msra.mxu0 0.0
  %3347 = vmatprep.subr.mxu0 0.0
  %3348 = vmatpush1.msra.mxu0 0.0
  %3349 = vmatprep.subr.mxu0 0.0
  %3350 = vmatpush1.msra.mxu0 0.0
  %3351 = vmatprep.subr.mxu0 0.0
  %3352 = vmatpush1.msra.mxu0 0.0
  %3353 = vmatprep.subr.mxu0 0.0
  %3354 = vmatpush1.msra.mxu0 0.0
  %3355 = vmatprep.subr.mxu0 0.0
  %3356 = vmatpush1.msra.mxu0 0.0
  %3357 = vmatprep.subr.mxu0 0.0
  %3358 = vmatpush1.msra.mxu0 0.0
  %3359 = vmatprep.subr.mxu0 0.0
  %3360 = vmatpush1.msra.mxu0 0.0
  %3361 = vmatprep.subr.mxu0 0.0
  %3362 = vmatpush1.msra.mxu0 0.0
  %3363 = vmatprep.subr.mxu0 0.0
  %3364 = vmatpush1.msra.mxu0 0.0
  %3365 = vmatprep.subr.mxu0 0.0
  %3366 = vmatpush1.msra.mxu0 0.0
  %3367 = vmatprep.subr.mxu0 0.0
  %3368 = vmatpush1.msra.mxu0 0.0
  %3369 = vmatprep.subr.mxu0 0.0
  %3370 = vmatpush1.msra.mxu0 0.0
  %3371 = vmatprep.subr.mxu0 0.0
  %3372 = vmatpush1.msra.mxu0 0.0
  %3373 = vmatprep.subr.mxu0 0.0
  %3374 = vmatpush1.msra.mxu0 0.0
  %3375 = vmatprep.subr.mxu0 0.0
  %3376 = vmatpush1.msra.mxu0 0.0
  %3377 = vmatprep.subr.mxu0 0.0
  %3378 = vmatpush1.msra.mxu0 0.0
  %3379 = vmatprep.subr.mxu0 0.0
  %3380 = vmatpush1.msra.mxu0 0.0
  %3381 = vmatprep.subr.mxu0 0.0
  %3382 = vmatpush1.msra.mxu0 0.0
  %3383 = vmatprep.subr.mxu0 0.0
  %3384 = vmatpush1.msra.mxu0 0.0
  %3385 = vmatprep.subr.mxu0 0.0
  %3386 = vmatpush1.msra.mxu0 0.0
  %3387 = vmatprep.subr.mxu0 0.0
  %3388 = vmatpush1.msra.mxu0 0.0
  %3389 = vmatprep.subr.mxu0 0.0
  %3390 = vmatpush1.msra.mxu0 0.0
  %3391 = vmatprep.subr.mxu0 0.0
  %3392 = vmatpush1.msra.mxu0 0.0
  %3393 = vmatprep.subr.mxu0 0.0
  %3394 = vmatpush1.msra.mxu0 0.0
  %3395 = vmatprep.subr.mxu0 0.0
  %3396 = vmatpush1.msra.mxu0 0.0
  %3397 = vmatprep.subr.mxu0 0.0
  %3398 = vmatpush1.msra.mxu0 0.0
  %3399 = vmatprep.subr.mxu0 0.0
  %3400 = vmatpush1.msra.mxu0 0.0
  %3401 = vmatprep.subr.mxu0 0.0
  %3402 = vmatpush1.msra.mxu0 0.0
  %3403 = vmatprep.subr.mxu0 0.0
  %3404 = vmatpush1.msra.mxu0 0.0
  %3405 = vmatprep.mubr.f32.mxu0 0.0
  %3406 = vmatmul.mubr.f32.gmra.mrb[0].mxu0 %v3339
  %v3407 = vpop.f32.mrb[0].mxu0
  %v3408 = vadd.f32 0.0, %v3407
  %v3409 = vpop.f32.mrb[0].mxu0
  %3410 = vdwg.mxu0
  %v3411 = vadd.f32 %v3337, %v3408
  %v3412 = vtanh.pop %v3411
  %3413 = vst.msk [vmem:[#allocation2 + $0x2a] sm:$0x1] %vm94, %v3412
  %v3414 = vld [vmem:[#allocation2 + $0x2b] sm:$0x1]
  %v3416 = vsel %vm87, %v3412, 0
  %3418 = vmatprep.subr.mxu0 0.0
  %3419 = vmatpush1.msra.mxu0 %v96
  %3420 = vmatprep.subr.mxu0 0.0
  %3421 = vmatpush1.msra.mxu0 %v105
  %3422 = vmatprep.subr.mxu0 0.0
  %3423 = vmatpush1.msra.mxu0 0.0
  %3424 = vmatprep.subr.mxu0 0.0
  %3425 = vmatpush1.msra.mxu0 0.0
  %3426 = vmatprep.subr.mxu0 0.0
  %3427 = vmatpush1.msra.mxu0 0.0
  %3428 = vmatprep.subr.mxu0 0.0
  %3429 = vmatpush1.msra.mxu0 0.0
  %3430 = vmatprep.subr.mxu0 0.0
  %3431 = vmatpush1.msra.mxu0 0.0
  %3432 = vmatprep.subr.mxu0 0.0
  %3433 = vmatpush1.msra.mxu0 0.0
  %3434 = vmatprep.subr.mxu0 0.0
  %3435 = vmatpush1.msra.mxu0 0.0
  %3436 = vmatprep.subr.mxu0 0.0
  %3437 = vmatpush1.msra.mxu0 0.0
  %3438 = vmatprep.subr.mxu0 0.0
  %3439 = vmatpush1.msra.mxu0 0.0
  %3440 = vmatprep.subr.mxu0 0.0
  %3441 = vmatpush1.msra.mxu0 0.0
  %3442 = vmatprep.subr.mxu0 0.0
  %3443 = vmatpush1.msra.mxu0 0.0
  %3444 = vmatprep.subr.mxu0 0.0
  %3445 = vmatpush1.msra.mxu0 0.0
  %3446 = vmatprep.subr.mxu0 0.0
  %3447 = vmatpush1.msra.mxu0 0.0
  %3448 = vmatprep.subr.mxu0 0.0
  %3449 = vmatpush1.msra.mxu0 0.0
  %3450 = vmatprep.subr.mxu0 0.0
  %3451 = vmatpush1.msra.mxu0 0.0
  %3452 = vmatprep.subr.mxu0 0.0
  %3453 = vmatpush1.msra.mxu0 0.0
  %3454 = vmatprep.subr.mxu0 0.0
  %3455 = vmatpush1.msra.mxu0 0.0
  %3456 = vmatprep.subr.mxu0 0.0
  %3457 = vmatpush1.msra.mxu0 0.0
  %3458 = vmatprep.subr.mxu0 0.0
  %3459 = vmatpush1.msra.mxu0 0.0
  %3460 = vmatprep.subr.mxu0 0.0
  %3461 = vmatpush1.msra.mxu0 0.0
  %3462 = vmatprep.subr.mxu0 0.0
  %3463 = vmatpush1.msra.mxu0 0.0
  %3464 = vmatprep.subr.mxu0 0.0
  %3465 = vmatpush1.msra.mxu0 0.0
  %3466 = vmatprep.subr.mxu0 0.0
  %3467 = vmatpush1.msra.mxu0 0.0
  %3468 = vmatprep.subr.mxu0 0.0
  %3469 = vmatpush1.msra.mxu0 0.0
  %3470 = vmatprep.subr.mxu0 0.0
  %3471 = vmatpush1.msra.mxu0 0.0
  %3472 = vmatprep.subr.mxu0 0.0
  %3473 = vmatpush1.msra.mxu0 0.0
  %3474 = vmatprep.subr.mxu0 0.0
  %3475 = vmatpush1.msra.mxu0 0.0
  %3476 = vmatprep.subr.mxu0 0.0
  %3477 = vmatpush1.msra.mxu0 0.0
  %3478 = vmatprep.subr.mxu0 0.0
  %3479 = vmatpush1.msra.mxu0 0.0
  %3480 = vmatprep.subr.mxu0 0.0
  %3481 = vmatpush1.msra.mxu0 0.0
  %3482 = vmatprep.mubr.f32.mxu0 0.0
  %3483 = vmatmul.mubr.f32.gmra.mrb[0].mxu0 %v3416
  %v3484 = vpop.f32.mrb[0].mxu0
  %v3485 = vadd.f32 0.0, %v3484
  %v3486 = vpop.f32.mrb[0].mxu0
  %3487 = vdwg.mxu0
  %v3488 = vadd.f32 %v3414, %v3485
  %v3489 = vtanh.pop %v3488
  %3490 = vst.msk [vmem:[#allocation2 + $0x2b] sm:$0x1] %vm94, %v3489
  %v3491 = vld [vmem:[#allocation2 + $0x2c] sm:$0x1]
  %v3493 = vsel %vm87, %v3489, 0
  %3495 = vmatprep.subr.mxu0 0.0
  %3496 = vmatpush1.msra.mxu0 %v96
  %3497 = vmatprep.subr.mxu0 0.0
  %3498 = vmatpush1.msra.mxu0 %v105
  %3499 = vmatprep.subr.mxu0 0.0
  %3500 = vmatpush1.msra.mxu0 0.0
  %3501 = vmatprep.subr.mxu0 0.0
  %3502 = vmatpush1.msra.mxu0 0.0
  %3503 = vmatprep.subr.mxu0 0.0
  %3504 = vmatpush1.msra.mxu0 0.0
  %3505 = vmatprep.subr.mxu0 0.0
  %3506 = vmatpush1.msra.mxu0 0.0
  %3507 = vmatprep.subr.mxu0 0.0
  %3508 = vmatpush1.msra.mxu0 0.0
  %3509 = vmatprep.subr.mxu0 0.0
  %3510 = vmatpush1.msra.mxu0 0.0
  %3511 = vmatprep.subr.mxu0 0.0
  %3512 = vmatpush1.msra.mxu0 0.0
  %3513 = vmatprep.subr.mxu0 0.0
  %3514 = vmatpush1.msra.mxu0 0.0
  %3515 = vmatprep.subr.mxu0 0.0
  %3516 = vmatpush1.msra.mxu0 0.0
  %3517 = vmatprep.subr.mxu0 0.0
  %3518 = vmatpush1.msra.mxu0 0.0
  %3519 = vmatprep.subr.mxu0 0.0
  %3520 = vmatpush1.msra.mxu0 0.0
  %3521 = vmatprep.subr.mxu0 0.0
  %3522 = vmatpush1.msra.mxu0 0.0
  %3523 = vmatprep.subr.mxu0 0.0
  %3524 = vmatpush1.msra.mxu0 0.0
  %3525 = vmatprep.subr.mxu0 0.0
  %3526 = vmatpush1.msra.mxu0 0.0
  %3527 = vmatprep.subr.mxu0 0.0
  %3528 = vmatpush1.msra.mxu0 0.0
  %3529 = vmatprep.subr.mxu0 0.0
  %3530 = vmatpush1.msra.mxu0 0.0
  %3531 = vmatprep.subr.mxu0 0.0
  %3532 = vmatpush1.msra.mxu0 0.0
  %3533 = vmatprep.subr.mxu0 0.0
  %3534 = vmatpush1.msra.mxu0 0.0
  %3535 = vmatprep.subr.mxu0 0.0
  %3536 = vmatpush1.msra.mxu0 0.0
  %3537 = vmatprep.subr.mxu0 0.0
  %3538 = vmatpush1.msra.mxu0 0.0
  %3539 = vmatprep.subr.mxu0 0.0
  %3540 = vmatpush1.msra.mxu0 0.0
  %3541 = vmatprep.subr.mxu0 0.0
  %3542 = vmatpush1.msra.mxu0 0.0
  %3543 = vmatprep.subr.mxu0 0.0
  %3544 = vmatpush1.msra.mxu0 0.0
  %3545 = vmatprep.subr.mxu0 0.0
  %3546 = vmatpush1.msra.mxu0 0.0
  %3547 = vmatprep.subr.mxu0 0.0
  %3548 = vmatpush1.msra.mxu0 0.0
  %3549 = vmatprep.subr.mxu0 0.0
  %3550 = vmatpush1.msra.mxu0 0.0
  %3551 = vmatprep.subr.mxu0 0.0
  %3552 = vmatpush1.msra.mxu0 0.0
  %3553 = vmatprep.subr.mxu0 0.0
  %3554 = vmatpush1.msra.mxu0 0.0
  %3555 = vmatprep.subr.mxu0 0.0
  %3556 = vmatpush1.msra.mxu0 0.0
  %3557 = vmatprep.subr.mxu0 0.0
  %3558 = vmatpush1.msra.mxu0 0.0
  %3559 = vmatprep.mubr.f32.mxu0 0.0
  %3560 = vmatmul.mubr.f32.gmra.mrb[0].mxu0 %v3493
  %v3561 = vpop.f32.mrb[0].mxu0
  %v3562 = vadd.f32 0.0, %v3561
  %v3563 = vpop.f32.mrb[0].mxu0
  %3564 = vdwg.mxu0
  %v3565 = vadd.f32 %v3491, %v3562
  %v3566 = vtanh.pop %v3565
  %3567 = vst.msk [vmem:[#allocation2 + $0x2c] sm:$0x1] %vm94, %v3566
  %v3568 = vld [vmem:[#allocation2 + $0x2d] sm:$0x1]
  %v3570 = vsel %vm87, %v3566, 0
  %3572 = vmatprep.subr.mxu0 0.0
  %3573 = vmatpush1.msra.mxu0 %v96
  %3574 = vmatprep.subr.mxu0 0.0
  %3575 = vmatpush1.msra.mxu0 %v105
  %3576 = vmatprep.subr.mxu0 0.0
  %3577 = vmatpush1.msra.mxu0 0.0
  %3578 = vmatprep.subr.mxu0 0.0
  %3579 = vmatpush1.msra.mxu0 0.0
  %3580 = vmatprep.subr.mxu0 0.0
  %3581 = vmatpush1.msra.mxu0 0.0
  %3582 = vmatprep.subr.mxu0 0.0
  %3583 = vmatpush1.msra.mxu0 0.0
  %3584 = vmatprep.subr.mxu0 0.0
  %3585 = vmatpush1.msra.mxu0 0.0
  %3586 = vmatprep.subr.mxu0 0.0
  %3587 = vmatpush1.msra.mxu0 0.0
  %3588 = vmatprep.subr.mxu0 0.0
  %3589 = vmatpush1.msra.mxu0 0.0
  %3590 = vmatprep.subr.mxu0 0.0
  %3591 = vmatpush1.msra.mxu0 0.0
  %3592 = vmatprep.subr.mxu0 0.0
  %3593 = vmatpush1.msra.mxu0 0.0
  %3594 = vmatprep.subr.mxu0 0.0
  %3595 = vmatpush1.msra.mxu0 0.0
  %3596 = vmatprep.subr.mxu0 0.0
  %3597 = vmatpush1.msra.mxu0 0.0
  %3598 = vmatprep.subr.mxu0 0.0
  %3599 = vmatpush1.msra.mxu0 0.0
  %3600 = vmatprep.subr.mxu0 0.0
  %3601 = vmatpush1.msra.mxu0 0.0
  %3602 = vmatprep.subr.mxu0 0.0
  %3603 = vmatpush1.msra.mxu0 0.0
  %3604 = vmatprep.subr.mxu0 0.0
  %3605 = vmatpush1.msra.mxu0 0.0
  %3606 = vmatprep.subr.mxu0 0.0
  %3607 = vmatpush1.msra.mxu0 0.0
  %3608 = vmatprep.subr.mxu0 0.0
  %3609 = vmatpush1.msra.mxu0 0.0
  %3610 = vmatprep.subr.mxu0 0.0
  %3611 = vmatpush1.msra.mxu0 0.0
  %3612 = vmatprep.subr.mxu0 0.0
  %3613 = vmatpush1.msra.mxu0 0.0
  %3614 = vmatprep.subr.mxu0 0.0
  %3615 = vmatpush1.msra.mxu0 0.0
  %3616 = vmatprep.subr.mxu0 0.0
  %3617 = vmatpush1.msra.mxu0 0.0
  %3618 = vmatprep.subr.mxu0 0.0
  %3619 = vmatpush1.msra.mxu0 0.0
  %3620 = vmatprep.subr.mxu0 0.0
  %3621 = vmatpush1.msra.mxu0 0.0
  %3622 = vmatprep.subr.mxu0 0.0
  %3623 = vmatpush1.msra.mxu0 0.0
  %3624 = vmatprep.subr.mxu0 0.0
  %3625 = vmatpush1.msra.mxu0 0.0
  %3626 = vmatprep.subr.mxu0 0.0
  %3627 = vmatpush1.msra.mxu0 0.0
  %3628 = vmatprep.subr.mxu0 0.0
  %3629 = vmatpush1.msra.mxu0 0.0
  %3630 = vmatprep.subr.mxu0 0.0
  %3631 = vmatpush1.msra.mxu0 0.0
  %3632 = vmatprep.subr.mxu0 0.0
  %3633 = vmatpush1.msra.mxu0 0.0
  %3634 = vmatprep.subr.mxu0 0.0
  %3635 = vmatpush1.msra.mxu0 0.0
  %3636 = vmatprep.mubr.f32.mxu0 0.0
  %3637 = vmatmul.mubr.f32.gmra.mrb[0].mxu0 %v3570
  %v3638 = vpop.f32.mrb[0].mxu0
  %v3639 = vadd.f32 0.0, %v3638
  %v3640 = vpop.f32.mrb[0].mxu0
  %3641 = vdwg.mxu0
  %v3642 = vadd.f32 %v3568, %v3639
  %v3643 = vtanh.pop %v3642
  %3644 = vst.msk [vmem:[#allocation2 + $0x2d] sm:$0x1] %vm94, %v3643
  %v3645 = vld [vmem:[#allocation2 + $0x2e] sm:$0x1]
  %v3647 = vsel %vm87, %v3643, 0
  %3649 = vmatprep.subr.mxu0 0.0
  %3650 = vmatpush1.msra.mxu0 %v96
  %3651 = vmatprep.subr.mxu0 0.0
  %3652 = vmatpush1.msra.mxu0 %v105
  %3653 = vmatprep.subr.mxu0 0.0
  %3654 = vmatpush1.msra.mxu0 0.0
  %3655 = vmatprep.subr.mxu0 0.0
  %3656 = vmatpush1.msra.mxu0 0.0
  %3657 = vmatprep.subr.mxu0 0.0
  %3658 = vmatpush1.msra.mxu0 0.0
  %3659 = vmatprep.subr.mxu0 0.0
  %3660 = vmatpush1.msra.mxu0 0.0
  %3661 = vmatprep.subr.mxu0 0.0
  %3662 = vmatpush1.msra.mxu0 0.0
  %3663 = vmatprep.subr.mxu0 0.0
  %3664 = vmatpush1.msra.mxu0 0.0
  %3665 = vmatprep.subr.mxu0 0.0
  %3666 = vmatpush1.msra.mxu0 0.0
  %3667 = vmatprep.subr.mxu0 0.0
  %3668 = vmatpush1.msra.mxu0 0.0
  %3669 = vmatprep.subr.mxu0 0.0
  %3670 = vmatpush1.msra.mxu0 0.0
  %3671 = vmatprep.subr.mxu0 0.0
  %3672 = vmatpush1.msra.mxu0 0.0
  %3673 = vmatprep.subr.mxu0 0.0
  %3674 = vmatpush1.msra.mxu0 0.0
  %3675 = vmatprep.subr.mxu0 0.0
  %3676 = vmatpush1.msra.mxu0 0.0
  %3677 = vmatprep.subr.mxu0 0.0
  %3678 = vmatpush1.msra.mxu0 0.0
  %3679 = vmatprep.subr.mxu0 0.0
  %3680 = vmatpush1.msra.mxu0 0.0
  %3681 = vmatprep.subr.mxu0 0.0
  %3682 = vmatpush1.msra.mxu0 0.0
  %3683 = vmatprep.subr.mxu0 0.0
  %3684 = vmatpush1.msra.mxu0 0.0
  %3685 = vmatprep.subr.mxu0 0.0
  %3686 = vmatpush1.msra.mxu0 0.0
  %3687 = vmatprep.subr.mxu0 0.0
  %3688 = vmatpush1.msra.mxu0 0.0
  %3689 = vmatprep.subr.mxu0 0.0
  %3690 = vmatpush1.msra.mxu0 0.0
  %3691 = vmatprep.subr.mxu0 0.0
  %3692 = vmatpush1.msra.mxu0 0.0
  %3693 = vmatprep.subr.mxu0 0.0
  %3694 = vmatpush1.msra.mxu0 0.0
  %3695 = vmatprep.subr.mxu0 0.0
  %3696 = vmatpush1.msra.mxu0 0.0
  %3697 = vmatprep.subr.mxu0 0.0
  %3698 = vmatpush1.msra.mxu0 0.0
  %3699 = vmatprep.subr.mxu0 0.0
  %3700 = vmatpush1.msra.mxu0 0.0
  %3701 = vmatprep.subr.mxu0 0.0
  %3702 = vmatpush1.msra.mxu0 0.0
  %3703 = vmatprep.subr.mxu0 0.0
  %3704 = vmatpush1.msra.mxu0 0.0
  %3705 = vmatprep.subr.mxu0 0.0
  %3706 = vmatpush1.msra.mxu0 0.0
  %3707 = vmatprep.subr.mxu0 0.0
  %3708 = vmatpush1.msra.mxu0 0.0
  %3709 = vmatprep.subr.mxu0 0.0
  %3710 = vmatpush1.msra.mxu0 0.0
  %3711 = vmatprep.subr.mxu0 0.0
  %3712 = vmatpush1.msra.mxu0 0.0
  %3713 = vmatprep.mubr.f32.mxu0 0.0
  %3714 = vmatmul.mubr.f32.gmra.mrb[0].mxu0 %v3647
  %v3715 = vpop.f32.mrb[0].mxu0
  %v3716 = vadd.f32 0.0, %v3715
  %v3717 = vpop.f32.mrb[0].mxu0
  %3718 = vdwg.mxu0
  %v3719 = vadd.f32 %v3645, %v3716
  %v3720 = vtanh.pop %v3719
  %3721 = vst.msk [vmem:[#allocation2 + $0x2e] sm:$0x1] %vm94, %v3720
  %v3722 = vld [vmem:[#allocation2 + $0x2f] sm:$0x1]
  %v3724 = vsel %vm87, %v3720, 0
  %3726 = vmatprep.subr.mxu0 0.0
  %3727 = vmatpush1.msra.mxu0 %v96
  %3728 = vmatprep.subr.mxu0 0.0
  %3729 = vmatpush1.msra.mxu0 %v105
  %3730 = vmatprep.subr.mxu0 0.0
  %3731 = vmatpush1.msra.mxu0 0.0
  %3732 = vmatprep.subr.mxu0 0.0
  %3733 = vmatpush1.msra.mxu0 0.0
  %3734 = vmatprep.subr.mxu0 0.0
  %3735 = vmatpush1.msra.mxu0 0.0
  %3736 = vmatprep.subr.mxu0 0.0
  %3737 = vmatpush1.msra.mxu0 0.0
  %3738 = vmatprep.subr.mxu0 0.0
  %3739 = vmatpush1.msra.mxu0 0.0
  %3740 = vmatprep.subr.mxu0 0.0
  %3741 = vmatpush1.msra.mxu0 0.0
  %3742 = vmatprep.subr.mxu0 0.0
  %3743 = vmatpush1.msra.mxu0 0.0
  %3744 = vmatprep.subr.mxu0 0.0
  %3745 = vmatpush1.msra.mxu0 0.0
  %3746 = vmatprep.subr.mxu0 0.0
  %3747 = vmatpush1.msra.mxu0 0.0
  %3748 = vmatprep.subr.mxu0 0.0
  %3749 = vmatpush1.msra.mxu0 0.0
  %3750 = vmatprep.subr.mxu0 0.0
  %3751 = vmatpush1.msra.mxu0 0.0
  %3752 = vmatprep.subr.mxu0 0.0
  %3753 = vmatpush1.msra.mxu0 0.0
  %3754 = vmatprep.subr.mxu0 0.0
  %3755 = vmatpush1.msra.mxu0 0.0
  %3756 = vmatprep.subr.mxu0 0.0
  %3757 = vmatpush1.msra.mxu0 0.0
  %3758 = vmatprep.subr.mxu0 0.0
  %3759 = vmatpush1.msra.mxu0 0.0
  %3760 = vmatprep.subr.mxu0 0.0
  %3761 = vmatpush1.msra.mxu0 0.0
  %3762 = vmatprep.subr.mxu0 0.0
  %3763 = vmatpush1.msra.mxu0 0.0
  %3764 = vmatprep.subr.mxu0 0.0
  %3765 = vmatpush1.msra.mxu0 0.0
  %3766 = vmatprep.subr.mxu0 0.0
  %3767 = vmatpush1.msra.mxu0 0.0
  %3768 = vmatprep.subr.mxu0 0.0
  %3769 = vmatpush1.msra.mxu0 0.0
  %3770 = vmatprep.subr.mxu0 0.0
  %3771 = vmatpush1.msra.mxu0 0.0
  %3772 = vmatprep.subr.mxu0 0.0
  %3773 = vmatpush1.msra.mxu0 0.0
  %3774 = vmatprep.subr.mxu0 0.0
  %3775 = vmatpush1.msra.mxu0 0.0
  %3776 = vmatprep.subr.mxu0 0.0
  %3777 = vmatpush1.msra.mxu0 0.0
  %3778 = vmatprep.subr.mxu0 0.0
  %3779 = vmatpush1.msra.mxu0 0.0
  %3780 = vmatprep.subr.mxu0 0.0
  %3781 = vmatpush1.msra.mxu0 0.0
  %3782 = vmatprep.subr.mxu0 0.0
  %3783 = vmatpush1.msra.mxu0 0.0
  %3784 = vmatprep.subr.mxu0 0.0
  %3785 = vmatpush1.msra.mxu0 0.0
  %3786 = vmatprep.subr.mxu0 0.0
  %3787 = vmatpush1.msra.mxu0 0.0
  %3788 = vmatprep.subr.mxu0 0.0
  %3789 = vmatpush1.msra.mxu0 0.0
  %3790 = vmatprep.mubr.f32.mxu0 0.0
  %3791 = vmatmul.mubr.f32.gmra.mrb[0].mxu0 %v3724
  %v3792 = vpop.f32.mrb[0].mxu0
  %v3793 = vadd.f32 0.0, %v3792
  %v3794 = vpop.f32.mrb[0].mxu0
  %3795 = vdwg.mxu0
  %v3796 = vadd.f32 %v3722, %v3793
  %v3797 = vtanh.pop %v3796
  %3798 = vst.msk [vmem:[#allocation2 + $0x2f] sm:$0x1] %vm94, %v3797
  %v3799 = vld [vmem:[#allocation2 + $0x30] sm:$0x1]
  %v3801 = vsel %vm87, %v3797, 0
  %3803 = vmatprep.subr.mxu0 0.0
  %3804 = vmatpush1.msra.mxu0 %v96
  %3805 = vmatprep.subr.mxu0 0.0
  %3806 = vmatpush1.msra.mxu0 %v105
  %3807 = vmatprep.subr.mxu0 0.0
  %3808 = vmatpush1.msra.mxu0 0.0
  %3809 = vmatprep.subr.mxu0 0.0
  %3810 = vmatpush1.msra.mxu0 0.0
  %3811 = vmatprep.subr.mxu0 0.0
  %3812 = vmatpush1.msra.mxu0 0.0
  %3813 = vmatprep.subr.mxu0 0.0
  %3814 = vmatpush1.msra.mxu0 0.0
  %3815 = vmatprep.subr.mxu0 0.0
  %3816 = vmatpush1.msra.mxu0 0.0
  %3817 = vmatprep.subr.mxu0 0.0
  %3818 = vmatpush1.msra.mxu0 0.0
  %3819 = vmatprep.subr.mxu0 0.0
  %3820 = vmatpush1.msra.mxu0 0.0
  %3821 = vmatprep.subr.mxu0 0.0
  %3822 = vmatpush1.msra.mxu0 0.0
  %3823 = vmatprep.subr.mxu0 0.0
  %3824 = vmatpush1.msra.mxu0 0.0
  %3825 = vmatprep.subr.mxu0 0.0
  %3826 = vmatpush1.msra.mxu0 0.0
  %3827 = vmatprep.subr.mxu0 0.0
  %3828 = vmatpush1.msra.mxu0 0.0
  %3829 = vmatprep.subr.mxu0 0.0
  %3830 = vmatpush1.msra.mxu0 0.0
  %3831 = vmatprep.subr.mxu0 0.0
  %3832 = vmatpush1.msra.mxu0 0.0
  %3833 = vmatprep.subr.mxu0 0.0
  %3834 = vmatpush1.msra.mxu0 0.0
  %3835 = vmatprep.subr.mxu0 0.0
  %3836 = vmatpush1.msra.mxu0 0.0
  %3837 = vmatprep.subr.mxu0 0.0
  %3838 = vmatpush1.msra.mxu0 0.0
  %3839 = vmatprep.subr.mxu0 0.0
  %3840 = vmatpush1.msra.mxu0 0.0
  %3841 = vmatprep.subr.mxu0 0.0
  %3842 = vmatpush1.msra.mxu0 0.0
  %3843 = vmatprep.subr.mxu0 0.0
  %3844 = vmatpush1.msra.mxu0 0.0
  %3845 = vmatprep.subr.mxu0 0.0
  %3846 = vmatpush1.msra.mxu0 0.0
  %3847 = vmatprep.subr.mxu0 0.0
  %3848 = vmatpush1.msra.mxu0 0.0
  %3849 = vmatprep.subr.mxu0 0.0
  %3850 = vmatpush1.msra.mxu0 0.0
  %3851 = vmatprep.subr.mxu0 0.0
  %3852 = vmatpush1.msra.mxu0 0.0
  %3853 = vmatprep.subr.mxu0 0.0
  %3854 = vmatpush1.msra.mxu0 0.0
  %3855 = vmatprep.subr.mxu0 0.0
  %3856 = vmatpush1.msra.mxu0 0.0
  %3857 = vmatprep.subr.mxu0 0.0
  %3858 = vmatpush1.msra.mxu0 0.0
  %3859 = vmatprep.subr.mxu0 0.0
  %3860 = vmatpush1.msra.mxu0 0.0
  %3861 = vmatprep.subr.mxu0 0.0
  %3862 = vmatpush1.msra.mxu0 0.0
  %3863 = vmatprep.subr.mxu0 0.0
  %3864 = vmatpush1.msra.mxu0 0.0
  %3865 = vmatprep.subr.mxu0 0.0
  %3866 = vmatpush1.msra.mxu0 0.0
  %3867 = vmatprep.mubr.f32.mxu0 0.0
  %3868 = vmatmul.mubr.f32.gmra.mrb[0].mxu0 %v3801
  %v3869 = vpop.f32.mrb[0].mxu0
  %v3870 = vadd.f32 0.0, %v3869
  %v3871 = vpop.f32.mrb[0].mxu0
  %3872 = vdwg.mxu0
  %v3873 = vadd.f32 %v3799, %v3870
  %v3874 = vtanh.pop %v3873
  %3875 = vst.msk [vmem:[#allocation2 + $0x30] sm:$0x1] %vm94, %v3874
  %3876 = vst.msk [vmem:[%s5] sm:$0x1] %vm94, %v3874
  %v3877 = vld [vmem:[#allocation2] sm:$0xff]
  %v3878 = vld [vmem:[#allocation2 + $0x8] sm:$0xff]
  %v3879 = vld [vmem:[#allocation2 + $0x10] sm:$0xff]
  %v3880 = vld [vmem:[#allocation2 + $0x18] sm:$0xff]
  %v3881 = vld [vmem:[#allocation2 + $0x20] sm:$0xff]
  %v3882 = vld [vmem:[#allocation2 + $0x28] sm:$0xff]
  %v3883 = vld [vmem:[#allocation2 + $0x30] sm:$0x1]
  %v3884 = vlaneseq
  %v3885 = vshrl.u32 %v3884, 7
  %v3886 = vsub.s32 0, %v3885
  %v3887 = vrot.slane %v21, %v3886
  %v3888 = vmul.f32 %v3877, %v3887
  %v3889 = vmul.f32 %v3878, %v3887
  %v3890 = vmul.f32 %v3879, %v3887
  %v3891 = vmul.f32 %v3880, %v3887
  %v3892 = vmul.f32 %v3881, %v3887
  %v3893 = vmul.f32 %v3882, %v3887
  %v3894 = vmul.f32 %v3883, %v3887
  %v3895 = vsel %vm87, %v3888, 0.0
  %3896 = vadd.xlane.f32.xlu0 %v3895
  %v3897 = vpop.xlane.xlu0 %3896
  %v3898 = vsel %vm87, %v3889, 0.0
  %3899 = vadd.xlane.f32.xlu0 %v3898
  %v3900 = vpop.xlane.xlu0 %3899
  %v3901 = vsel %vm87, %v3890, 0.0
  %3902 = vadd.xlane.f32.xlu0 %v3901
  %v3903 = vpop.xlane.xlu0 %3902
  %v3904 = vsel %vm87, %v3891, 0.0
  %3905 = vadd.xlane.f32.xlu0 %v3904
  %v3906 = vpop.xlane.xlu0 %3905
  %v3907 = vsel %vm87, %v3892, 0.0
  %3908 = vadd.xlane.f32.xlu0 %v3907
  %v3909 = vpop.xlane.xlu0 %3908
  %v3910 = vsel %vm87, %v3893, 0.0
  %3911 = vadd.xlane.f32.xlu0 %v3910
  %v3912 = vpop.xlane.xlu0 %3911
  %v3913 = vsel %vm94, %v3894, 0.0
  %3914 = vadd.xlane.f32.xlu0 %v3913
  %v3915 = vpop.xlane.xlu0 %3914
  %v3916 = vlaneseq
  %v3917 = vshrl.u32 %v3916, 7
  %v3918 = vsub.s32 0, %v3917
  %v3919 = vrot.slane %v22, %v3918
  %v3920 = vadd.f32 %v3897, %v3919
  %v3921 = vadd.f32 %v3900, %v3919
  %v3922 = vadd.f32 %v3903, %v3919
  %v3923 = vadd.f32 %v3906, %v3919
  %v3924 = vadd.f32 %v3909, %v3919
  %v3925 = vadd.f32 %v3912, %v3919
  %v3926 = vadd.f32 %v3915, %v3919
  %vm3927 = vcmask 7168
  %3928 = vst.msk [vmem:[%s4] sm:$0xff] %vm3927, %v3920
  %3929 = vst.msk [vmem:[%s4 + $0x8] sm:$0xff] %vm3927, %v3921
  %3930 = vst.msk [vmem:[%s4 + $0x10] sm:$0xff] %vm3927, %v3922
  %3931 = vst.msk [vmem:[%s4 + $0x18] sm:$0xff] %vm3927, %v3923
  %3932 = vst.msk [vmem:[%s4 + $0x20] sm:$0xff] %vm3927, %v3924
  %3933 = vst.msk [vmem:[%s4 + $0x28] sm:$0xff] %vm3927, %v3925
  %vm3934 = vcmask 0
  %3935 = vst.msk [vmem:[%s4 + $0x30] sm:$0x1] %vm3934, %v3926
  // Predicated region
  $region18: #{_net_forward.1} parent=0 // pred_check
    _
  $region19: #{_net_forward.1} parent=0 // pred_check_branch
    %3937 = sbr.rel (0) target = $region21
  $region20: #{_net_forward.1} parent=0 // pred_region
    _
  $region21: #{_net_forward.1} parent=0 // pred_fallthru
    _
  // Predicated region
  $region22: #{_net_forward.1} parent=0 // pred_check
    _
  $region23: #{_net_forward.1} parent=0 // pred_check_branch
    %3939 = sbr.rel (0) target = $region25
  $region24: #{_net_forward.1} parent=0 // pred_region
    _
  $region25: #{_net_forward.1} parent=0 // pred_fallthru
    _
  // Predicated region
  $region26: #{_net_forward.1} parent=0 // pred_check
    _
  $region27: #{_net_forward.1} parent=0 // pred_check_branch
    %3941 = sbr.rel (0) target = $region29
  $region28: #{_net_forward.1} parent=0 // pred_region
    _
  $region29: #{_net_forward.1} parent=0 // pred_fallthru
    _
  // Predicated region
  $region30: #{_net_forward.1} parent=0 // pred_check
    _
  $region31: #{_net_forward.1} parent=0 // pred_check_branch
    %3943 = sbr.rel (0) target = $region33
  $region32: #{_net_forward.1} parent=0 // pred_region
    _
  $region33: #{_net_forward.1} parent=0 // pred_fallthru
    _

</llo_original>
